<compile_context>
chip_gen: v7x
topology: tpu7x:2x2x1
jax: 0.10.0
libtpu: 0.0.40
codegen_flags: <defaults>
</compile_context>

<pallas_src>
import functools
from itertools import product

import numpy as np
import jax
import jax.numpy as jnp
from jax import lax
from jax.experimental import pallas as pl
from jax.experimental.pallas import tpu as pltpu


def _round_up(x, m):
    return ((x + m - 1) // m) * m


# ---------------------------------------------------------------------------
# Anchor box precompute (host-side, mirrors RegionProposalNetwork.create_anchor_boxes)
# ---------------------------------------------------------------------------
def create_anchor_boxes(input_size, feature_map_size, scales, aspect_ratios):
    d = input_size / feature_map_size
    ii, jj = np.meshgrid(
        np.arange(feature_map_size, dtype=np.float32),
        np.arange(feature_map_size, dtype=np.float32),
        indexing="ij",
    )
    cx = ii * d + d / 2.0
    cy = jj * d + d / 2.0

    anchors = []
    for scale, ar in product(scales, aspect_ratios):
        w_new = float(int((ar ** 0.5) * scale * d))      # torch code truncates to int
        h_new = float(int(scale * d / (ar ** 0.5)))
        a = np.stack([cx, cy, np.full_like(cx, w_new), np.full_like(cx, h_new)], axis=-1)
        anchors.append(a[:, :, None, :])
    anchors = np.concatenate(anchors, axis=2)            # (H, W, k, 4) cxcywh

    cxs, cys, ws, hs = anchors[..., 0], anchors[..., 1], anchors[..., 2], anchors[..., 3]
    x1 = np.clip(cxs - ws / 2.0, 0.0, input_size)
    y1 = np.clip(cys - hs / 2.0, 0.0, input_size)
    x2 = np.clip(cxs + ws / 2.0, 0.0, input_size)
    y2 = np.clip(cys + hs / 2.0, 0.0, input_size)
    out = np.stack([x1, y1, x2 - x1, y2 - y1], axis=-1).astype(np.float32)
    k = len(scales) * len(aspect_ratios)
    return out.reshape(feature_map_size * feature_map_size, k, 4)     # (HW, k, 4) xywh


# ---------------------------------------------------------------------------
# Pallas kernel: 3 aligned shifted matmuls (conv3x3 + folded 1x1 heads) + decode
# ---------------------------------------------------------------------------
def _rpn_kernel(x_ref, w_ref, b_ref, anch_ref, out_ref, *, wp, k):
    """One row tile of the fused RPN forward.

    x_ref    : (n_in, 3C)   bf16  width-im2col'd, zero-padded feature map,
                                  flat over the (H+2, Wp) grid with Wp rows of
                                  zero slack above and below.
    w_ref    : (3, 3C, d_pad) bf16  conv taps (dh=-1,0,+1) with the 1x1 heads
                                    folded in; planar output columns are
                                    [tx|ty|tw|th | cls0|cls1 | tx|ty|tw|th dup | 0 pad].
    b_ref    : (1, d_pad)   f32   folded bias, same planar layout.
    anch_ref : (tile, d_pad) f32  planar anchors: lanes [6K,8K)=cx|cy,
                                  lanes [8K,10K)=w|h, zeros elsewhere.
    out_ref  : (tile, d_pad) f32  [reg 4K | cls 2K | x1|y1 2K | w|h 2K | 0 pad].
    """
    tile = out_ref.shape[0]
    d_pad = out_ref.shape[1]
    row0 = pl.program_id(0) * tile

    # 3x3 conv (+ folded heads) as 3 row-aligned shifted matmuls, f32 acc on MXU.
    acc = None
    for a in range(3):                                     # dh = a - 1
        start = pl.multiple_of(row0 + a * wp, 16)          # 16-row (bf16 vreg) aligned
        xs = x_ref[pl.ds(start, tile), :]                  # (tile, 3C) bf16
        part = jnp.dot(xs, w_ref[a], preferred_element_type=jnp.float32)
        acc = part if acc is None else acc + part
    head = acc + b_ref[...]                                # (tile, d_pad) f32

    # Full-width planar box decode: VPU + masked EUP exp + 2 XLU rolls + selects.
    # TODO(synk): DetectionMixin.boxreg_transform source not provided; standard
    # (unclamped) Faster R-CNN delta decode against xywh anchors is used.
    lanes = lax.broadcasted_iota(jnp.int32, (tile, d_pad), 1)
    mask_xy = (lanes >= 6 * k) & (lanes < 8 * k)           # x1|y1 output lanes
    mask_wh = (lanes >= 8 * k) & (lanes < 10 * k)          # w |h  output lanes

    anch = anch_ref[...]                                   # f32
    expd = jnp.exp(jnp.where(mask_wh, head, 0.0))          # exp(tw|th) at [8K,10K), 1 elsewhere
    wh = anch * expd                                       # [8K,10K): wa*exp(tw) | ha*exp(th)
    shift = d_pad - 2 * k                                  # rotate lanes left by 2K
    a_sh = pltpu.roll(anch, shift, 1)                      # [6K,8K): wa | ha
    wh_sh = pltpu.roll(wh, shift, 1)                       # [6K,8K): w  | h
    xy1 = head * a_sh + anch - 0.5 * wh_sh                 # [6K,8K): tx*wa+cxa-w/2 | ty*ha+cya-h/2

    # Single lane-dense full-width store.
    out_ref[...] = jnp.where(mask_xy, xy1, jnp.where(mask_wh, wh, head))


# ---------------------------------------------------------------------------
# One-time parameter packing (hoisted out of the per-call path)
# ---------------------------------------------------------------------------
def prepare_rpn_params(params, anchors_hwk4, H, W, tile_rows=1024):
    hid, C = params["w_sw"].shape[0], params["w_sw"].shape[1]
    K = anchors_hwk4.shape[1]
    Hp = H + 2
    Wp = _round_up(W + 2, 16)          # 16-aligned padded width -> aligned dh shifts (bf16)
    n_grid = Hp * Wp
    d_pad = _round_up(10 * K, 128)

    # Even number of row tiles (keeps both v7x TensorCores busy under the
    # ("parallel",) grid); each tile a multiple of 16 rows.
    n_tiles = max(2, pl.cdiv(n_grid, max(16, tile_rows)))
    n_tiles += n_tiles % 2
    tile_rows = _round_up(pl.cdiv(n_grid, n_tiles), 16)
    n_tiles = pl.cdiv(n_grid, tile_rows)
    n_tiles += n_tiles % 2
    n_out_pad = n_tiles * tile_rows
    n_in = n_out_pad + 2 * Wp          # Wp rows of zero slack above and below

    # Planar 1x1-head weights: columns
    # [tx|ty|tw|th (K each) | cls0|cls1 (K each) | tx|ty|tw|th dup | zeros to d_pad].
    perm_reg = np.asarray([(j % K) * 4 + j // K for j in range(4 * K)])
    perm_cls = np.asarray([(j % K) * 2 + j // K for j in range(2 * K)])
    w_reg_p = params["w_reg"][:, :, 0, 0].astype(jnp.float32)[perm_reg].T    # (hid, 4K)
    w_cls_p = params["w_cls"][:, :, 0, 0].astype(jnp.float32)[perm_cls].T    # (hid, 2K)
    b_reg_p = params["b_reg"].astype(jnp.float32)[perm_reg]
    b_cls_p = params["b_cls"].astype(jnp.float32)[perm_cls]
    w_head = jnp.zeros((hid, d_pad), jnp.float32)
    w_head = w_head.at[:, 0:4 * K].set(w_reg_p)
    w_head = w_head.at[:, 4 * K:6 * K].set(w_cls_p)
    w_head = w_head.at[:, 6 * K:10 * K].set(w_reg_p)       # duplicate for box decode
    b_head = jnp.zeros((d_pad,), jnp.float32)
    b_head = b_head.at[0:4 * K].set(b_reg_p)
    b_head = b_head.at[4 * K:6 * K].set(b_cls_p)
    b_head = b_head.at[6 * K:10 * K].set(b_reg_p)

    # 3x3 conv weights as 3 width-im2col taps (dh, 3C, hid); dw blocks -1, 0, +1.
    w_taps = jnp.transpose(params["w_sw"].astype(jnp.float32), (2, 3, 1, 0))  # (kh,kw,C,hid)
    w_taps = w_taps.reshape(3, 3 * C, hid)

    # Fold the 1x1 heads into the conv taps (exact: no nonlinearity in between).
    hi = jax.lax.Precision.HIGHEST
    w_fold = jnp.einsum("ach,hd->acd", w_taps, w_head, precision=hi)          # (3, 3C, d_pad)
    w_fold = w_fold.astype(jnp.bfloat16)
    b_fold = (jnp.dot(params["b_sw"].astype(jnp.float32), w_head, precision=hi)
              + b_head).reshape(1, d_pad)                                     # f32

    # Anchors -> lane-dense planar f32 slab on the padded (Hp, Wp) grid:
    # lanes [6K,8K) = cx|cy, lanes [8K,10K) = w|h (K each), zeros elsewhere.
    a = jnp.asarray(anchors_hwk4, jnp.float32)            # (HW, K, 4) xywh
    wa, ha = a[..., 2], a[..., 3]
    cxa = a[..., 0] + 0.5 * wa
    cya = a[..., 1] + 0.5 * ha
    planar = jnp.concatenate([cxa, cya, wa, ha], axis=-1).reshape(H, W, 4 * K)
    anch = jnp.zeros((Hp, Wp, d_pad), jnp.float32)
    anch = anch.at[1:H + 1, 1:W + 1, 6 * K:10 * K].set(planar)
    anch = anch.reshape(n_grid, d_pad)
    anch = jnp.pad(anch, ((0, n_out_pad - n_grid), (0, 0)))

    return dict(
        w_fold=w_fold, b_fold=b_fold, anch=anch,
        anchor_boxes_flat=a.reshape(H * W * K, 4),
        H=H, W=W, C=C, K=K, Hp=Hp, Wp=Wp, d_pad=d_pad,
        tile_rows=tile_rows, n_tiles=n_tiles,
        n_grid=n_grid, n_out_pad=n_out_pad, n_in=n_in,
    )


# ---------------------------------------------------------------------------
# Wrapper: Pallas-backed equivalent of RegionProposalNetwork.propose_boxes
# ---------------------------------------------------------------------------
def rpn_propose_boxes(in_feature_map, prep):
    assert in_feature_map.shape[0] == 1, "Call on single slice of feature map at a time."
    H, W, C, K = prep["H"], prep["W"], prep["C"], prep["K"]
    Hp, Wp, d_pad = prep["Hp"], prep["Wp"], prep["d_pad"]
    tile_rows, n_tiles = prep["tile_rows"], prep["n_tiles"]
    n_grid, n_out_pad, n_in = prep["n_grid"], prep["n_out_pad"], prep["n_in"]

    # NCHW -> zero-padded (Hp, Wp, C) grid in bf16, width-im2col'd to (rows, 3C):
    # channel blocks hold the dw = -1, 0, +1 column shifts, so only the three
    # aligned dh row shifts remain in-kernel.
    x = jnp.transpose(in_feature_map[0], (1, 2, 0)).astype(jnp.bfloat16)   # (H, W, C)
    x = jnp.pad(x, ((1, 1), (1, Wp - W - 1), (0, 0)))                      # (Hp, Wp, C)
    flat = x.reshape(n_grid, C)
    xm = jnp.pad(flat, ((1, 0), (0, 0)))[:-1]                              # column c-1
    xp = jnp.pad(flat, ((0, 1), (0, 0)))[1:]                               # column c+1
    xw = jnp.concatenate([xm, flat, xp], axis=1)                           # (n_grid, 3C)
    xw = jnp.pad(xw, ((Wp, n_in - n_grid - Wp), (0, 0)))                   # (n_in, 3C)

    kernel = functools.partial(_rpn_kernel, wp=Wp, k=K)
    out_shape = jax.ShapeDtypeStruct((n_out_pad, d_pad), jnp.float32)

    # Explicit VMEM budget: bf16 resident operands + double-buffered moving tiles.
    est = (n_in * 3 * C * 2 + 3 * 3 * C * d_pad * 2 + d_pad * 4
           + 4 * tile_rows * d_pad * 4)
    vmem_limit = int(min(max(4 * est, 32 << 20), 48 << 20))
    cparams = pltpu.CompilerParams(dimension_semantics=("parallel",),
                                   vmem_limit_bytes=vmem_limit)

    def run(single_buffer_residents):
        # Grid-invariant operands only need a single pipeline buffer.
        res = {"pipeline_mode": pl.Buffered(1)} if single_buffer_residents else {}
        in_specs = [
            # TODO(synk): at production feature-map sizes on v7x (64 MiB VMEM),
            # switch this resident operand to memory_space=pl.ANY and stream a
            # halo'd row window per grid step with make_async_copy double-buffering.
            pl.BlockSpec((n_in, 3 * C), lambda t: (0, 0), **res),             # im2col'd x
            pl.BlockSpec((3, 3 * C, d_pad), lambda t: (0, 0, 0), **res),      # folded taps
            pl.BlockSpec((1, d_pad), lambda t: (0, 0), **res),                # folded bias
            pl.BlockSpec((tile_rows, d_pad), lambda t: (t, 0)),               # planar anchors
        ]
        return pl.pallas_call(
            kernel,
            out_shape=out_shape,
            grid=(n_tiles,),
            in_specs=in_specs,
            out_specs=pl.BlockSpec((tile_rows, d_pad), lambda t: (t, 0)),
            compiler_params=cparams,
        )(xw, prep["w_fold"], prep["b_fold"], prep["anch"])

    try:
        slab = run(True)
    except Exception:
        # Fallback if pl.Buffered(1) is not supported by this Pallas build.
        slab = run(False)

    # Slice interior rows of the padded grid and un-planarize (cheap XLA ops).
    HW = H * W
    valid = slab[:n_grid].reshape(Hp, Wp, d_pad)[1:H + 1, 1:W + 1].reshape(HW, d_pad)
    reg = jnp.transpose(valid[:, 0:4 * K].reshape(HW, 4, K), (0, 2, 1)).reshape(HW * K, 4)
    cls = jnp.transpose(valid[:, 4 * K:6 * K].reshape(HW, 2, K), (0, 2, 1)).reshape(HW * K, 2)
    boxes = jnp.transpose(valid[:, 6 * K:10 * K].reshape(HW, 4, K), (0, 2, 1)).reshape(HW * K, 4)

    # TODO(synk): apply_nms (data-dependent sequential NMS) has no clean Pallas
    # equivalent; output corresponds to forward(training=True) semantics (NMS skipped).
    return {
        "proposed_boxes": boxes,
        "regression_scores": reg,
        "class_scores": cls,
        "anchor_boxes": prep["anchor_boxes_flat"],
    }


# ---------------------------------------------------------------------------
# Pure-JAX reference (for correctness check)
# ---------------------------------------------------------------------------
def rpn_reference(in_feature_map, params, anchors_hwk4):
    dn = ("NCHW", "OIHW", "NCHW")
    x = in_feature_map.astype(jnp.float32)
    h = lax.conv_general_dilated(x, params["w_sw"], (1, 1), "SAME", dimension_numbers=dn)
    h = h + params["b_sw"][None, :, None, None]
    reg = lax.conv_general_dilated(h, params["w_reg"], (1, 1), "SAME", dimension_numbers=dn)
    reg = reg + params["b_reg"][None, :, None, None]
    cls = lax.conv_general_dilated(h, params["w_cls"], (1, 1), "SAME", dimension_numbers=dn)
    cls = cls + params["b_cls"][None, :, None, None]

    _, _, H, W = x.shape
    K = anchors_hwk4.shape[1]
    reg = jnp.transpose(reg, (0, 2, 3, 1)).reshape(H * W, K, 4)
    cls = jnp.transpose(cls, (0, 2, 3, 1)).reshape(H * W * K, 2)

    anch = anchors_hwk4
    xa, ya, wa, ha = anch[..., 0], anch[..., 1], anch[..., 2], anch[..., 3]
    cxa, cya = xa + 0.5 * wa, ya + 0.5 * ha
    tx, ty, tw, th = reg[..., 0], reg[..., 1], reg[..., 2], reg[..., 3]
    cx, cy = tx * wa + cxa, ty * ha + cya
    w, hh = wa * jnp.exp(tw), ha * jnp.exp(th)
    boxes = jnp.stack([cx - 0.5 * w, cy - 0.5 * hh, w, hh], axis=-1).reshape(H * W * K, 4)
    return boxes, reg.reshape(H * W * K, 4), cls


# ---------------------------------------------------------------------------
if __name__ == "__main__":
    # Small synthetic config (RPNConfig analogue)
    image_input_size = 64
    feature_map_size = 16
    feature_dim = 8
    hidden_dim = 32
    scales = (1.0, 2.0)
    aspect_ratios = (0.5, 1.0, 2.0)
    k = len(scales) * len(aspect_ratios)

    key = jax.random.PRNGKey(0)
    k0, k1, k2, k3, k4, k5, k6 = jax.random.split(key, 7)

    params = {
        "w_sw": 0.05 * jax.random.normal(k0, (hidden_dim, feature_dim, 3, 3), jnp.float32),
        "b_sw": 0.01 * jax.random.normal(k1, (hidden_dim,), jnp.float32),
        "w_reg": 0.05 * jax.random.normal(k2, (k * 4, hidden_dim, 1, 1), jnp.float32),
        "b_reg": 0.01 * jax.random.normal(k3, (k * 4,), jnp.float32),
        "w_cls": 0.05 * jax.random.normal(k4, (k * 2, hidden_dim, 1, 1), jnp.float32),
        "b_cls": 0.01 * jax.random.normal(k5, (k * 2,), jnp.float32),
    }

    anchors = jnp.asarray(
        create_anchor_boxes(image_input_size, feature_map_size, scales, aspect_ratios)
    )  # (H*W, k, 4) xywh

    # single feature-map slice, NCHW (propose_boxes asserts batch == 1)
    in_feature_map = jax.random.normal(
        k6, (1, feature_dim, feature_map_size, feature_map_size), jnp.float32
    )

    # One-time param packing; default 1K-row tiles collapse to 2 even tiles at
    # this toy size (keeps the parallel grid megacore-friendly on v7x).
    prep = prepare_rpn_params(params, anchors, feature_map_size, feature_map_size)

    out = rpn_propose_boxes(in_feature_map, prep)
    jax.block_until_ready(out)

    ref_boxes, ref_reg, ref_cls = rpn_reference(in_feature_map, params, anchors)

    # Kernel runs bf16 operands / f32 accumulation (same effective precision as
    # DEFAULT MXU passes in the reference); exp() in the decode amplifies the
    # rounding slightly, so boxes get a looser tolerance.
    np.testing.assert_allclose(np.asarray(out["regression_scores"]), np.asarray(ref_reg),
                               rtol=2e-2, atol=2e-2)
    np.testing.assert_allclose(np.asarray(out["class_scores"]), np.asarray(ref_cls),
                               rtol=2e-2, atol=2e-2)
    np.testing.assert_allclose(np.asarray(out["proposed_boxes"]), np.asarray(ref_boxes),
                               rtol=5e-2, atol=5e-2)

    HWk = feature_map_size * feature_map_size * k
    assert out["proposed_boxes"].shape == (HWk, 4)
    assert out["regression_scores"].shape == (HWk, 4)
    assert out["class_scores"].shape == (HWk, 2)
    assert out["anchor_boxes"].shape == (HWk, 4)

    print("KERNEL_OK")
</pallas_src>

<mosaic_0001>
module attributes {stable_mosaic.version = 11 : i64} {
  func.func @_rpn_kernel(%arg0: i32, %arg1: memref<640x24xbf16, #tpu.memory_space<vmem>>, %arg2: memref<3x24x128xbf16, #tpu.memory_space<vmem>>, %arg3: memref<1x128xf32, #tpu.memory_space<vmem>>, %arg4: memref<288x128xf32, #tpu.memory_space<vmem>>, %arg5: memref<288x128xf32, #tpu.memory_space<vmem>>) attributes {dimension_semantics = [#tpu.dimension_semantics<parallel>], iteration_bounds = array<i64: 2>, scalar_prefetch = 0 : i64, scratch_operands = 0 : i64, tpu.core_type = #tpu.core_type<tc>, window_params = [{pipeline_mode = #tpu.pipeline_mode<synchronous>, transform_indices = @transform_0, window_bounds = array<i64: 640, 24>}, {pipeline_mode = #tpu.pipeline_mode<synchronous>, transform_indices = @transform_1, window_bounds = array<i64: 3, 24, 128>}, {pipeline_mode = #tpu.pipeline_mode<synchronous>, transform_indices = @transform_2, window_bounds = array<i64: 1, 128>}, {transform_indices = @transform_3, window_bounds = array<i64: 288, 128>}, {transform_indices = @transform_4, window_bounds = array<i64: 288, 128>}]} {
    %c288_i32 = arith.constant 288 : i32
    %0 = arith.muli %arg0, %c288_i32 : i32
    %c0_i32 = arith.constant 0 : i32
    %1 = arith.addi %0, %c0_i32 : i32
    %2 = tpu.assume_multiple %1, 16 : i32
    %3 = arith.index_cast %2 : i32 to index
    %c0 = arith.constant 0 : index
    %4 = vector.load %arg1[%3, %c0] : memref<640x24xbf16, #tpu.memory_space<vmem>>, vector<288x24xbf16>
    %c0_0 = arith.constant 0 : index
    %c0_1 = arith.constant 0 : index
    %c0_2 = arith.constant 0 : index
    %5 = vector.load %arg2[%c0_0, %c0_1, %c0_2] : memref<3x24x128xbf16, #tpu.memory_space<vmem>>, vector<1x24x128xbf16>
    %6 = vector.shape_cast %5 : vector<1x24x128xbf16> to vector<24x128xbf16>
    %cst = arith.constant dense<0.000000e+00> : vector<288x128xf32>
    %7 = tpu.matmul %4, %6, %cst {dimension_numbers = #tpu.dot_dimension_numbers<[1], [0], [0], [1], [0, 0, 1, 1], [], []>} : vector<288x24xbf16>, vector<24x128xbf16>, vector<288x128xf32> -> vector<288x128xf32>
    %c32_i32 = arith.constant 32 : i32
    %8 = arith.addi %0, %c32_i32 : i32
    %9 = tpu.assume_multiple %8, 16 : i32
    %10 = arith.index_cast %9 : i32 to index
    %c0_3 = arith.constant 0 : index
    %11 = vector.load %arg1[%10, %c0_3] : memref<640x24xbf16, #tpu.memory_space<vmem>>, vector<288x24xbf16>
    %c1 = arith.constant 1 : index
    %c0_4 = arith.constant 0 : index
    %c0_5 = arith.constant 0 : index
    %12 = vector.load %arg2[%c1, %c0_4, %c0_5] : memref<3x24x128xbf16, #tpu.memory_space<vmem>>, vector<1x24x128xbf16>
    %13 = vector.shape_cast %12 : vector<1x24x128xbf16> to vector<24x128xbf16>
    %cst_6 = arith.constant dense<0.000000e+00> : vector<288x128xf32>
    %14 = tpu.matmul %11, %13, %cst_6 {dimension_numbers = #tpu.dot_dimension_numbers<[1], [0], [0], [1], [0, 0, 1, 1], [], []>} : vector<288x24xbf16>, vector<24x128xbf16>, vector<288x128xf32> -> vector<288x128xf32>
    %15 = arith.addf %7, %14 : vector<288x128xf32>
    %c64_i32 = arith.constant 64 : i32
    %16 = arith.addi %0, %c64_i32 : i32
    %17 = tpu.assume_multiple %16, 16 : i32
    %18 = arith.index_cast %17 : i32 to index
    %c0_7 = arith.constant 0 : index
    %19 = vector.load %arg1[%18, %c0_7] : memref<640x24xbf16, #tpu.memory_space<vmem>>, vector<288x24xbf16>
    %c2 = arith.constant 2 : index
    %c0_8 = arith.constant 0 : index
    %c0_9 = arith.constant 0 : index
    %20 = vector.load %arg2[%c2, %c0_8, %c0_9] : memref<3x24x128xbf16, #tpu.memory_space<vmem>>, vector<1x24x128xbf16>
    %21 = vector.shape_cast %20 : vector<1x24x128xbf16> to vector<24x128xbf16>
    %cst_10 = arith.constant dense<0.000000e+00> : vector<288x128xf32>
    %22 = tpu.matmul %19, %21, %cst_10 {dimension_numbers = #tpu.dot_dimension_numbers<[1], [0], [0], [1], [0, 0, 1, 1], [], []>} : vector<288x24xbf16>, vector<24x128xbf16>, vector<288x128xf32> -> vector<288x128xf32>
    %23 = arith.addf %15, %22 : vector<288x128xf32>
    %c0_11 = arith.constant 0 : index
    %c0_12 = arith.constant 0 : index
    %24 = vector.load %arg3[%c0_11, %c0_12] : memref<1x128xf32, #tpu.memory_space<vmem>>, vector<1x128xf32>
    %25 = vector.broadcast %24 : vector<1x128xf32> to vector<288x128xf32>
    %26 = arith.addf %23, %25 : vector<288x128xf32>
    %27 = tpu.iota {dimensions = array<i32: 1>} : vector<288x128xi32>
    %c36_i32 = arith.constant 36 : i32
    %28 = vector.broadcast %c36_i32 : i32 to vector<288x128xi32>
    %29 = arith.cmpi sge, %27, %28 : vector<288x128xi32>
    %c48_i32 = arith.constant 48 : i32
    %30 = vector.broadcast %c48_i32 : i32 to vector<288x128xi32>
    %31 = arith.cmpi slt, %27, %30 : vector<288x128xi32>
    %32 = arith.andi %29, %31 : vector<288x128xi1>
    %c48_i32_13 = arith.constant 48 : i32
    %33 = vector.broadcast %c48_i32_13 : i32 to vector<288x128xi32>
    %34 = arith.cmpi sge, %27, %33 : vector<288x128xi32>
    %c60_i32 = arith.constant 60 : i32
    %35 = vector.broadcast %c60_i32 : i32 to vector<288x128xi32>
    %36 = arith.cmpi slt, %27, %35 : vector<288x128xi32>
    %37 = arith.andi %34, %36 : vector<288x128xi1>
    %c0_14 = arith.constant 0 : index
    %c0_15 = arith.constant 0 : index
    %38 = vector.load %arg4[%c0_14, %c0_15] : memref<288x128xf32, #tpu.memory_space<vmem>>, vector<288x128xf32>
    %cst_16 = arith.constant 0.000000e+00 : f32
    %39 = vector.broadcast %cst_16 : f32 to vector<288x128xf32>
    %40 = arith.select %37, %26, %39 : vector<288x128xi1>, vector<288x128xf32>
    %41 = math.exp %40 : vector<288x128xf32>
    %42 = arith.mulf %38, %41 : vector<288x128xf32>
    %c116_i32 = arith.constant 116 : i32
    %43 = tpu.dynamic_rotate %38 by %c116_i32 dim 1 : vector<288x128xf32>, i32 -> vector<288x128xf32>
    %c116_i32_17 = arith.constant 116 : i32
    %44 = tpu.dynamic_rotate %42 by %c116_i32_17 dim 1 : vector<288x128xf32>, i32 -> vector<288x128xf32>
    %45 = arith.mulf %26, %43 : vector<288x128xf32>
    %46 = arith.addf %45, %38 : vector<288x128xf32>
    %cst_18 = arith.constant 5.000000e-01 : f32
    %47 = vector.broadcast %cst_18 : f32 to vector<288x128xf32>
    %48 = arith.mulf %47, %44 : vector<288x128xf32>
    %49 = arith.subf %46, %48 : vector<288x128xf32>
    %50 = arith.select %37, %42, %26 : vector<288x128xi1>, vector<288x128xf32>
    %51 = arith.select %32, %49, %50 : vector<288x128xi1>, vector<288x128xf32>
    %c0_19 = arith.constant 0 : index
    %c0_20 = arith.constant 0 : index
    %52 = vector.load %arg5[%c0_19, %c0_20] : memref<288x128xf32, #tpu.memory_space<vmem>>, vector<288x128xf32>
    tpu.vector_store %arg5[%c0_19, %c0_20], %51 {strides = array<i32>} : memref<288x128xf32, #tpu.memory_space<vmem>>, vector<288x128xf32>,
    return
  }
  func.func @transform_0(%arg0: i32) -> (i32, i32) {
    %c0_i32 = arith.constant 0 : i32
    %c0_i32_0 = arith.constant 0 : i32
    %c0_i32_1 = arith.constant 0 : i32
    return %c0_i32, %c0_i32_0 : i32, i32
  }
  func.func @transform_1(%arg0: i32) -> (i32, i32, i32) {
    %c0_i32 = arith.constant 0 : i32
    %c0_i32_0 = arith.constant 0 : i32
    %c0_i32_1 = arith.constant 0 : i32
    %c0_i32_2 = arith.constant 0 : i32
    return %c0_i32, %c0_i32_0, %c0_i32_1 : i32, i32, i32
  }
  func.func @transform_2(%arg0: i32) -> (i32, i32) {
    %c0_i32 = arith.constant 0 : i32
    %c0_i32_0 = arith.constant 0 : i32
    %c0_i32_1 = arith.constant 0 : i32
    return %c0_i32, %c0_i32_0 : i32, i32
  }
  func.func @transform_3(%arg0: i32) -> (i32, i32) {
    %c0_i32 = arith.constant 0 : i32
    %c0_i32_0 = arith.constant 0 : i32
    return %arg0, %c0_i32 : i32, i32
  }
  func.func @transform_4(%arg0: i32) -> (i32, i32) {
    %c0_i32 = arith.constant 0 : i32
    %c0_i32_0 = arith.constant 0 : i32
    return %arg0, %c0_i32 : i32, i32
  }
}

module attributes {stable_mosaic.version = 11 : i64} {
  func.func @_rpn_kernel(%arg0: i32, %arg1: memref<640x24xbf16, #tpu.memory_space<vmem>>, %arg2: memref<3x24x128xbf16, #tpu.memory_space<vmem>>, %arg3: memref<1x128xf32, #tpu.memory_space<vmem>>, %arg4: memref<288x128xf32, #tpu.memory_space<vmem>>, %arg5: memref<288x128xf32, #tpu.memory_space<vmem>>) attributes {dimension_semantics = [#tpu.dimension_semantics<parallel>], iteration_bounds = array<i64: 2>, scalar_prefetch = 0 : i64, scratch_operands = 0 : i64, tpu.core_type = #tpu.core_type<tc>, window_params = [{pipeline_mode = #tpu.pipeline_mode<synchronous>, transform_indices = @transform_0, window_bounds = array<i64: 640, 24>}, {pipeline_mode = #tpu.pipeline_mode<synchronous>, transform_indices = @transform_1, window_bounds = array<i64: 3, 24, 128>}, {pipeline_mode = #tpu.pipeline_mode<synchronous>, transform_indices = @transform_2, window_bounds = array<i64: 1, 128>}, {transform_indices = @transform_3, window_bounds = array<i64: 288, 128>}, {transform_indices = @transform_4, window_bounds = array<i64: 288, 128>}]} {
    %c288_i32 = arith.constant 288 : i32
    %0 = arith.muli %arg0, %c288_i32 : i32
    %c0_i32 = arith.constant 0 : i32
    %1 = arith.addi %0, %c0_i32 : i32
    %2 = tpu.assume_multiple %1, 16 : i32
    %3 = arith.index_cast %2 : i32 to index
    %c0 = arith.constant 0 : index
    %4 = vector.load %arg1[%3, %c0] : memref<640x24xbf16, #tpu.memory_space<vmem>>, vector<288x24xbf16>
    %c0_0 = arith.constant 0 : index
    %c0_1 = arith.constant 0 : index
    %c0_2 = arith.constant 0 : index
    %5 = vector.load %arg2[%c0_0, %c0_1, %c0_2] : memref<3x24x128xbf16, #tpu.memory_space<vmem>>, vector<1x24x128xbf16>
    %6 = vector.shape_cast %5 : vector<1x24x128xbf16> to vector<24x128xbf16>
    %cst = arith.constant dense<0.000000e+00> : vector<288x128xf32>
    %7 = tpu.matmul %4, %6, %cst {dimension_numbers = #tpu.dot_dimension_numbers<[1], [0], [0], [1], [0, 0, 1, 1], [], []>} : vector<288x24xbf16>, vector<24x128xbf16>, vector<288x128xf32> -> vector<288x128xf32>
    %c32_i32 = arith.constant 32 : i32
    %8 = arith.addi %0, %c32_i32 : i32
    %9 = tpu.assume_multiple %8, 16 : i32
    %10 = arith.index_cast %9 : i32 to index
    %c0_3 = arith.constant 0 : index
    %11 = vector.load %arg1[%10, %c0_3] : memref<640x24xbf16, #tpu.memory_space<vmem>>, vector<288x24xbf16>
    %c1 = arith.constant 1 : index
    %c0_4 = arith.constant 0 : index
    %c0_5 = arith.constant 0 : index
    %12 = vector.load %arg2[%c1, %c0_4, %c0_5] : memref<3x24x128xbf16, #tpu.memory_space<vmem>>, vector<1x24x128xbf16>
    %13 = vector.shape_cast %12 : vector<1x24x128xbf16> to vector<24x128xbf16>
    %cst_6 = arith.constant dense<0.000000e+00> : vector<288x128xf32>
    %14 = tpu.matmul %11, %13, %cst_6 {dimension_numbers = #tpu.dot_dimension_numbers<[1], [0], [0], [1], [0, 0, 1, 1], [], []>} : vector<288x24xbf16>, vector<24x128xbf16>, vector<288x128xf32> -> vector<288x128xf32>
    %15 = arith.addf %7, %14 : vector<288x128xf32>
    %c64_i32 = arith.constant 64 : i32
    %16 = arith.addi %0, %c64_i32 : i32
    %17 = tpu.assume_multiple %16, 16 : i32
    %18 = arith.index_cast %17 : i32 to index
    %c0_7 = arith.constant 0 : index
    %19 = vector.load %arg1[%18, %c0_7] : memref<640x24xbf16, #tpu.memory_space<vmem>>, vector<288x24xbf16>
    %c2 = arith.constant 2 : index
    %c0_8 = arith.constant 0 : index
    %c0_9 = arith.constant 0 : index
    %20 = vector.load %arg2[%c2, %c0_8, %c0_9] : memref<3x24x128xbf16, #tpu.memory_space<vmem>>, vector<1x24x128xbf16>
    %21 = vector.shape_cast %20 : vector<1x24x128xbf16> to vector<24x128xbf16>
    %cst_10 = arith.constant dense<0.000000e+00> : vector<288x128xf32>
    %22 = tpu.matmul %19, %21, %cst_10 {dimension_numbers = #tpu.dot_dimension_numbers<[1], [0], [0], [1], [0, 0, 1, 1], [], []>} : vector<288x24xbf16>, vector<24x128xbf16>, vector<288x128xf32> -> vector<288x128xf32>
    %23 = arith.addf %15, %22 : vector<288x128xf32>
    %c0_11 = arith.constant 0 : index
    %c0_12 = arith.constant 0 : index
    %24 = vector.load %arg3[%c0_11, %c0_12] : memref<1x128xf32, #tpu.memory_space<vmem>>, vector<1x128xf32>
    %25 = vector.broadcast %24 : vector<1x128xf32> to vector<288x128xf32>
    %26 = arith.addf %23, %25 : vector<288x128xf32>
    %27 = tpu.iota {dimensions = array<i32: 1>} : vector<288x128xi32>
    %c36_i32 = arith.constant 36 : i32
    %28 = vector.broadcast %c36_i32 : i32 to vector<288x128xi32>
    %29 = arith.cmpi sge, %27, %28 : vector<288x128xi32>
    %c48_i32 = arith.constant 48 : i32
    %30 = vector.broadcast %c48_i32 : i32 to vector<288x128xi32>
    %31 = arith.cmpi slt, %27, %30 : vector<288x128xi32>
    %32 = arith.andi %29, %31 : vector<288x128xi1>
    %c48_i32_13 = arith.constant 48 : i32
    %33 = vector.broadcast %c48_i32_13 : i32 to vector<288x128xi32>
    %34 = arith.cmpi sge, %27, %33 : vector<288x128xi32>
    %c60_i32 = arith.constant 60 : i32
    %35 = vector.broadcast %c60_i32 : i32 to vector<288x128xi32>
    %36 = arith.cmpi slt, %27, %35 : vector<288x128xi32>
    %37 = arith.andi %34, %36 : vector<288x128xi1>
    %c0_14 = arith.constant 0 : index
    %c0_15 = arith.constant 0 : index
    %38 = vector.load %arg4[%c0_14, %c0_15] : memref<288x128xf32, #tpu.memory_space<vmem>>, vector<288x128xf32>
    %cst_16 = arith.constant 0.000000e+00 : f32
    %39 = vector.broadcast %cst_16 : f32 to vector<288x128xf32>
    %40 = arith.select %37, %26, %39 : vector<288x128xi1>, vector<288x128xf32>
    %41 = math.exp %40 : vector<288x128xf32>
    %42 = arith.mulf %38, %41 : vector<288x128xf32>
    %c116_i32 = arith.constant 116 : i32
    %43 = tpu.dynamic_rotate %38 by %c116_i32 dim 1 : vector<288x128xf32>, i32 -> vector<288x128xf32>
    %c116_i32_17 = arith.constant 116 : i32
    %44 = tpu.dynamic_rotate %42 by %c116_i32_17 dim 1 : vector<288x128xf32>, i32 -> vector<288x128xf32>
    %45 = arith.mulf %26, %43 : vector<288x128xf32>
    %46 = arith.addf %45, %38 : vector<288x128xf32>
    %cst_18 = arith.constant 5.000000e-01 : f32
    %47 = vector.broadcast %cst_18 : f32 to vector<288x128xf32>
    %48 = arith.mulf %47, %44 : vector<288x128xf32>
    %49 = arith.subf %46, %48 : vector<288x128xf32>
    %50 = arith.select %37, %42, %26 : vector<288x128xi1>, vector<288x128xf32>
    %51 = arith.select %32, %49, %50 : vector<288x128xi1>, vector<288x128xf32>
    %c0_19 = arith.constant 0 : index
    %c0_20 = arith.constant 0 : index
    %52 = vector.load %arg5[%c0_19, %c0_20] : memref<288x128xf32, #tpu.memory_space<vmem>>, vector<288x128xf32>
    tpu.vector_store %arg5[%c0_19, %c0_20], %51 {strides = array<i32>} : memref<288x128xf32, #tpu.memory_space<vmem>>, vector<288x128xf32>,
    return
  }
  func.func @transform_0(%arg0: i32) -> (i32, i32) {
    %c0_i32 = arith.constant 0 : i32
    %c0_i32_0 = arith.constant 0 : i32
    %c0_i32_1 = arith.constant 0 : i32
    return %c0_i32, %c0_i32_0 : i32, i32
  }
  func.func @transform_1(%arg0: i32) -> (i32, i32, i32) {
    %c0_i32 = arith.constant 0 : i32
    %c0_i32_0 = arith.constant 0 : i32
    %c0_i32_1 = arith.constant 0 : i32
    %c0_i32_2 = arith.constant 0 : i32
    return %c0_i32, %c0_i32_0, %c0_i32_1 : i32, i32, i32
  }
  func.func @transform_2(%arg0: i32) -> (i32, i32) {
    %c0_i32 = arith.constant 0 : i32
    %c0_i32_0 = arith.constant 0 : i32
    %c0_i32_1 = arith.constant 0 : i32
    return %c0_i32, %c0_i32_0 : i32, i32
  }
  func.func @transform_3(%arg0: i32) -> (i32, i32) {
    %c0_i32 = arith.constant 0 : i32
    %c0_i32_0 = arith.constant 0 : i32
    return %arg0, %c0_i32 : i32, i32
  }
  func.func @transform_4(%arg0: i32) -> (i32, i32) {
    %c0_i32 = arith.constant 0 : i32
    %c0_i32_0 = arith.constant 0 : i32
    return %arg0, %c0_i32 : i32, i32
  }
}

</mosaic_0001>

<llo_original>
// kernel: tpu_custom_call.1
$region0: #{tpu_custom_call.1}
  #allocation0 [shape = 'u32[]', space=smem, size = 0x4, offset = 0x4, fixed_abs, tag = 'smem constant byte address 0x4 - core index']
  #allocation1 [shape = 'u32[144,128]{1,0:T(1,128)}', space=vmem, size = 0x12000, scoped, tag = 'internal scratch']
  %s0 = inlined_call_operand.vmem [shape: bf16[640,24], index: 0, kind: input, shape index: {}]
  %s1 = inlined_call_operand.vmem [shape: bf16[3,24,128], index: 1, kind: input, shape index: {}]
  %s2 = inlined_call_operand.vmem [shape: f32[1,128], index: 2, kind: input, shape index: {}]
  %s3 = inlined_call_operand.hbm [shape: f32[576,128], index: 3, kind: input, shape index: {}]
  %s4 = inlined_call_operand.hbm [shape: f32[576,128], index: 4, kind: output, shape index: {}]
  %s5 = sld [smem:[#allocation0]]
  $region53: #{tpu_custom_call.1} parent=0
    _
  %s7 = ssub.s32 1, %s5
  %s8 = scalar_select 0, %s7, %s5
  $region1: #{tpu_custom_call.1} parent=0
    #allocation2 [shape = 'u8[294912]{0}', space=vmem, size = 0x48000, scoped, tag = 'input window, operand 3']
    #allocation3 [shape = 's32[2]{0}', space=sflag, size = 0x8, scoped, tag = 'scoped memory for tpu_custom_call.1']
    #allocation4 [shape = 's32[2]{0}', space=sflag, size = 0x8, scoped, tag = 'scoped memory for tpu_custom_call.1']
    #allocation5 [shape = 'u8[294912]{0}', space=vmem, size = 0x48000, scoped, tag = 'output window, operand 0']
    %9 = vsyncpa [#allocation3], 0
    %s10 = scalar_lea.sflag [#allocation3], 1
    %11 = vsyncpa %s10, 0
    %12 = vsyncpa [#allocation4], 0
    %s13 = scalar_lea.sflag [#allocation4], 1
    %14 = vsyncpa %s13, 0
    loop: start=0, step=1, limit=4
    $region2: #{tpu_custom_call.1} parent=1 // loop_pre_header
      _
    $region3: #{tpu_custom_call.1} parent=1 // loop_header
      %s16 = sphi 0, %s20
      %p17 = scmp.ge.s32.totalorder %s16, 4
      %s24 = sphi 0, %s24
      %s26 = sphi 0, %s24
      %s27 = sphi 0, %s26
      %s41 = sphi 0, %s27
      %s45 = sphi 0, %s45
      %s47 = sphi 0, %s45
      %s48 = sphi 0, %s47
      %s62 = sphi 0, %s48
      %s66 = sphi 0, %s66
      %s68 = sphi 0, %s66
      %s69 = sphi 0, %s68
      %s83 = sphi 0, %s69
      %s89 = sphi 0, %s91
      %s92 = sphi 0, %s89
      %s93 = sphi 0, %s92
      %s109 = sphi 0, %s93
      %s115 = sphi 0, %s117
      %s118 = sphi 0, %s115
      %s119 = sphi 0, %s118
      %s135 = sphi 0, %s119
    $region4: #{tpu_custom_call.1} parent=1 // loop_header_branch
      %19 = sbr.rel (%p17) target = $region8
    $region5: #{tpu_custom_call.1} parent=1 // loop_body
      %s21 = ssub.s32 %s16, 1
      %s22 = ssub.s32 %s16, 2
      %s23 = sadd.s32 %s16, 1
      %s25 = sadd.s32 %s24, 1
      %p28 = scmp.eq.s32.totalorder %s16, 1
      %p29 = scmp.ne.s32.totalorder %s24, %s26
      %p30 = scmp.eq.s32.totalorder %s16, 0
      %p31 = por %p29, %p30
      %p32 = scmp.ne.s32.totalorder %s24, %s26
      %p33 = scmp.eq.s32.totalorder %s21, 1
      %p34 = por %p32, %p33
      %p35 = scmp.ne.s32.totalorder %s26, %s27
      %p36 = scmp.eq.s32.totalorder %s21, 0
      %p37 = por %p35, %p36
      %p38 = scmp.ne.s32.totalorder %s26, %s27
      %p39 = scmp.eq.s32.totalorder %s22, 1
      %p40 = por %p38, %p39
      %p42 = scmp.ne.s32.totalorder %s27, %s41
      %p43 = scmp.eq.s32.totalorder %s22, 0
      %p44 = por %p42, %p43
      %s46 = sadd.s32 %s45, 1
      %p49 = scmp.eq.s32.totalorder %s16, 1
      %p50 = scmp.ne.s32.totalorder %s45, %s47
      %p51 = scmp.eq.s32.totalorder %s16, 0
      %p52 = por %p50, %p51
      %p53 = scmp.ne.s32.totalorder %s45, %s47
      %p54 = scmp.eq.s32.totalorder %s21, 1
      %p55 = por %p53, %p54
      %p56 = scmp.ne.s32.totalorder %s47, %s48
      %p57 = scmp.eq.s32.totalorder %s21, 0
      %p58 = por %p56, %p57
      %p59 = scmp.ne.s32.totalorder %s47, %s48
      %p60 = scmp.eq.s32.totalorder %s22, 1
      %p61 = por %p59, %p60
      %p63 = scmp.ne.s32.totalorder %s48, %s62
      %p64 = scmp.eq.s32.totalorder %s22, 0
      %p65 = por %p63, %p64
      %s67 = sadd.s32 %s66, 1
      %p70 = scmp.eq.s32.totalorder %s16, 1
      %p71 = scmp.ne.s32.totalorder %s66, %s68
      %p72 = scmp.eq.s32.totalorder %s16, 0
      %p73 = por %p71, %p72
      %p74 = scmp.ne.s32.totalorder %s66, %s68
      %p75 = scmp.eq.s32.totalorder %s21, 1
      %p76 = por %p74, %p75
      %p77 = scmp.ne.s32.totalorder %s68, %s69
      %p78 = scmp.eq.s32.totalorder %s21, 0
      %p79 = por %p77, %p78
      %p80 = scmp.ne.s32.totalorder %s68, %s69
      %p81 = scmp.eq.s32.totalorder %s22, 1
      %p82 = por %p80, %p81
      %p84 = scmp.ne.s32.totalorder %s69, %s83
      %p85 = scmp.eq.s32.totalorder %s22, 0
      %p86 = por %p84, %p85
      %s87 = ssub.s32 %s16, %s23
      %p88 = scmp.eq.s32.totalorder %s87, 0
      %s90 = sadd.s32 %s89, 1
      %s91 = scalar_select %p88, %s89, %s90
      %p94 = pneg %p88
      %p95 = scmp.eq.s32.totalorder %s16, 1
      %p96 = por %p94, %p95
      %p97 = scmp.ne.s32.totalorder %s89, %s92
      %p98 = scmp.eq.s32.totalorder %s16, 0
      %p99 = por %p97, %p98
      %p100 = scmp.ne.s32.totalorder %s89, %s92
      %p101 = scmp.eq.s32.totalorder %s21, 1
      %p102 = por %p100, %p101
      %p103 = scmp.ne.s32.totalorder %s92, %s93
      %p104 = scmp.eq.s32.totalorder %s21, 0
      %p105 = por %p103, %p104
      %p106 = scmp.ne.s32.totalorder %s92, %s93
      %p107 = scmp.eq.s32.totalorder %s22, 1
      %p108 = por %p106, %p107
      %p110 = scmp.ne.s32.totalorder %s93, %s109
      %p111 = scmp.eq.s32.totalorder %s22, 0
      %p112 = por %p110, %p111
      %s113 = ssub.s32 %s16, %s23
      %p114 = scmp.eq.s32.totalorder %s113, 0
      %s116 = sadd.s32 %s115, 1
      %s117 = scalar_select %p114, %s115, %s116
      %p120 = pneg %p114
      %p121 = scmp.eq.s32.totalorder %s16, 1
      %p122 = por %p120, %p121
      %p123 = scmp.ne.s32.totalorder %s115, %s118
      %p124 = scmp.eq.s32.totalorder %s16, 0
      %p125 = por %p123, %p124
      %p126 = scmp.ne.s32.totalorder %s115, %s118
      %p127 = scmp.eq.s32.totalorder %s21, 1
      %p128 = por %p126, %p127
      %p129 = scmp.ne.s32.totalorder %s118, %s119
      %p130 = scmp.eq.s32.totalorder %s21, 0
      %p131 = por %p129, %p130
      %p132 = scmp.ne.s32.totalorder %s118, %s119
      %p133 = scmp.eq.s32.totalorder %s22, 1
      %p134 = por %p132, %p133
      %p136 = scmp.ne.s32.totalorder %s119, %s135
      %p137 = scmp.eq.s32.totalorder %s22, 0
      %p138 = por %p136, %p137
      %p139 = scmp.le.s32.totalorder 1, %s16
      %p140 = scmp.lt.s32.totalorder %s16, 3
      %p141 = pnand %p139, %p140
      %p142 = pneg %p141
      // Predicated region
      $region9: #{tpu_custom_call.1} parent=5 // pred_check
        _
      $region10: #{tpu_custom_call.1} parent=5 // pred_check_branch
        %144 = sbr.rel (%p141) target = $region12
      $region11: #{tpu_custom_call.1} parent=5 // pred_region
        %s145 = ssub.s32 %s16, 1
        // Predicated region
        $region13: #{tpu_custom_call.1} parent=11 // pred_check
          %p146 = pneg %p37
        $region14: #{tpu_custom_call.1} parent=11 // pred_check_branch
          %148 = sbr.rel (%p146) target = $region16
        $region15: #{tpu_custom_call.1} parent=11 // pred_region
          _
        $region16: #{tpu_custom_call.1} parent=11 // pred_fallthru
          _
        // Predicated region
        $region17: #{tpu_custom_call.1} parent=11 // pred_check
          %p149 = pneg %p58
        $region18: #{tpu_custom_call.1} parent=11 // pred_check_branch
          %151 = sbr.rel (%p149) target = $region20
        $region19: #{tpu_custom_call.1} parent=11 // pred_region
          _
        $region20: #{tpu_custom_call.1} parent=11 // pred_fallthru
          _
        // Predicated region
        $region21: #{tpu_custom_call.1} parent=11 // pred_check
          %p152 = pneg %p79
        $region22: #{tpu_custom_call.1} parent=11 // pred_check_branch
          %154 = sbr.rel (%p152) target = $region24
        $region23: #{tpu_custom_call.1} parent=11 // pred_region
          _
        $region24: #{tpu_custom_call.1} parent=11 // pred_fallthru
          _
      $region12: #{tpu_custom_call.1} parent=5 // pred_fallthru
        _
      %p155 = scmp.lt.s32.totalorder %s16, 2
      // Predicated region
      $region25: #{tpu_custom_call.1} parent=5 // pred_check
        %p156 = pneg %p155
      $region26: #{tpu_custom_call.1} parent=5 // pred_check_branch
        %158 = sbr.rel (%p156) target = $region28
      $region27: #{tpu_custom_call.1} parent=5 // pred_region
        // Predicated region
        $region29: #{tpu_custom_call.1} parent=27 // pred_check
          %p159 = pneg %p99
        $region30: #{tpu_custom_call.1} parent=27 // pred_check_branch
          %161 = sbr.rel (%p159) target = $region32
        $region31: #{tpu_custom_call.1} parent=27 // pred_region
          %s162 = sand.u32 %s89, 1
          %s163 = scalar_lea.sflag [#allocation3], %s162
          %s164 = sand.u32 %s89, 1
          %s165 = smul.addr %s164, 288
          %s166 = scalar_lea.vmem [#allocation2], %s165
          %s167 = smul.u32 36, %s16
          %s169 = ssub.s32 4608, 4608
          %170 = vsyncadd %s163, %s169
          %s171 = smul.addr %s167, 128
          %s172 = scalar_lea.hbm %s3, %s171
          %s173 = sshll.u32 %s166, 4
          %s174 = int_to_ptr.vmem [resolvable:$true] %s173
          %179 = dma.hbm_to_vmem [thread:$0]  %s172, 4608, %s174, %s163, 128, 128, 8
        $region32: #{tpu_custom_call.1} parent=27 // pred_fallthru
          _
      $region28: #{tpu_custom_call.1} parent=5 // pred_fallthru
        _
      %p180 = scmp.le.s32.totalorder 1, %s16
      %p181 = scmp.lt.s32.totalorder %s16, 3
      %p182 = pnand %p180, %p181
      %p183 = pneg %p182
      // Predicated region
      $region33: #{tpu_custom_call.1} parent=5 // pred_check
        _
      $region34: #{tpu_custom_call.1} parent=5 // pred_check_branch
        %185 = sbr.rel (%p182) target = $region36
      $region35: #{tpu_custom_call.1} parent=5 // pred_region
        %s186 = ssub.s32 %s16, 1
        %s187 = sand.u32 %s92, 1
        %s188 = scalar_lea.sflag [#allocation3], %s187
        %s189 = sand.u32 %s92, 1
        %s190 = smul.addr %s189, 288
        %s191 = scalar_lea.vmem [#allocation2], %s190
        // Predicated region
        $region37: #{tpu_custom_call.1} parent=35 // pred_check
          %p192 = pneg %p105
        $region38: #{tpu_custom_call.1} parent=35 // pred_check_branch
          %194 = sbr.rel (%p192) target = $region40
        $region39: #{tpu_custom_call.1} parent=35 // pred_region
          %195 = dma.done %s188, 4608
        $region40: #{tpu_custom_call.1} parent=35 // pred_fallthru
          _
        %p196 = pneg %p37
        %p197 = pneg %p34
        %p198 = pneg %p58
        %p199 = pneg %p55
        %p200 = pneg %p79
        %p201 = pneg %p76
        %s202 = sand.u32 %s92, 1
        %s203 = scalar_lea.sflag [#allocation3], %s202
        %s204 = sand.u32 %s92, 1
        %s205 = smul.addr %s204, 288
        %s206 = scalar_lea.vmem [#allocation2], %s205
        %p207 = pneg %p105
        %p208 = pneg %p102
        %p209 = pneg %p131
        %p210 = pneg %p128
        %s211 = sand.u32 %s118, 1
        %s212 = scalar_lea.sflag [#allocation4], %s211
        %s213 = sand.u32 %s118, 1
        %s214 = smul.addr %s213, 288
        %s215 = scalar_lea.vmem [#allocation5], %s214
        %s216 = smul.u32 36, %s21
        %s217 = smul.u32 36, %s21
        %s219 = smul.u32 %s21, 288
        %s220 = sshra.s32 %s219, 3
        %s221 = sand.u32 %s219, 7
        %s222 = smul.addr %s220, 4
        %s223 = scalar_lea.vmem %s0, %s222
        %v224 = vld [vmem:[%s223] sm:$0xf]
        %v225 = vld [vmem:[%s223 + $0x4] sm:$0xf]
        %v226 = vld [vmem:[%s223 + $0x8] sm:$0xf]
        %v227 = vld [vmem:[%s223 + $0xc] sm:$0xf]
        %v228 = vld [vmem:[%s223 + $0x10] sm:$0xf]
        %v229 = vld [vmem:[%s223 + $0x14] sm:$0xf]
        %v230 = vld [vmem:[%s223 + $0x18] sm:$0xf]
        %v231 = vld [vmem:[%s223 + $0x1c] sm:$0xf]
        %v232 = vld [vmem:[%s223 + $0x20] sm:$0xf]
        %v233 = vld [vmem:[%s223 + $0x24] sm:$0xf]
        %v234 = vld [vmem:[%s223 + $0x28] sm:$0xf]
        %v235 = vld [vmem:[%s223 + $0x2c] sm:$0xf]
        %v236 = vld [vmem:[%s223 + $0x30] sm:$0xf]
        %v237 = vld [vmem:[%s223 + $0x34] sm:$0xf]
        %v238 = vld [vmem:[%s223 + $0x38] sm:$0xf]
        %v239 = vld [vmem:[%s223 + $0x3c] sm:$0xf]
        %v240 = vld [vmem:[%s223 + $0x40] sm:$0xf]
        %v241 = vld [vmem:[%s223 + $0x44] sm:$0xf]
        %v242 = vld [vmem:[%s223 + $0x48] sm:$0xf]
        %v243 = vld [vmem:[%s223 + $0x4c] sm:$0xf]
        %v244 = vld [vmem:[%s223 + $0x50] sm:$0xf]
        %v245 = vld [vmem:[%s223 + $0x54] sm:$0xf]
        %v246 = vld [vmem:[%s223 + $0x58] sm:$0xf]
        %v247 = vld [vmem:[%s223 + $0x5c] sm:$0xf]
        %v248 = vld [vmem:[%s223 + $0x60] sm:$0xf]
        %v249 = vld [vmem:[%s223 + $0x64] sm:$0xf]
        %v250 = vld [vmem:[%s223 + $0x68] sm:$0xf]
        %v251 = vld [vmem:[%s223 + $0x6c] sm:$0xf]
        %v252 = vld [vmem:[%s223 + $0x70] sm:$0xf]
        %v253 = vld [vmem:[%s223 + $0x74] sm:$0xf]
        %v254 = vld [vmem:[%s223 + $0x78] sm:$0xf]
        %v255 = vld [vmem:[%s223 + $0x7c] sm:$0xf]
        %v256 = vld [vmem:[%s223 + $0x80] sm:$0xf]
        %v257 = vld [vmem:[%s223 + $0x84] sm:$0xf]
        %v258 = vld [vmem:[%s223 + $0x88] sm:$0xf]
        %v259 = vld [vmem:[%s223 + $0x8c] sm:$0xf]
        %v260 = vld [vmem:[%s1] sm:$0xf]
        %v261 = vld [vmem:[%s1 + $0x4] sm:$0xf]
        %v262 = vld [vmem:[%s1 + $0x8] sm:$0xf]
        %s263 = sadd.s32 %s219, 32
        %s264 = sshra.s32 %s263, 3
        %s265 = sand.u32 %s263, 7
        %s266 = smul.addr %s264, 4
        %s267 = scalar_lea.vmem %s0, %s266
        %v268 = vld [vmem:[%s267] sm:$0xf]
        %v269 = vld [vmem:[%s267 + $0x4] sm:$0xf]
        %v270 = vld [vmem:[%s267 + $0x8] sm:$0xf]
        %v271 = vld [vmem:[%s267 + $0xc] sm:$0xf]
        %v272 = vld [vmem:[%s267 + $0x10] sm:$0xf]
        %v273 = vld [vmem:[%s267 + $0x14] sm:$0xf]
        %v274 = vld [vmem:[%s267 + $0x18] sm:$0xf]
        %v275 = vld [vmem:[%s267 + $0x1c] sm:$0xf]
        %v276 = vld [vmem:[%s267 + $0x20] sm:$0xf]
        %v277 = vld [vmem:[%s267 + $0x24] sm:$0xf]
        %v278 = vld [vmem:[%s267 + $0x28] sm:$0xf]
        %v279 = vld [vmem:[%s267 + $0x2c] sm:$0xf]
        %v280 = vld [vmem:[%s267 + $0x30] sm:$0xf]
        %v281 = vld [vmem:[%s267 + $0x34] sm:$0xf]
        %v282 = vld [vmem:[%s267 + $0x38] sm:$0xf]
        %v283 = vld [vmem:[%s267 + $0x3c] sm:$0xf]
        %v284 = vld [vmem:[%s267 + $0x40] sm:$0xf]
        %v285 = vld [vmem:[%s267 + $0x44] sm:$0xf]
        %v286 = vld [vmem:[%s267 + $0x48] sm:$0xf]
        %v287 = vld [vmem:[%s267 + $0x4c] sm:$0xf]
        %v288 = vld [vmem:[%s267 + $0x50] sm:$0xf]
        %v289 = vld [vmem:[%s267 + $0x54] sm:$0xf]
        %v290 = vld [vmem:[%s267 + $0x58] sm:$0xf]
        %v291 = vld [vmem:[%s267 + $0x5c] sm:$0xf]
        %v292 = vld [vmem:[%s267 + $0x60] sm:$0xf]
        %v293 = vld [vmem:[%s267 + $0x64] sm:$0xf]
        %v294 = vld [vmem:[%s267 + $0x68] sm:$0xf]
        %v295 = vld [vmem:[%s267 + $0x6c] sm:$0xf]
        %v296 = vld [vmem:[%s267 + $0x70] sm:$0xf]
        %v297 = vld [vmem:[%s267 + $0x74] sm:$0xf]
        %v298 = vld [vmem:[%s267 + $0x78] sm:$0xf]
        %v299 = vld [vmem:[%s267 + $0x7c] sm:$0xf]
        %v300 = vld [vmem:[%s267 + $0x80] sm:$0xf]
        %v301 = vld [vmem:[%s267 + $0x84] sm:$0xf]
        %v302 = vld [vmem:[%s267 + $0x88] sm:$0xf]
        %v303 = vld [vmem:[%s267 + $0x8c] sm:$0xf]
        %s304 = scalar_lea.vmem %s1, 12
        %v305 = vld [vmem:[%s304] sm:$0xf]
        %v306 = vld [vmem:[%s304 + $0x4] sm:$0xf]
        %v307 = vld [vmem:[%s304 + $0x8] sm:$0xf]
        %v344 = vunpack.c.l.b16 %v268
        %v345 = vunpack.c.l.b16 %v269
        %v346 = vunpack.c.l.b16 %v270
        %v347 = vunpack.c.l.b16 %v271
        %v348 = vunpack.c.l.b16 %v272
        %v349 = vunpack.c.l.b16 %v273
        %v350 = vunpack.c.l.b16 %v274
        %v351 = vunpack.c.l.b16 %v275
        %v352 = vunpack.c.l.b16 %v276
        %v353 = vunpack.c.l.b16 %v277
        %v354 = vunpack.c.l.b16 %v278
        %v355 = vunpack.c.l.b16 %v279
        %v356 = vunpack.c.l.b16 %v280
        %v357 = vunpack.c.l.b16 %v281
        %v358 = vunpack.c.l.b16 %v282
        %v359 = vunpack.c.l.b16 %v283
        %v360 = vunpack.c.l.b16 %v284
        %v361 = vunpack.c.l.b16 %v285
        %v362 = vunpack.c.l.b16 %v286
        %v363 = vunpack.c.l.b16 %v287
        %v364 = vunpack.c.l.b16 %v288
        %v365 = vunpack.c.l.b16 %v289
        %v366 = vunpack.c.l.b16 %v290
        %v367 = vunpack.c.l.b16 %v291
        %v368 = vunpack.c.l.b16 %v292
        %v369 = vunpack.c.l.b16 %v293
        %v370 = vunpack.c.l.b16 %v294
        %v371 = vunpack.c.l.b16 %v295
        %v372 = vunpack.c.l.b16 %v296
        %v373 = vunpack.c.l.b16 %v297
        %v374 = vunpack.c.l.b16 %v298
        %v375 = vunpack.c.l.b16 %v299
        %v376 = vunpack.c.l.b16 %v300
        %v377 = vunpack.c.l.b16 %v301
        %v378 = vunpack.c.l.b16 %v302
        %v379 = vunpack.c.l.b16 %v303
        %v380 = vpack.c.b16 %v345, %v344
        %v381 = vpack.c.b16 %v347, %v346
        %v382 = vpack.c.b16 %v349, %v348
        %v383 = vpack.c.b16 %v351, %v350
        %v384 = vpack.c.b16 %v353, %v352
        %v385 = vpack.c.b16 %v355, %v354
        %v386 = vpack.c.b16 %v357, %v356
        %v387 = vpack.c.b16 %v359, %v358
        %v388 = vpack.c.b16 %v361, %v360
        %v389 = vpack.c.b16 %v363, %v362
        %v390 = vpack.c.b16 %v365, %v364
        %v391 = vpack.c.b16 %v367, %v366
        %v392 = vpack.c.b16 %v369, %v368
        %v393 = vpack.c.b16 %v371, %v370
        %v394 = vpack.c.b16 %v373, %v372
        %v395 = vpack.c.b16 %v375, %v374
        %v396 = vpack.c.b16 %v377, %v376
        %v397 = vpack.c.b16 %v379, %v378
        %v401 = vunpack.c.l.b16 %v305
        %v402 = vunpack.c.l.b16 %v306
        %v403 = vunpack.c.l.b16 %v307
        %v404 = vpack.c.b16 %v402, %v401
        %v405 = vpack.c.b16 %v403, %v403
        %vm407 = vcmask 195584
        %v409 = vsel %vm407, %v380, 0
        %v412 = vsel %vm407, %v381, 0
        %v415 = vsel %vm407, %v382, 0
        %v418 = vsel %vm407, %v383, 0
        %v421 = vsel %vm407, %v384, 0
        %v424 = vsel %vm407, %v385, 0
        %v427 = vsel %vm407, %v386, 0
        %v430 = vsel %vm407, %v387, 0
        %v433 = vsel %vm407, %v388, 0
        %v436 = vsel %vm407, %v389, 0
        %v439 = vsel %vm407, %v390, 0
        %v442 = vsel %vm407, %v391, 0
        %v445 = vsel %vm407, %v392, 0
        %v448 = vsel %vm407, %v393, 0
        %v451 = vsel %vm407, %v394, 0
        %v454 = vsel %vm407, %v395, 0
        %v457 = vsel %vm407, %v396, 0
        %v460 = vsel %vm407, %v397, 0
        %vm462 = vcmask 1043456
        %v464 = vsel %vm462, %v405, 0
        %466 = vmatprep.subr.bf16.mxu0 0
        %467 = vmatpush1.bf16.msra.mxu0 %v404
        %468 = vmatprep.subr.bf16.mxu0 0
        %469 = vmatpush1.bf16.msra.mxu0 %v464
        %470 = vmatprep.subr.bf16.mxu0 0
        %471 = vmatpush1.bf16.msra.mxu0 0
        %472 = vmatprep.subr.bf16.mxu0 0
        %473 = vmatpush1.bf16.msra.mxu0 0
        %474 = vmatprep.subr.bf16.mxu0 0
        %475 = vmatpush1.bf16.msra.mxu0 0
        %476 = vmatprep.subr.bf16.mxu0 0
        %477 = vmatpush1.bf16.msra.mxu0 0
        %478 = vmatprep.subr.bf16.mxu0 0
        %479 = vmatpush1.bf16.msra.mxu0 0
        %480 = vmatprep.subr.bf16.mxu0 0
        %481 = vmatpush1.bf16.msra.mxu0 0
        %482 = vmatprep.subr.bf16.mxu0 0
        %483 = vmatpush1.bf16.msra.mxu0 0
        %484 = vmatprep.subr.bf16.mxu0 0
        %485 = vmatpush1.bf16.msra.mxu0 0
        %486 = vmatprep.subr.bf16.mxu0 0
        %487 = vmatpush1.bf16.msra.mxu0 0
        %488 = vmatprep.subr.bf16.mxu0 0
        %489 = vmatpush1.bf16.msra.mxu0 0
        %490 = vmatprep.subr.bf16.mxu0 0
        %491 = vmatpush1.bf16.msra.mxu0 0
        %492 = vmatprep.subr.bf16.mxu0 0
        %493 = vmatpush1.bf16.msra.mxu0 0
        %494 = vmatprep.subr.bf16.mxu0 0
        %495 = vmatpush1.bf16.msra.mxu0 0
        %496 = vmatprep.subr.bf16.mxu0 0
        %497 = vmatpush1.bf16.msra.mxu0 0
        %498 = vmatprep.mubr.bf16.mxu0 0
        %499 = vmatmul.mubr.bf16.gmra.mrb[0].mxu0 %v409
        %v500 = vpop.f32.mrb[0].mxu0
        %v501 = vadd.f32 0.0, %v500
        %v502 = vpop.f32.mrb[0].mxu0
        %v503 = vpop.f32.mrb[0].mxu0
        %v504 = vadd.f32 0.0, %v503
        %v505 = vpop.f32.mrb[0].mxu0
        %506 = vmatprep.mubr.bf16.mxu0 0
        %507 = vmatmul.mubr.bf16.gmra.mrb[0].mxu0 %v412
        %v508 = vpop.f32.mrb[0].mxu0
        %v509 = vadd.f32 0.0, %v508
        %v510 = vpop.f32.mrb[0].mxu0
        %v511 = vpop.f32.mrb[0].mxu0
        %v512 = vadd.f32 0.0, %v511
        %v513 = vpop.f32.mrb[0].mxu0
        %514 = vmatprep.mubr.bf16.mxu0 0
        %515 = vmatmul.mubr.bf16.gmra.mrb[0].mxu0 %v415
        %v516 = vpop.f32.mrb[0].mxu0
        %v517 = vadd.f32 0.0, %v516
        %v518 = vpop.f32.mrb[0].mxu0
        %v519 = vpop.f32.mrb[0].mxu0
        %v520 = vadd.f32 0.0, %v519
        %v521 = vpop.f32.mrb[0].mxu0
        %522 = vmatprep.mubr.bf16.mxu0 0
        %523 = vmatmul.mubr.bf16.gmra.mrb[0].mxu0 %v418
        %v524 = vpop.f32.mrb[0].mxu0
        %v525 = vadd.f32 0.0, %v524
        %v526 = vpop.f32.mrb[0].mxu0
        %v527 = vpop.f32.mrb[0].mxu0
        %v528 = vadd.f32 0.0, %v527
        %v529 = vpop.f32.mrb[0].mxu0
        %530 = vmatprep.mubr.bf16.mxu0 0
        %531 = vmatmul.mubr.bf16.gmra.mrb[0].mxu0 %v421
        %v532 = vpop.f32.mrb[0].mxu0
        %v533 = vadd.f32 0.0, %v532
        %v534 = vpop.f32.mrb[0].mxu0
        %v535 = vpop.f32.mrb[0].mxu0
        %v536 = vadd.f32 0.0, %v535
        %v537 = vpop.f32.mrb[0].mxu0
        %538 = vmatprep.mubr.bf16.mxu0 0
        %539 = vmatmul.mubr.bf16.gmra.mrb[0].mxu0 %v424
        %v540 = vpop.f32.mrb[0].mxu0
        %v541 = vadd.f32 0.0, %v540
        %v542 = vpop.f32.mrb[0].mxu0
        %v543 = vpop.f32.mrb[0].mxu0
        %v544 = vadd.f32 0.0, %v543
        %v545 = vpop.f32.mrb[0].mxu0
        %546 = vmatprep.mubr.bf16.mxu0 0
        %547 = vmatmul.mubr.bf16.gmra.mrb[0].mxu0 %v427
        %v548 = vpop.f32.mrb[0].mxu0
        %v549 = vadd.f32 0.0, %v548
        %v550 = vpop.f32.mrb[0].mxu0
        %v551 = vpop.f32.mrb[0].mxu0
        %v552 = vadd.f32 0.0, %v551
        %v553 = vpop.f32.mrb[0].mxu0
        %554 = vmatprep.mubr.bf16.mxu0 0
        %555 = vmatmul.mubr.bf16.gmra.mrb[0].mxu0 %v430
        %v556 = vpop.f32.mrb[0].mxu0
        %v557 = vadd.f32 0.0, %v556
        %v558 = vpop.f32.mrb[0].mxu0
        %v559 = vpop.f32.mrb[0].mxu0
        %v560 = vadd.f32 0.0, %v559
        %v561 = vpop.f32.mrb[0].mxu0
        %562 = vmatprep.mubr.bf16.mxu0 0
        %563 = vmatmul.mubr.bf16.gmra.mrb[0].mxu0 %v433
        %v564 = vpop.f32.mrb[0].mxu0
        %v565 = vadd.f32 0.0, %v564
        %v566 = vpop.f32.mrb[0].mxu0
        %v567 = vpop.f32.mrb[0].mxu0
        %v568 = vadd.f32 0.0, %v567
        %v569 = vpop.f32.mrb[0].mxu0
        %570 = vmatprep.mubr.bf16.mxu0 0
        %571 = vmatmul.mubr.bf16.gmra.mrb[0].mxu0 %v436
        %v572 = vpop.f32.mrb[0].mxu0
        %v573 = vadd.f32 0.0, %v572
        %v574 = vpop.f32.mrb[0].mxu0
        %v575 = vpop.f32.mrb[0].mxu0
        %v576 = vadd.f32 0.0, %v575
        %v577 = vpop.f32.mrb[0].mxu0
        %578 = vmatprep.mubr.bf16.mxu0 0
        %579 = vmatmul.mubr.bf16.gmra.mrb[0].mxu0 %v439
        %v580 = vpop.f32.mrb[0].mxu0
        %v581 = vadd.f32 0.0, %v580
        %v582 = vpop.f32.mrb[0].mxu0
        %v583 = vpop.f32.mrb[0].mxu0
        %v584 = vadd.f32 0.0, %v583
        %v585 = vpop.f32.mrb[0].mxu0
        %586 = vmatprep.mubr.bf16.mxu0 0
        %587 = vmatmul.mubr.bf16.gmra.mrb[0].mxu0 %v442
        %v588 = vpop.f32.mrb[0].mxu0
        %v589 = vadd.f32 0.0, %v588
        %v590 = vpop.f32.mrb[0].mxu0
        %v591 = vpop.f32.mrb[0].mxu0
        %v592 = vadd.f32 0.0, %v591
        %v593 = vpop.f32.mrb[0].mxu0
        %594 = vmatprep.mubr.bf16.mxu0 0
        %595 = vmatmul.mubr.bf16.gmra.mrb[0].mxu0 %v445
        %v596 = vpop.f32.mrb[0].mxu0
        %v597 = vadd.f32 0.0, %v596
        %v598 = vpop.f32.mrb[0].mxu0
        %v599 = vpop.f32.mrb[0].mxu0
        %v600 = vadd.f32 0.0, %v599
        %v601 = vpop.f32.mrb[0].mxu0
        %602 = vmatprep.mubr.bf16.mxu0 0
        %603 = vmatmul.mubr.bf16.gmra.mrb[0].mxu0 %v448
        %v604 = vpop.f32.mrb[0].mxu0
        %v605 = vadd.f32 0.0, %v604
        %v606 = vpop.f32.mrb[0].mxu0
        %v607 = vpop.f32.mrb[0].mxu0
        %v608 = vadd.f32 0.0, %v607
        %v609 = vpop.f32.mrb[0].mxu0
        %610 = vmatprep.mubr.bf16.mxu0 0
        %611 = vmatmul.mubr.bf16.gmra.mrb[0].mxu0 %v451
        %v612 = vpop.f32.mrb[0].mxu0
        %v613 = vadd.f32 0.0, %v612
        %v614 = vpop.f32.mrb[0].mxu0
        %v615 = vpop.f32.mrb[0].mxu0
        %v616 = vadd.f32 0.0, %v615
        %v617 = vpop.f32.mrb[0].mxu0
        %618 = vmatprep.mubr.bf16.mxu0 0
        %619 = vmatmul.mubr.bf16.gmra.mrb[0].mxu0 %v454
        %v620 = vpop.f32.mrb[0].mxu0
        %v621 = vadd.f32 0.0, %v620
        %v622 = vpop.f32.mrb[0].mxu0
        %v623 = vpop.f32.mrb[0].mxu0
        %v624 = vadd.f32 0.0, %v623
        %v625 = vpop.f32.mrb[0].mxu0
        %626 = vmatprep.mubr.bf16.mxu0 0
        %627 = vmatmul.mubr.bf16.gmra.mrb[0].mxu0 %v457
        %v628 = vpop.f32.mrb[0].mxu0
        %v629 = vadd.f32 0.0, %v628
        %v630 = vpop.f32.mrb[0].mxu0
        %v631 = vpop.f32.mrb[0].mxu0
        %v632 = vadd.f32 0.0, %v631
        %v633 = vpop.f32.mrb[0].mxu0
        %634 = vmatprep.mubr.bf16.mxu0 0
        %635 = vmatmul.mubr.bf16.gmra.mrb[0].mxu0 %v460
        %v636 = vpop.f32.mrb[0].mxu0
        %v637 = vadd.f32 0.0, %v636
        %v638 = vpop.f32.mrb[0].mxu0
        %v639 = vpop.f32.mrb[0].mxu0
        %v640 = vadd.f32 0.0, %v639
        %v641 = vpop.f32.mrb[0].mxu0
        %642 = vdwg.mxu0
        %v679 = vunpack.c.l.b16 %v224
        %v680 = vunpack.c.l.b16 %v225
        %v681 = vunpack.c.l.b16 %v226
        %v682 = vunpack.c.l.b16 %v227
        %v683 = vunpack.c.l.b16 %v228
        %v684 = vunpack.c.l.b16 %v229
        %v685 = vunpack.c.l.b16 %v230
        %v686 = vunpack.c.l.b16 %v231
        %v687 = vunpack.c.l.b16 %v232
        %v688 = vunpack.c.l.b16 %v233
        %v689 = vunpack.c.l.b16 %v234
        %v690 = vunpack.c.l.b16 %v235
        %v691 = vunpack.c.l.b16 %v236
        %v692 = vunpack.c.l.b16 %v237
        %v693 = vunpack.c.l.b16 %v238
        %v694 = vunpack.c.l.b16 %v239
        %v695 = vunpack.c.l.b16 %v240
        %v696 = vunpack.c.l.b16 %v241
        %v697 = vunpack.c.l.b16 %v242
        %v698 = vunpack.c.l.b16 %v243
        %v699 = vunpack.c.l.b16 %v244
        %v700 = vunpack.c.l.b16 %v245
        %v701 = vunpack.c.l.b16 %v246
        %v702 = vunpack.c.l.b16 %v247
        %v703 = vunpack.c.l.b16 %v248
        %v704 = vunpack.c.l.b16 %v249
        %v705 = vunpack.c.l.b16 %v250
        %v706 = vunpack.c.l.b16 %v251
        %v707 = vunpack.c.l.b16 %v252
        %v708 = vunpack.c.l.b16 %v253
        %v709 = vunpack.c.l.b16 %v254
        %v710 = vunpack.c.l.b16 %v255
        %v711 = vunpack.c.l.b16 %v256
        %v712 = vunpack.c.l.b16 %v257
        %v713 = vunpack.c.l.b16 %v258
        %v714 = vunpack.c.l.b16 %v259
        %v715 = vpack.c.b16 %v680, %v679
        %v716 = vpack.c.b16 %v682, %v681
        %v717 = vpack.c.b16 %v684, %v683
        %v718 = vpack.c.b16 %v686, %v685
        %v719 = vpack.c.b16 %v688, %v687
        %v720 = vpack.c.b16 %v690, %v689
        %v721 = vpack.c.b16 %v692, %v691
        %v722 = vpack.c.b16 %v694, %v693
        %v723 = vpack.c.b16 %v696, %v695
        %v724 = vpack.c.b16 %v698, %v697
        %v725 = vpack.c.b16 %v700, %v699
        %v726 = vpack.c.b16 %v702, %v701
        %v727 = vpack.c.b16 %v704, %v703
        %v728 = vpack.c.b16 %v706, %v705
        %v729 = vpack.c.b16 %v708, %v707
        %v730 = vpack.c.b16 %v710, %v709
        %v731 = vpack.c.b16 %v712, %v711
        %v732 = vpack.c.b16 %v714, %v713
        %v736 = vunpack.c.l.b16 %v260
        %v737 = vunpack.c.l.b16 %v261
        %v738 = vunpack.c.l.b16 %v262
        %v739 = vpack.c.b16 %v737, %v736
        %v740 = vpack.c.b16 %v738, %v738
        %v743 = vsel %vm407, %v715, 0
        %v746 = vsel %vm407, %v716, 0
        %v749 = vsel %vm407, %v717, 0
        %v752 = vsel %vm407, %v718, 0
        %v755 = vsel %vm407, %v719, 0
        %v758 = vsel %vm407, %v720, 0
        %v761 = vsel %vm407, %v721, 0
        %v764 = vsel %vm407, %v722, 0
        %v767 = vsel %vm407, %v723, 0
        %v770 = vsel %vm407, %v724, 0
        %v773 = vsel %vm407, %v725, 0
        %v776 = vsel %vm407, %v726, 0
        %v779 = vsel %vm407, %v727, 0
        %v782 = vsel %vm407, %v728, 0
        %v785 = vsel %vm407, %v729, 0
        %v788 = vsel %vm407, %v730, 0
        %v791 = vsel %vm407, %v731, 0
        %v794 = vsel %vm407, %v732, 0
        %v797 = vsel %vm462, %v740, 0
        %799 = vmatprep.subr.bf16.mxu0 0
        %800 = vmatpush1.bf16.msra.mxu0 %v739
        %801 = vmatprep.subr.bf16.mxu0 0
        %802 = vmatpush1.bf16.msra.mxu0 %v797
        %803 = vmatprep.subr.bf16.mxu0 0
        %804 = vmatpush1.bf16.msra.mxu0 0
        %805 = vmatprep.subr.bf16.mxu0 0
        %806 = vmatpush1.bf16.msra.mxu0 0
        %807 = vmatprep.subr.bf16.mxu0 0
        %808 = vmatpush1.bf16.msra.mxu0 0
        %809 = vmatprep.subr.bf16.mxu0 0
        %810 = vmatpush1.bf16.msra.mxu0 0
        %811 = vmatprep.subr.bf16.mxu0 0
        %812 = vmatpush1.bf16.msra.mxu0 0
        %813 = vmatprep.subr.bf16.mxu0 0
        %814 = vmatpush1.bf16.msra.mxu0 0
        %815 = vmatprep.subr.bf16.mxu0 0
        %816 = vmatpush1.bf16.msra.mxu0 0
        %817 = vmatprep.subr.bf16.mxu0 0
        %818 = vmatpush1.bf16.msra.mxu0 0
        %819 = vmatprep.subr.bf16.mxu0 0
        %820 = vmatpush1.bf16.msra.mxu0 0
        %821 = vmatprep.subr.bf16.mxu0 0
        %822 = vmatpush1.bf16.msra.mxu0 0
        %823 = vmatprep.subr.bf16.mxu0 0
        %824 = vmatpush1.bf16.msra.mxu0 0
        %825 = vmatprep.subr.bf16.mxu0 0
        %826 = vmatpush1.bf16.msra.mxu0 0
        %827 = vmatprep.subr.bf16.mxu0 0
        %828 = vmatpush1.bf16.msra.mxu0 0
        %829 = vmatprep.subr.bf16.mxu0 0
        %830 = vmatpush1.bf16.msra.mxu0 0
        %831 = vmatprep.mubr.bf16.mxu0 0
        %832 = vmatmul.mubr.bf16.gmra.mrb[0].mxu0 %v743
        %v833 = vpop.f32.mrb[0].mxu0
        %v834 = vadd.f32 %v501, %v833
        %v835 = vpop.f32.mrb[0].mxu0
        %v836 = vpop.f32.mrb[0].mxu0
        %v837 = vadd.f32 %v504, %v836
        %v838 = vpop.f32.mrb[0].mxu0
        %839 = vmatprep.mubr.bf16.mxu0 0
        %840 = vmatmul.mubr.bf16.gmra.mrb[0].mxu0 %v746
        %v841 = vpop.f32.mrb[0].mxu0
        %v842 = vadd.f32 %v509, %v841
        %v843 = vpop.f32.mrb[0].mxu0
        %v844 = vpop.f32.mrb[0].mxu0
        %v845 = vadd.f32 %v512, %v844
        %v846 = vpop.f32.mrb[0].mxu0
        %847 = vmatprep.mubr.bf16.mxu0 0
        %848 = vmatmul.mubr.bf16.gmra.mrb[0].mxu0 %v749
        %v849 = vpop.f32.mrb[0].mxu0
        %v850 = vadd.f32 %v517, %v849
        %v851 = vpop.f32.mrb[0].mxu0
        %v852 = vpop.f32.mrb[0].mxu0
        %v853 = vadd.f32 %v520, %v852
        %v854 = vpop.f32.mrb[0].mxu0
        %855 = vmatprep.mubr.bf16.mxu0 0
        %856 = vmatmul.mubr.bf16.gmra.mrb[0].mxu0 %v752
        %v857 = vpop.f32.mrb[0].mxu0
        %v858 = vadd.f32 %v525, %v857
        %v859 = vpop.f32.mrb[0].mxu0
        %v860 = vpop.f32.mrb[0].mxu0
        %v861 = vadd.f32 %v528, %v860
        %v862 = vpop.f32.mrb[0].mxu0
        %863 = vmatprep.mubr.bf16.mxu0 0
        %864 = vmatmul.mubr.bf16.gmra.mrb[0].mxu0 %v755
        %v865 = vpop.f32.mrb[0].mxu0
        %v866 = vadd.f32 %v533, %v865
        %v867 = vpop.f32.mrb[0].mxu0
        %v868 = vpop.f32.mrb[0].mxu0
        %v869 = vadd.f32 %v536, %v868
        %v870 = vpop.f32.mrb[0].mxu0
        %871 = vmatprep.mubr.bf16.mxu0 0
        %872 = vmatmul.mubr.bf16.gmra.mrb[0].mxu0 %v758
        %v873 = vpop.f32.mrb[0].mxu0
        %v874 = vadd.f32 %v541, %v873
        %v875 = vpop.f32.mrb[0].mxu0
        %v876 = vpop.f32.mrb[0].mxu0
        %v877 = vadd.f32 %v544, %v876
        %v878 = vpop.f32.mrb[0].mxu0
        %879 = vmatprep.mubr.bf16.mxu0 0
        %880 = vmatmul.mubr.bf16.gmra.mrb[0].mxu0 %v761
        %v881 = vpop.f32.mrb[0].mxu0
        %v882 = vadd.f32 %v549, %v881
        %v883 = vpop.f32.mrb[0].mxu0
        %v884 = vpop.f32.mrb[0].mxu0
        %v885 = vadd.f32 %v552, %v884
        %v886 = vpop.f32.mrb[0].mxu0
        %887 = vmatprep.mubr.bf16.mxu0 0
        %888 = vmatmul.mubr.bf16.gmra.mrb[0].mxu0 %v764
        %v889 = vpop.f32.mrb[0].mxu0
        %v890 = vadd.f32 %v557, %v889
        %v891 = vpop.f32.mrb[0].mxu0
        %v892 = vpop.f32.mrb[0].mxu0
        %v893 = vadd.f32 %v560, %v892
        %v894 = vpop.f32.mrb[0].mxu0
        %895 = vmatprep.mubr.bf16.mxu0 0
        %896 = vmatmul.mubr.bf16.gmra.mrb[0].mxu0 %v767
        %v897 = vpop.f32.mrb[0].mxu0
        %v898 = vadd.f32 %v565, %v897
        %v899 = vpop.f32.mrb[0].mxu0
        %v900 = vpop.f32.mrb[0].mxu0
        %v901 = vadd.f32 %v568, %v900
        %v902 = vpop.f32.mrb[0].mxu0
        %903 = vmatprep.mubr.bf16.mxu0 0
        %904 = vmatmul.mubr.bf16.gmra.mrb[0].mxu0 %v770
        %v905 = vpop.f32.mrb[0].mxu0
        %v906 = vadd.f32 %v573, %v905
        %v907 = vpop.f32.mrb[0].mxu0
        %v908 = vpop.f32.mrb[0].mxu0
        %v909 = vadd.f32 %v576, %v908
        %v910 = vpop.f32.mrb[0].mxu0
        %911 = vmatprep.mubr.bf16.mxu0 0
        %912 = vmatmul.mubr.bf16.gmra.mrb[0].mxu0 %v773
        %v913 = vpop.f32.mrb[0].mxu0
        %v914 = vadd.f32 %v581, %v913
        %v915 = vpop.f32.mrb[0].mxu0
        %v916 = vpop.f32.mrb[0].mxu0
        %v917 = vadd.f32 %v584, %v916
        %v918 = vpop.f32.mrb[0].mxu0
        %919 = vmatprep.mubr.bf16.mxu0 0
        %920 = vmatmul.mubr.bf16.gmra.mrb[0].mxu0 %v776
        %v921 = vpop.f32.mrb[0].mxu0
        %v922 = vadd.f32 %v589, %v921
        %v923 = vpop.f32.mrb[0].mxu0
        %v924 = vpop.f32.mrb[0].mxu0
        %v925 = vadd.f32 %v592, %v924
        %v926 = vpop.f32.mrb[0].mxu0
        %927 = vmatprep.mubr.bf16.mxu0 0
        %928 = vmatmul.mubr.bf16.gmra.mrb[0].mxu0 %v779
        %v929 = vpop.f32.mrb[0].mxu0
        %v930 = vadd.f32 %v597, %v929
        %v931 = vpop.f32.mrb[0].mxu0
        %v932 = vpop.f32.mrb[0].mxu0
        %v933 = vadd.f32 %v600, %v932
        %v934 = vpop.f32.mrb[0].mxu0
        %935 = vmatprep.mubr.bf16.mxu0 0
        %936 = vmatmul.mubr.bf16.gmra.mrb[0].mxu0 %v782
        %v937 = vpop.f32.mrb[0].mxu0
        %v938 = vadd.f32 %v605, %v937
        %v939 = vpop.f32.mrb[0].mxu0
        %v940 = vpop.f32.mrb[0].mxu0
        %v941 = vadd.f32 %v608, %v940
        %v942 = vpop.f32.mrb[0].mxu0
        %943 = vmatprep.mubr.bf16.mxu0 0
        %944 = vmatmul.mubr.bf16.gmra.mrb[0].mxu0 %v785
        %v945 = vpop.f32.mrb[0].mxu0
        %v946 = vadd.f32 %v613, %v945
        %v947 = vpop.f32.mrb[0].mxu0
        %v948 = vpop.f32.mrb[0].mxu0
        %v949 = vadd.f32 %v616, %v948
        %v950 = vpop.f32.mrb[0].mxu0
        %951 = vmatprep.mubr.bf16.mxu0 0
        %952 = vmatmul.mubr.bf16.gmra.mrb[0].mxu0 %v788
        %v953 = vpop.f32.mrb[0].mxu0
        %v954 = vadd.f32 %v621, %v953
        %v955 = vpop.f32.mrb[0].mxu0
        %v956 = vpop.f32.mrb[0].mxu0
        %v957 = vadd.f32 %v624, %v956
        %v958 = vpop.f32.mrb[0].mxu0
        %959 = vmatprep.mubr.bf16.mxu0 0
        %960 = vmatmul.mubr.bf16.gmra.mrb[0].mxu0 %v791
        %v961 = vpop.f32.mrb[0].mxu0
        %v962 = vadd.f32 %v629, %v961
        %v963 = vpop.f32.mrb[0].mxu0
        %v964 = vpop.f32.mrb[0].mxu0
        %v965 = vadd.f32 %v632, %v964
        %v966 = vpop.f32.mrb[0].mxu0
        %967 = vmatprep.mubr.bf16.mxu0 0
        %968 = vmatmul.mubr.bf16.gmra.mrb[0].mxu0 %v794
        %v969 = vpop.f32.mrb[0].mxu0
        %v970 = vadd.f32 %v637, %v969
        %v971 = vpop.f32.mrb[0].mxu0
        %v972 = vpop.f32.mrb[0].mxu0
        %v973 = vadd.f32 %v640, %v972
        %v974 = vpop.f32.mrb[0].mxu0
        %975 = vdwg.mxu0
        %s976 = sadd.s32 %s219, 64
        %s977 = sshra.s32 %s976, 3
        %s978 = sand.u32 %s976, 7
        %s979 = smul.addr %s977, 4
        %s980 = scalar_lea.vmem %s0, %s979
        %v981 = vld [vmem:[%s980] sm:$0xf]
        %v982 = vld [vmem:[%s980 + $0x4] sm:$0xf]
        %v983 = vld [vmem:[%s980 + $0x8] sm:$0xf]
        %v984 = vld [vmem:[%s980 + $0xc] sm:$0xf]
        %v985 = vld [vmem:[%s980 + $0x10] sm:$0xf]
        %v986 = vld [vmem:[%s980 + $0x14] sm:$0xf]
        %v987 = vld [vmem:[%s980 + $0x18] sm:$0xf]
        %v988 = vld [vmem:[%s980 + $0x1c] sm:$0xf]
        %v989 = vld [vmem:[%s980 + $0x20] sm:$0xf]
        %v990 = vld [vmem:[%s980 + $0x24] sm:$0xf]
        %v991 = vld [vmem:[%s980 + $0x28] sm:$0xf]
        %v992 = vld [vmem:[%s980 + $0x2c] sm:$0xf]
        %v993 = vld [vmem:[%s980 + $0x30] sm:$0xf]
        %v994 = vld [vmem:[%s980 + $0x34] sm:$0xf]
        %v995 = vld [vmem:[%s980 + $0x38] sm:$0xf]
        %v996 = vld [vmem:[%s980 + $0x3c] sm:$0xf]
        %v997 = vld [vmem:[%s980 + $0x40] sm:$0xf]
        %v998 = vld [vmem:[%s980 + $0x44] sm:$0xf]
        %v999 = vld [vmem:[%s980 + $0x48] sm:$0xf]
        %v1000 = vld [vmem:[%s980 + $0x4c] sm:$0xf]
        %v1001 = vld [vmem:[%s980 + $0x50] sm:$0xf]
        %v1002 = vld [vmem:[%s980 + $0x54] sm:$0xf]
        %v1003 = vld [vmem:[%s980 + $0x58] sm:$0xf]
        %v1004 = vld [vmem:[%s980 + $0x5c] sm:$0xf]
        %v1005 = vld [vmem:[%s980 + $0x60] sm:$0xf]
        %v1006 = vld [vmem:[%s980 + $0x64] sm:$0xf]
        %v1007 = vld [vmem:[%s980 + $0x68] sm:$0xf]
        %v1008 = vld [vmem:[%s980 + $0x6c] sm:$0xf]
        %v1009 = vld [vmem:[%s980 + $0x70] sm:$0xf]
        %v1010 = vld [vmem:[%s980 + $0x74] sm:$0xf]
        %v1011 = vld [vmem:[%s980 + $0x78] sm:$0xf]
        %v1012 = vld [vmem:[%s980 + $0x7c] sm:$0xf]
        %v1013 = vld [vmem:[%s980 + $0x80] sm:$0xf]
        %v1014 = vld [vmem:[%s980 + $0x84] sm:$0xf]
        %v1015 = vld [vmem:[%s980 + $0x88] sm:$0xf]
        %v1016 = vld [vmem:[%s980 + $0x8c] sm:$0xf]
        %s1017 = scalar_lea.vmem %s1, 24
        %v1018 = vld [vmem:[%s1017] sm:$0xf]
        %v1019 = vld [vmem:[%s1017 + $0x4] sm:$0xf]
        %v1020 = vld [vmem:[%s1017 + $0x8] sm:$0xf]
        %v1057 = vunpack.c.l.b16 %v981
        %v1058 = vunpack.c.l.b16 %v982
        %v1059 = vunpack.c.l.b16 %v983
        %v1060 = vunpack.c.l.b16 %v984
        %v1061 = vunpack.c.l.b16 %v985
        %v1062 = vunpack.c.l.b16 %v986
        %v1063 = vunpack.c.l.b16 %v987
        %v1064 = vunpack.c.l.b16 %v988
        %v1065 = vunpack.c.l.b16 %v989
        %v1066 = vunpack.c.l.b16 %v990
        %v1067 = vunpack.c.l.b16 %v991
        %v1068 = vunpack.c.l.b16 %v992
        %v1069 = vunpack.c.l.b16 %v993
        %v1070 = vunpack.c.l.b16 %v994
        %v1071 = vunpack.c.l.b16 %v995
        %v1072 = vunpack.c.l.b16 %v996
        %v1073 = vunpack.c.l.b16 %v997
        %v1074 = vunpack.c.l.b16 %v998
        %v1075 = vunpack.c.l.b16 %v999
        %v1076 = vunpack.c.l.b16 %v1000
        %v1077 = vunpack.c.l.b16 %v1001
        %v1078 = vunpack.c.l.b16 %v1002
        %v1079 = vunpack.c.l.b16 %v1003
        %v1080 = vunpack.c.l.b16 %v1004
        %v1081 = vunpack.c.l.b16 %v1005
        %v1082 = vunpack.c.l.b16 %v1006
        %v1083 = vunpack.c.l.b16 %v1007
        %v1084 = vunpack.c.l.b16 %v1008
        %v1085 = vunpack.c.l.b16 %v1009
        %v1086 = vunpack.c.l.b16 %v1010
        %v1087 = vunpack.c.l.b16 %v1011
        %v1088 = vunpack.c.l.b16 %v1012
        %v1089 = vunpack.c.l.b16 %v1013
        %v1090 = vunpack.c.l.b16 %v1014
        %v1091 = vunpack.c.l.b16 %v1015
        %v1092 = vunpack.c.l.b16 %v1016
        %v1093 = vpack.c.b16 %v1058, %v1057
        %v1094 = vpack.c.b16 %v1060, %v1059
        %v1095 = vpack.c.b16 %v1062, %v1061
        %v1096 = vpack.c.b16 %v1064, %v1063
        %v1097 = vpack.c.b16 %v1066, %v1065
        %v1098 = vpack.c.b16 %v1068, %v1067
        %v1099 = vpack.c.b16 %v1070, %v1069
        %v1100 = vpack.c.b16 %v1072, %v1071
        %v1101 = vpack.c.b16 %v1074, %v1073
        %v1102 = vpack.c.b16 %v1076, %v1075
        %v1103 = vpack.c.b16 %v1078, %v1077
        %v1104 = vpack.c.b16 %v1080, %v1079
        %v1105 = vpack.c.b16 %v1082, %v1081
        %v1106 = vpack.c.b16 %v1084, %v1083
        %v1107 = vpack.c.b16 %v1086, %v1085
        %v1108 = vpack.c.b16 %v1088, %v1087
        %v1109 = vpack.c.b16 %v1090, %v1089
        %v1110 = vpack.c.b16 %v1092, %v1091
        %v1114 = vunpack.c.l.b16 %v1018
        %v1115 = vunpack.c.l.b16 %v1019
        %v1116 = vunpack.c.l.b16 %v1020
        %v1117 = vpack.c.b16 %v1115, %v1114
        %v1118 = vpack.c.b16 %v1116, %v1116
        %v1121 = vsel %vm407, %v1093, 0
        %v1124 = vsel %vm407, %v1094, 0
        %v1127 = vsel %vm407, %v1095, 0
        %v1130 = vsel %vm407, %v1096, 0
        %v1133 = vsel %vm407, %v1097, 0
        %v1136 = vsel %vm407, %v1098, 0
        %v1139 = vsel %vm407, %v1099, 0
        %v1142 = vsel %vm407, %v1100, 0
        %v1145 = vsel %vm407, %v1101, 0
        %v1148 = vsel %vm407, %v1102, 0
        %v1151 = vsel %vm407, %v1103, 0
        %v1154 = vsel %vm407, %v1104, 0
        %v1157 = vsel %vm407, %v1105, 0
        %v1160 = vsel %vm407, %v1106, 0
        %v1163 = vsel %vm407, %v1107, 0
        %v1166 = vsel %vm407, %v1108, 0
        %v1169 = vsel %vm407, %v1109, 0
        %v1172 = vsel %vm407, %v1110, 0
        %v1175 = vsel %vm462, %v1118, 0
        %1177 = vmatprep.subr.bf16.mxu0 0
        %1178 = vmatpush1.bf16.msra.mxu0 %v1117
        %1179 = vmatprep.subr.bf16.mxu0 0
        %1180 = vmatpush1.bf16.msra.mxu0 %v1175
        %1181 = vmatprep.subr.bf16.mxu0 0
        %1182 = vmatpush1.bf16.msra.mxu0 0
        %1183 = vmatprep.subr.bf16.mxu0 0
        %1184 = vmatpush1.bf16.msra.mxu0 0
        %1185 = vmatprep.subr.bf16.mxu0 0
        %1186 = vmatpush1.bf16.msra.mxu0 0
        %1187 = vmatprep.subr.bf16.mxu0 0
        %1188 = vmatpush1.bf16.msra.mxu0 0
        %1189 = vmatprep.subr.bf16.mxu0 0
        %1190 = vmatpush1.bf16.msra.mxu0 0
        %1191 = vmatprep.subr.bf16.mxu0 0
        %1192 = vmatpush1.bf16.msra.mxu0 0
        %1193 = vmatprep.subr.bf16.mxu0 0
        %1194 = vmatpush1.bf16.msra.mxu0 0
        %1195 = vmatprep.subr.bf16.mxu0 0
        %1196 = vmatpush1.bf16.msra.mxu0 0
        %1197 = vmatprep.subr.bf16.mxu0 0
        %1198 = vmatpush1.bf16.msra.mxu0 0
        %1199 = vmatprep.subr.bf16.mxu0 0
        %1200 = vmatpush1.bf16.msra.mxu0 0
        %1201 = vmatprep.subr.bf16.mxu0 0
        %1202 = vmatpush1.bf16.msra.mxu0 0
        %1203 = vmatprep.subr.bf16.mxu0 0
        %1204 = vmatpush1.bf16.msra.mxu0 0
        %1205 = vmatprep.subr.bf16.mxu0 0
        %1206 = vmatpush1.bf16.msra.mxu0 0
        %1207 = vmatprep.subr.bf16.mxu0 0
        %1208 = vmatpush1.bf16.msra.mxu0 0
        %1209 = vmatprep.mubr.bf16.mxu0 0
        %1210 = vmatmul.mubr.bf16.gmra.mrb[0].mxu0 %v1121
        %v1211 = vpop.f32.mrb[0].mxu0
        %v1212 = vadd.f32 0.0, %v1211
        %v1213 = vpop.f32.mrb[0].mxu0
        %v1214 = vpop.f32.mrb[0].mxu0
        %v1215 = vadd.f32 0.0, %v1214
        %v1216 = vpop.f32.mrb[0].mxu0
        %1217 = vmatprep.mubr.bf16.mxu0 0
        %1218 = vmatmul.mubr.bf16.gmra.mrb[0].mxu0 %v1124
        %v1219 = vpop.f32.mrb[0].mxu0
        %v1220 = vadd.f32 0.0, %v1219
        %v1221 = vpop.f32.mrb[0].mxu0
        %v1222 = vpop.f32.mrb[0].mxu0
        %v1223 = vadd.f32 0.0, %v1222
        %v1224 = vpop.f32.mrb[0].mxu0
        %1225 = vmatprep.mubr.bf16.mxu0 0
        %1226 = vmatmul.mubr.bf16.gmra.mrb[0].mxu0 %v1127
        %v1227 = vpop.f32.mrb[0].mxu0
        %v1228 = vadd.f32 0.0, %v1227
        %v1229 = vpop.f32.mrb[0].mxu0
        %v1230 = vpop.f32.mrb[0].mxu0
        %v1231 = vadd.f32 0.0, %v1230
        %v1232 = vpop.f32.mrb[0].mxu0
        %1233 = vmatprep.mubr.bf16.mxu0 0
        %1234 = vmatmul.mubr.bf16.gmra.mrb[0].mxu0 %v1130
        %v1235 = vpop.f32.mrb[0].mxu0
        %v1236 = vadd.f32 0.0, %v1235
        %v1237 = vpop.f32.mrb[0].mxu0
        %v1238 = vpop.f32.mrb[0].mxu0
        %v1239 = vadd.f32 0.0, %v1238
        %v1240 = vpop.f32.mrb[0].mxu0
        %1241 = vmatprep.mubr.bf16.mxu0 0
        %1242 = vmatmul.mubr.bf16.gmra.mrb[0].mxu0 %v1133
        %v1243 = vpop.f32.mrb[0].mxu0
        %v1244 = vadd.f32 0.0, %v1243
        %v1245 = vpop.f32.mrb[0].mxu0
        %v1246 = vpop.f32.mrb[0].mxu0
        %v1247 = vadd.f32 0.0, %v1246
        %v1248 = vpop.f32.mrb[0].mxu0
        %1249 = vmatprep.mubr.bf16.mxu0 0
        %1250 = vmatmul.mubr.bf16.gmra.mrb[0].mxu0 %v1136
        %v1251 = vpop.f32.mrb[0].mxu0
        %v1252 = vadd.f32 0.0, %v1251
        %v1253 = vpop.f32.mrb[0].mxu0
        %v1254 = vpop.f32.mrb[0].mxu0
        %v1255 = vadd.f32 0.0, %v1254
        %v1256 = vpop.f32.mrb[0].mxu0
        %1257 = vmatprep.mubr.bf16.mxu0 0
        %1258 = vmatmul.mubr.bf16.gmra.mrb[0].mxu0 %v1139
        %v1259 = vpop.f32.mrb[0].mxu0
        %v1260 = vadd.f32 0.0, %v1259
        %v1261 = vpop.f32.mrb[0].mxu0
        %v1262 = vpop.f32.mrb[0].mxu0
        %v1263 = vadd.f32 0.0, %v1262
        %v1264 = vpop.f32.mrb[0].mxu0
        %1265 = vmatprep.mubr.bf16.mxu0 0
        %1266 = vmatmul.mubr.bf16.gmra.mrb[0].mxu0 %v1142
        %v1267 = vpop.f32.mrb[0].mxu0
        %v1268 = vadd.f32 0.0, %v1267
        %v1269 = vpop.f32.mrb[0].mxu0
        %v1270 = vpop.f32.mrb[0].mxu0
        %v1271 = vadd.f32 0.0, %v1270
        %v1272 = vpop.f32.mrb[0].mxu0
        %1273 = vmatprep.mubr.bf16.mxu0 0
        %1274 = vmatmul.mubr.bf16.gmra.mrb[0].mxu0 %v1145
        %v1275 = vpop.f32.mrb[0].mxu0
        %v1276 = vadd.f32 0.0, %v1275
        %v1277 = vpop.f32.mrb[0].mxu0
        %v1278 = vpop.f32.mrb[0].mxu0
        %v1279 = vadd.f32 0.0, %v1278
        %v1280 = vpop.f32.mrb[0].mxu0
        %1281 = vmatprep.mubr.bf16.mxu0 0
        %1282 = vmatmul.mubr.bf16.gmra.mrb[0].mxu0 %v1148
        %v1283 = vpop.f32.mrb[0].mxu0
        %v1284 = vadd.f32 0.0, %v1283
        %v1285 = vpop.f32.mrb[0].mxu0
        %v1286 = vpop.f32.mrb[0].mxu0
        %v1287 = vadd.f32 0.0, %v1286
        %v1288 = vpop.f32.mrb[0].mxu0
        %1289 = vmatprep.mubr.bf16.mxu0 0
        %1290 = vmatmul.mubr.bf16.gmra.mrb[0].mxu0 %v1151
        %v1291 = vpop.f32.mrb[0].mxu0
        %v1292 = vadd.f32 0.0, %v1291
        %v1293 = vpop.f32.mrb[0].mxu0
        %v1294 = vpop.f32.mrb[0].mxu0
        %v1295 = vadd.f32 0.0, %v1294
        %v1296 = vpop.f32.mrb[0].mxu0
        %1297 = vmatprep.mubr.bf16.mxu0 0
        %1298 = vmatmul.mubr.bf16.gmra.mrb[0].mxu0 %v1154
        %v1299 = vpop.f32.mrb[0].mxu0
        %v1300 = vadd.f32 0.0, %v1299
        %v1301 = vpop.f32.mrb[0].mxu0
        %v1302 = vpop.f32.mrb[0].mxu0
        %v1303 = vadd.f32 0.0, %v1302
        %v1304 = vpop.f32.mrb[0].mxu0
        %1305 = vmatprep.mubr.bf16.mxu0 0
        %1306 = vmatmul.mubr.bf16.gmra.mrb[0].mxu0 %v1157
        %v1307 = vpop.f32.mrb[0].mxu0
        %v1308 = vadd.f32 0.0, %v1307
        %v1309 = vpop.f32.mrb[0].mxu0
        %v1310 = vpop.f32.mrb[0].mxu0
        %v1311 = vadd.f32 0.0, %v1310
        %v1312 = vpop.f32.mrb[0].mxu0
        %1313 = vmatprep.mubr.bf16.mxu0 0
        %1314 = vmatmul.mubr.bf16.gmra.mrb[0].mxu0 %v1160
        %v1315 = vpop.f32.mrb[0].mxu0
        %v1316 = vadd.f32 0.0, %v1315
        %v1317 = vpop.f32.mrb[0].mxu0
        %v1318 = vpop.f32.mrb[0].mxu0
        %v1319 = vadd.f32 0.0, %v1318
        %v1320 = vpop.f32.mrb[0].mxu0
        %1321 = vmatprep.mubr.bf16.mxu0 0
        %1322 = vmatmul.mubr.bf16.gmra.mrb[0].mxu0 %v1163
        %v1323 = vpop.f32.mrb[0].mxu0
        %v1324 = vadd.f32 0.0, %v1323
        %v1325 = vpop.f32.mrb[0].mxu0
        %v1326 = vpop.f32.mrb[0].mxu0
        %v1327 = vadd.f32 0.0, %v1326
        %v1328 = vpop.f32.mrb[0].mxu0
        %1329 = vmatprep.mubr.bf16.mxu0 0
        %1330 = vmatmul.mubr.bf16.gmra.mrb[0].mxu0 %v1166
        %v1331 = vpop.f32.mrb[0].mxu0
        %v1332 = vadd.f32 0.0, %v1331
        %v1333 = vpop.f32.mrb[0].mxu0
        %v1334 = vpop.f32.mrb[0].mxu0
        %v1335 = vadd.f32 0.0, %v1334
        %v1336 = vpop.f32.mrb[0].mxu0
        %1337 = vmatprep.mubr.bf16.mxu0 0
        %1338 = vmatmul.mubr.bf16.gmra.mrb[0].mxu0 %v1169
        %v1339 = vpop.f32.mrb[0].mxu0
        %v1340 = vadd.f32 0.0, %v1339
        %v1341 = vpop.f32.mrb[0].mxu0
        %v1342 = vpop.f32.mrb[0].mxu0
        %v1343 = vadd.f32 0.0, %v1342
        %v1344 = vpop.f32.mrb[0].mxu0
        %1345 = vmatprep.mubr.bf16.mxu0 0
        %1346 = vmatmul.mubr.bf16.gmra.mrb[0].mxu0 %v1172
        %v1347 = vpop.f32.mrb[0].mxu0
        %v1348 = vadd.f32 0.0, %v1347
        %v1349 = vpop.f32.mrb[0].mxu0
        %v1350 = vpop.f32.mrb[0].mxu0
        %v1351 = vadd.f32 0.0, %v1350
        %v1352 = vpop.f32.mrb[0].mxu0
        %1353 = vdwg.mxu0
        %v1354 = vadd.f32 %v834, %v1212
        %v1355 = vadd.f32 %v837, %v1215
        %v1356 = vadd.f32 %v842, %v1220
        %v1357 = vadd.f32 %v845, %v1223
        %v1358 = vadd.f32 %v850, %v1228
        %v1359 = vadd.f32 %v853, %v1231
        %v1360 = vadd.f32 %v858, %v1236
        %v1361 = vadd.f32 %v861, %v1239
        %v1362 = vadd.f32 %v866, %v1244
        %v1363 = vadd.f32 %v869, %v1247
        %v1364 = vadd.f32 %v874, %v1252
        %v1365 = vadd.f32 %v877, %v1255
        %v1366 = vadd.f32 %v882, %v1260
        %v1367 = vadd.f32 %v885, %v1263
        %v1368 = vadd.f32 %v890, %v1268
        %v1369 = vadd.f32 %v893, %v1271
        %v1370 = vadd.f32 %v898, %v1276
        %v1371 = vadd.f32 %v901, %v1279
        %v1372 = vadd.f32 %v906, %v1284
        %v1373 = vadd.f32 %v909, %v1287
        %v1374 = vadd.f32 %v914, %v1292
        %v1375 = vadd.f32 %v917, %v1295
        %v1376 = vadd.f32 %v922, %v1300
        %v1377 = vadd.f32 %v925, %v1303
        %v1378 = vadd.f32 %v930, %v1308
        %v1379 = vadd.f32 %v933, %v1311
        %v1380 = vadd.f32 %v938, %v1316
        %v1381 = vadd.f32 %v941, %v1319
        %v1382 = vadd.f32 %v946, %v1324
        %v1383 = vadd.f32 %v949, %v1327
        %v1384 = vadd.f32 %v954, %v1332
        %v1385 = vadd.f32 %v957, %v1335
        %v1386 = vadd.f32 %v962, %v1340
        %v1387 = vadd.f32 %v965, %v1343
        %v1388 = vadd.f32 %v970, %v1348
        %v1389 = vadd.f32 %v973, %v1351
        %v1390 = vld [vmem:[%s2] sm:$0x1]
        %v1392 = vlaneseq
        %v1393 = vshrl.u32 %v1392, 7
        %v1394 = vsub.s32 0, %v1393
        %v1395 = vrot.slane %v1390, %v1394
        %v1397 = vadd.f32 %v1354, %v1395
        %v1398 = vadd.f32 %v1355, %v1395
        %v1399 = vadd.f32 %v1356, %v1395
        %v1400 = vadd.f32 %v1357, %v1395
        %v1401 = vadd.f32 %v1358, %v1395
        %v1402 = vadd.f32 %v1359, %v1395
        %v1403 = vadd.f32 %v1360, %v1395
        %v1404 = vadd.f32 %v1361, %v1395
        %v1405 = vadd.f32 %v1362, %v1395
        %v1406 = vadd.f32 %v1363, %v1395
        %v1407 = vadd.f32 %v1364, %v1395
        %v1408 = vadd.f32 %v1365, %v1395
        %v1409 = vadd.f32 %v1366, %v1395
        %v1410 = vadd.f32 %v1367, %v1395
        %v1411 = vadd.f32 %v1368, %v1395
        %v1412 = vadd.f32 %v1369, %v1395
        %v1413 = vadd.f32 %v1370, %v1395
        %v1414 = vadd.f32 %v1371, %v1395
        %v1415 = vadd.f32 %v1372, %v1395
        %v1416 = vadd.f32 %v1373, %v1395
        %v1417 = vadd.f32 %v1374, %v1395
        %v1418 = vadd.f32 %v1375, %v1395
        %v1419 = vadd.f32 %v1376, %v1395
        %v1420 = vadd.f32 %v1377, %v1395
        %v1421 = vadd.f32 %v1378, %v1395
        %v1422 = vadd.f32 %v1379, %v1395
        %v1423 = vadd.f32 %v1380, %v1395
        %v1424 = vadd.f32 %v1381, %v1395
        %v1425 = vadd.f32 %v1382, %v1395
        %v1426 = vadd.f32 %v1383, %v1395
        %v1427 = vadd.f32 %v1384, %v1395
        %v1428 = vadd.f32 %v1385, %v1395
        %v1429 = vadd.f32 %v1386, %v1395
        %v1430 = vadd.f32 %v1387, %v1395
        %v1431 = vadd.f32 %v1388, %v1395
        %v1432 = vadd.f32 %v1389, %v1395
        %v1433 = vlaneseq
        %v1434 = vand.u32 %v1433, 127
        %vm1435 = vcmp.ge.s32.totalorder %v1434, 36
        %vm1436 = vcmp.lt.s32.totalorder %v1434, 48
        %vm1437 = vmand %vm1435, %vm1436
        %vm1438 = vcmp.ge.s32.totalorder %v1434, 48
        %vm1439 = vcmp.lt.s32.totalorder %v1434, 60
        %vm1440 = vmand %vm1438, %vm1439
        %v1441 = vld [vmem:[%s191] sm:$0xff]
        %v1442 = vld [vmem:[%s191 + $0x8] sm:$0xff]
        %v1443 = vld [vmem:[%s191 + $0x10] sm:$0xff]
        %v1444 = vld [vmem:[%s191 + $0x18] sm:$0xff]
        %v1445 = vld [vmem:[%s191 + $0x20] sm:$0xff]
        %v1446 = vld [vmem:[%s191 + $0x28] sm:$0xff]
        %v1447 = vld [vmem:[%s191 + $0x30] sm:$0xff]
        %v1448 = vld [vmem:[%s191 + $0x38] sm:$0xff]
        %v1449 = vld [vmem:[%s191 + $0x40] sm:$0xff]
        %v1450 = vld [vmem:[%s191 + $0x48] sm:$0xff]
        %v1451 = vld [vmem:[%s191 + $0x50] sm:$0xff]
        %v1452 = vld [vmem:[%s191 + $0x58] sm:$0xff]
        %v1453 = vld [vmem:[%s191 + $0x60] sm:$0xff]
        %v1454 = vld [vmem:[%s191 + $0x68] sm:$0xff]
        %v1455 = vld [vmem:[%s191 + $0x70] sm:$0xff]
        %v1456 = vld [vmem:[%s191 + $0x78] sm:$0xff]
        %v1457 = vld [vmem:[%s191 + $0x80] sm:$0xff]
        %v1458 = vld [vmem:[%s191 + $0x88] sm:$0xff]
        %v1459 = vld [vmem:[%s191 + $0x90] sm:$0xff]
        %v1460 = vld [vmem:[%s191 + $0x98] sm:$0xff]
        %v1461 = vld [vmem:[%s191 + $0xa0] sm:$0xff]
        %v1462 = vld [vmem:[%s191 + $0xa8] sm:$0xff]
        %v1463 = vld [vmem:[%s191 + $0xb0] sm:$0xff]
        %v1464 = vld [vmem:[%s191 + $0xb8] sm:$0xff]
        %v1465 = vld [vmem:[%s191 + $0xc0] sm:$0xff]
        %v1466 = vld [vmem:[%s191 + $0xc8] sm:$0xff]
        %v1467 = vld [vmem:[%s191 + $0xd0] sm:$0xff]
        %v1468 = vld [vmem:[%s191 + $0xd8] sm:$0xff]
        %v1469 = vld [vmem:[%s191 + $0xe0] sm:$0xff]
        %v1470 = vld [vmem:[%s191 + $0xe8] sm:$0xff]
        %v1471 = vld [vmem:[%s191 + $0xf0] sm:$0xff]
        %v1472 = vld [vmem:[%s191 + $0xf8] sm:$0xff]
        %v1473 = vld [vmem:[%s191 + $0x100] sm:$0xff]
        %v1474 = vld [vmem:[%s191 + $0x108] sm:$0xff]
        %v1475 = vld [vmem:[%s191 + $0x110] sm:$0xff]
        %v1476 = vld [vmem:[%s191 + $0x118] sm:$0xff]
        %v1477 = vsel %vm1440, %v1397, 0.0
        %v1478 = vsel %vm1440, %v1398, 0.0
        %v1479 = vsel %vm1440, %v1399, 0.0
        %v1480 = vsel %vm1440, %v1400, 0.0
        %v1481 = vsel %vm1440, %v1401, 0.0
        %v1482 = vsel %vm1440, %v1402, 0.0
        %v1483 = vsel %vm1440, %v1403, 0.0
        %v1484 = vsel %vm1440, %v1404, 0.0
        %v1485 = vsel %vm1440, %v1405, 0.0
        %v1486 = vsel %vm1440, %v1406, 0.0
        %v1487 = vsel %vm1440, %v1407, 0.0
        %v1488 = vsel %vm1440, %v1408, 0.0
        %v1489 = vsel %vm1440, %v1409, 0.0
        %v1490 = vsel %vm1440, %v1410, 0.0
        %v1491 = vsel %vm1440, %v1411, 0.0
        %v1492 = vsel %vm1440, %v1412, 0.0
        %v1493 = vsel %vm1440, %v1413, 0.0
        %v1494 = vsel %vm1440, %v1414, 0.0
        %v1495 = vsel %vm1440, %v1415, 0.0
        %v1496 = vsel %vm1440, %v1416, 0.0
        %v1497 = vsel %vm1440, %v1417, 0.0
        %v1498 = vsel %vm1440, %v1418, 0.0
        %v1499 = vsel %vm1440, %v1419, 0.0
        %v1500 = vsel %vm1440, %v1420, 0.0
        %v1501 = vsel %vm1440, %v1421, 0.0
        %v1502 = vsel %vm1440, %v1422, 0.0
        %v1503 = vsel %vm1440, %v1423, 0.0
        %v1504 = vsel %vm1440, %v1424, 0.0
        %v1505 = vsel %vm1440, %v1425, 0.0
        %v1506 = vsel %vm1440, %v1426, 0.0
        %v1507 = vsel %vm1440, %v1427, 0.0
        %v1508 = vsel %vm1440, %v1428, 0.0
        %v1509 = vsel %vm1440, %v1429, 0.0
        %v1510 = vsel %vm1440, %v1430, 0.0
        %v1511 = vsel %vm1440, %v1431, 0.0
        %v1512 = vsel %vm1440, %v1432, 0.0
        %v1513 = vmul.f32 %v1477, 1.442695
        %v1514 = vpow.pop %v1513
        %v1515 = vmul.f32 %v1478, 1.442695
        %v1516 = vpow.pop %v1515
        %v1517 = vmul.f32 %v1479, 1.442695
        %v1518 = vpow.pop %v1517
        %v1519 = vmul.f32 %v1480, 1.442695
        %v1520 = vpow.pop %v1519
        %v1521 = vmul.f32 %v1481, 1.442695
        %v1522 = vpow.pop %v1521
        %v1523 = vmul.f32 %v1482, 1.442695
        %v1524 = vpow.pop %v1523
        %v1525 = vmul.f32 %v1483, 1.442695
        %v1526 = vpow.pop %v1525
        %v1527 = vmul.f32 %v1484, 1.442695
        %v1528 = vpow.pop %v1527
        %v1529 = vmul.f32 %v1485, 1.442695
        %v1530 = vpow.pop %v1529
        %v1531 = vmul.f32 %v1486, 1.442695
        %v1532 = vpow.pop %v1531
        %v1533 = vmul.f32 %v1487, 1.442695
        %v1534 = vpow.pop %v1533
        %v1535 = vmul.f32 %v1488, 1.442695
        %v1536 = vpow.pop %v1535
        %v1537 = vmul.f32 %v1489, 1.442695
        %v1538 = vpow.pop %v1537
        %v1539 = vmul.f32 %v1490, 1.442695
        %v1540 = vpow.pop %v1539
        %v1541 = vmul.f32 %v1491, 1.442695
        %v1542 = vpow.pop %v1541
        %v1543 = vmul.f32 %v1492, 1.442695
        %v1544 = vpow.pop %v1543
        %v1545 = vmul.f32 %v1493, 1.442695
        %v1546 = vpow.pop %v1545
        %v1547 = vmul.f32 %v1494, 1.442695
        %v1548 = vpow.pop %v1547
        %v1549 = vmul.f32 %v1495, 1.442695
        %v1550 = vpow.pop %v1549
        %v1551 = vmul.f32 %v1496, 1.442695
        %v1552 = vpow.pop %v1551
        %v1553 = vmul.f32 %v1497, 1.442695
        %v1554 = vpow.pop %v1553
        %v1555 = vmul.f32 %v1498, 1.442695
        %v1556 = vpow.pop %v1555
        %v1557 = vmul.f32 %v1499, 1.442695
        %v1558 = vpow.pop %v1557
        %v1559 = vmul.f32 %v1500, 1.442695
        %v1560 = vpow.pop %v1559
        %v1561 = vmul.f32 %v1501, 1.442695
        %v1562 = vpow.pop %v1561
        %v1563 = vmul.f32 %v1502, 1.442695
        %v1564 = vpow.pop %v1563
        %v1565 = vmul.f32 %v1503, 1.442695
        %v1566 = vpow.pop %v1565
        %v1567 = vmul.f32 %v1504, 1.442695
        %v1568 = vpow.pop %v1567
        %v1569 = vmul.f32 %v1505, 1.442695
        %v1570 = vpow.pop %v1569
        %v1571 = vmul.f32 %v1506, 1.442695
        %v1572 = vpow.pop %v1571
        %v1573 = vmul.f32 %v1507, 1.442695
        %v1574 = vpow.pop %v1573
        %v1575 = vmul.f32 %v1508, 1.442695
        %v1576 = vpow.pop %v1575
        %v1577 = vmul.f32 %v1509, 1.442695
        %v1578 = vpow.pop %v1577
        %v1579 = vmul.f32 %v1510, 1.442695
        %v1580 = vpow.pop %v1579
        %v1581 = vmul.f32 %v1511, 1.442695
        %v1582 = vpow.pop %v1581
        %v1583 = vmul.f32 %v1512, 1.442695
        %v1584 = vpow.pop %v1583
        %v1585 = vmul.f32 %v1441, %v1514
        %v1586 = vmul.f32 %v1442, %v1516
        %v1587 = vmul.f32 %v1443, %v1518
        %v1588 = vmul.f32 %v1444, %v1520
        %v1589 = vmul.f32 %v1445, %v1522
        %v1590 = vmul.f32 %v1446, %v1524
        %v1591 = vmul.f32 %v1447, %v1526
        %v1592 = vmul.f32 %v1448, %v1528
        %v1593 = vmul.f32 %v1449, %v1530
        %v1594 = vmul.f32 %v1450, %v1532
        %v1595 = vmul.f32 %v1451, %v1534
        %v1596 = vmul.f32 %v1452, %v1536
        %v1597 = vmul.f32 %v1453, %v1538
        %v1598 = vmul.f32 %v1454, %v1540
        %v1599 = vmul.f32 %v1455, %v1542
        %v1600 = vmul.f32 %v1456, %v1544
        %v1601 = vmul.f32 %v1457, %v1546
        %v1602 = vmul.f32 %v1458, %v1548
        %v1603 = vmul.f32 %v1459, %v1550
        %v1604 = vmul.f32 %v1460, %v1552
        %v1605 = vmul.f32 %v1461, %v1554
        %v1606 = vmul.f32 %v1462, %v1556
        %v1607 = vmul.f32 %v1463, %v1558
        %v1608 = vmul.f32 %v1464, %v1560
        %v1609 = vmul.f32 %v1465, %v1562
        %v1610 = vmul.f32 %v1466, %v1564
        %v1611 = vmul.f32 %v1467, %v1566
        %v1612 = vmul.f32 %v1468, %v1568
        %v1613 = vmul.f32 %v1469, %v1570
        %v1614 = vmul.f32 %v1470, %v1572
        %v1615 = vmul.f32 %v1471, %v1574
        %v1616 = vmul.f32 %v1472, %v1576
        %v1617 = vmul.f32 %v1473, %v1578
        %v1618 = vmul.f32 %v1474, %v1580
        %v1619 = vmul.f32 %v1475, %v1582
        %v1620 = vmul.f32 %v1476, %v1584
        %1621 = vrot.lane.b32.xlu0 %v1441, 116
        %v1622 = vpop.permute.xlu0 %1621
        %1623 = vrot.lane.b32.xlu0 %v1442, 116
        %v1624 = vpop.permute.xlu0 %1623
        %1625 = vrot.lane.b32.xlu0 %v1443, 116
        %v1626 = vpop.permute.xlu0 %1625
        %1627 = vrot.lane.b32.xlu0 %v1444, 116
        %v1628 = vpop.permute.xlu0 %1627
        %1629 = vrot.lane.b32.xlu0 %v1445, 116
        %v1630 = vpop.permute.xlu0 %1629
        %1631 = vrot.lane.b32.xlu0 %v1446, 116
        %v1632 = vpop.permute.xlu0 %1631
        %1633 = vrot.lane.b32.xlu0 %v1447, 116
        %v1634 = vpop.permute.xlu0 %1633
        %1635 = vrot.lane.b32.xlu0 %v1448, 116
        %v1636 = vpop.permute.xlu0 %1635
        %1637 = vrot.lane.b32.xlu0 %v1449, 116
        %v1638 = vpop.permute.xlu0 %1637
        %1639 = vrot.lane.b32.xlu0 %v1450, 116
        %v1640 = vpop.permute.xlu0 %1639
        %1641 = vrot.lane.b32.xlu0 %v1451, 116
        %v1642 = vpop.permute.xlu0 %1641
        %1643 = vrot.lane.b32.xlu0 %v1452, 116
        %v1644 = vpop.permute.xlu0 %1643
        %1645 = vrot.lane.b32.xlu0 %v1453, 116
        %v1646 = vpop.permute.xlu0 %1645
        %1647 = vrot.lane.b32.xlu0 %v1454, 116
        %v1648 = vpop.permute.xlu0 %1647
        %1649 = vrot.lane.b32.xlu0 %v1455, 116
        %v1650 = vpop.permute.xlu0 %1649
        %1651 = vrot.lane.b32.xlu0 %v1456, 116
        %v1652 = vpop.permute.xlu0 %1651
        %1653 = vrot.lane.b32.xlu0 %v1457, 116
        %v1654 = vpop.permute.xlu0 %1653
        %1655 = vrot.lane.b32.xlu0 %v1458, 116
        %v1656 = vpop.permute.xlu0 %1655
        %1657 = vrot.lane.b32.xlu0 %v1459, 116
        %v1658 = vpop.permute.xlu0 %1657
        %1659 = vrot.lane.b32.xlu0 %v1460, 116
        %v1660 = vpop.permute.xlu0 %1659
        %1661 = vrot.lane.b32.xlu0 %v1461, 116
        %v1662 = vpop.permute.xlu0 %1661
        %1663 = vrot.lane.b32.xlu0 %v1462, 116
        %v1664 = vpop.permute.xlu0 %1663
        %1665 = vrot.lane.b32.xlu0 %v1463, 116
        %v1666 = vpop.permute.xlu0 %1665
        %1667 = vrot.lane.b32.xlu0 %v1464, 116
        %v1668 = vpop.permute.xlu0 %1667
        %1669 = vrot.lane.b32.xlu0 %v1465, 116
        %v1670 = vpop.permute.xlu0 %1669
        %1671 = vrot.lane.b32.xlu0 %v1466, 116
        %v1672 = vpop.permute.xlu0 %1671
        %1673 = vrot.lane.b32.xlu0 %v1467, 116
        %v1674 = vpop.permute.xlu0 %1673
        %1675 = vrot.lane.b32.xlu0 %v1468, 116
        %v1676 = vpop.permute.xlu0 %1675
        %1677 = vrot.lane.b32.xlu0 %v1469, 116
        %v1678 = vpop.permute.xlu0 %1677
        %1679 = vrot.lane.b32.xlu0 %v1470, 116
        %v1680 = vpop.permute.xlu0 %1679
        %1681 = vrot.lane.b32.xlu0 %v1471, 116
        %v1682 = vpop.permute.xlu0 %1681
        %1683 = vrot.lane.b32.xlu0 %v1472, 116
        %v1684 = vpop.permute.xlu0 %1683
        %1685 = vrot.lane.b32.xlu0 %v1473, 116
        %v1686 = vpop.permute.xlu0 %1685
        %1687 = vrot.lane.b32.xlu0 %v1474, 116
        %v1688 = vpop.permute.xlu0 %1687
        %1689 = vrot.lane.b32.xlu0 %v1475, 116
        %v1690 = vpop.permute.xlu0 %1689
        %1691 = vrot.lane.b32.xlu0 %v1476, 116
        %v1692 = vpop.permute.xlu0 %1691
        %1693 = vrot.lane.b32.xlu0 %v1585, 116
        %v1694 = vpop.permute.xlu0 %1693
        %1695 = vrot.lane.b32.xlu0 %v1586, 116
        %v1696 = vpop.permute.xlu0 %1695
        %1697 = vrot.lane.b32.xlu0 %v1587, 116
        %v1698 = vpop.permute.xlu0 %1697
        %1699 = vrot.lane.b32.xlu0 %v1588, 116
        %v1700 = vpop.permute.xlu0 %1699
        %1701 = vrot.lane.b32.xlu0 %v1589, 116
        %v1702 = vpop.permute.xlu0 %1701
        %1703 = vrot.lane.b32.xlu0 %v1590, 116
        %v1704 = vpop.permute.xlu0 %1703
        %1705 = vrot.lane.b32.xlu0 %v1591, 116
        %v1706 = vpop.permute.xlu0 %1705
        %1707 = vrot.lane.b32.xlu0 %v1592, 116
        %v1708 = vpop.permute.xlu0 %1707
        %1709 = vrot.lane.b32.xlu0 %v1593, 116
        %v1710 = vpop.permute.xlu0 %1709
        %1711 = vrot.lane.b32.xlu0 %v1594, 116
        %v1712 = vpop.permute.xlu0 %1711
        %1713 = vrot.lane.b32.xlu0 %v1595, 116
        %v1714 = vpop.permute.xlu0 %1713
        %1715 = vrot.lane.b32.xlu0 %v1596, 116
        %v1716 = vpop.permute.xlu0 %1715
        %1717 = vrot.lane.b32.xlu0 %v1597, 116
        %v1718 = vpop.permute.xlu0 %1717
        %1719 = vrot.lane.b32.xlu0 %v1598, 116
        %v1720 = vpop.permute.xlu0 %1719
        %1721 = vrot.lane.b32.xlu0 %v1599, 116
        %v1722 = vpop.permute.xlu0 %1721
        %1723 = vrot.lane.b32.xlu0 %v1600, 116
        %v1724 = vpop.permute.xlu0 %1723
        %1725 = vrot.lane.b32.xlu0 %v1601, 116
        %v1726 = vpop.permute.xlu0 %1725
        %1727 = vrot.lane.b32.xlu0 %v1602, 116
        %v1728 = vpop.permute.xlu0 %1727
        %1729 = vrot.lane.b32.xlu0 %v1603, 116
        %v1730 = vpop.permute.xlu0 %1729
        %1731 = vrot.lane.b32.xlu0 %v1604, 116
        %v1732 = vpop.permute.xlu0 %1731
        %1733 = vrot.lane.b32.xlu0 %v1605, 116
        %v1734 = vpop.permute.xlu0 %1733
        %1735 = vrot.lane.b32.xlu0 %v1606, 116
        %v1736 = vpop.permute.xlu0 %1735
        %1737 = vrot.lane.b32.xlu0 %v1607, 116
        %v1738 = vpop.permute.xlu0 %1737
        %1739 = vrot.lane.b32.xlu0 %v1608, 116
        %v1740 = vpop.permute.xlu0 %1739
        %1741 = vrot.lane.b32.xlu0 %v1609, 116
        %v1742 = vpop.permute.xlu0 %1741
        %1743 = vrot.lane.b32.xlu0 %v1610, 116
        %v1744 = vpop.permute.xlu0 %1743
        %1745 = vrot.lane.b32.xlu0 %v1611, 116
        %v1746 = vpop.permute.xlu0 %1745
        %1747 = vrot.lane.b32.xlu0 %v1612, 116
        %v1748 = vpop.permute.xlu0 %1747
        %1749 = vrot.lane.b32.xlu0 %v1613, 116
        %v1750 = vpop.permute.xlu0 %1749
        %1751 = vrot.lane.b32.xlu0 %v1614, 116
        %v1752 = vpop.permute.xlu0 %1751
        %1753 = vrot.lane.b32.xlu0 %v1615, 116
        %v1754 = vpop.permute.xlu0 %1753
        %1755 = vrot.lane.b32.xlu0 %v1616, 116
        %v1756 = vpop.permute.xlu0 %1755
        %1757 = vrot.lane.b32.xlu0 %v1617, 116
        %v1758 = vpop.permute.xlu0 %1757
        %1759 = vrot.lane.b32.xlu0 %v1618, 116
        %v1760 = vpop.permute.xlu0 %1759
        %1761 = vrot.lane.b32.xlu0 %v1619, 116
        %v1762 = vpop.permute.xlu0 %1761
        %1763 = vrot.lane.b32.xlu0 %v1620, 116
        %v1764 = vpop.permute.xlu0 %1763
        %v1765 = vmul.f32 %v1397, %v1622
        %v1766 = vmul.f32 %v1398, %v1624
        %v1767 = vmul.f32 %v1399, %v1626
        %v1768 = vmul.f32 %v1400, %v1628
        %v1769 = vmul.f32 %v1401, %v1630
        %v1770 = vmul.f32 %v1402, %v1632
        %v1771 = vmul.f32 %v1403, %v1634
        %v1772 = vmul.f32 %v1404, %v1636
        %v1773 = vmul.f32 %v1405, %v1638
        %v1774 = vmul.f32 %v1406, %v1640
        %v1775 = vmul.f32 %v1407, %v1642
        %v1776 = vmul.f32 %v1408, %v1644
        %v1777 = vmul.f32 %v1409, %v1646
        %v1778 = vmul.f32 %v1410, %v1648
        %v1779 = vmul.f32 %v1411, %v1650
        %v1780 = vmul.f32 %v1412, %v1652
        %v1781 = vmul.f32 %v1413, %v1654
        %v1782 = vmul.f32 %v1414, %v1656
        %v1783 = vmul.f32 %v1415, %v1658
        %v1784 = vmul.f32 %v1416, %v1660
        %v1785 = vmul.f32 %v1417, %v1662
        %v1786 = vmul.f32 %v1418, %v1664
        %v1787 = vmul.f32 %v1419, %v1666
        %v1788 = vmul.f32 %v1420, %v1668
        %v1789 = vmul.f32 %v1421, %v1670
        %v1790 = vmul.f32 %v1422, %v1672
        %v1791 = vmul.f32 %v1423, %v1674
        %v1792 = vmul.f32 %v1424, %v1676
        %v1793 = vmul.f32 %v1425, %v1678
        %v1794 = vmul.f32 %v1426, %v1680
        %v1795 = vmul.f32 %v1427, %v1682
        %v1796 = vmul.f32 %v1428, %v1684
        %v1797 = vmul.f32 %v1429, %v1686
        %v1798 = vmul.f32 %v1430, %v1688
        %v1799 = vmul.f32 %v1431, %v1690
        %v1800 = vmul.f32 %v1432, %v1692
        %v1801 = vadd.f32 %v1765, %v1441
        %v1802 = vadd.f32 %v1766, %v1442
        %v1803 = vadd.f32 %v1767, %v1443
        %v1804 = vadd.f32 %v1768, %v1444
        %v1805 = vadd.f32 %v1769, %v1445
        %v1806 = vadd.f32 %v1770, %v1446
        %v1807 = vadd.f32 %v1771, %v1447
        %v1808 = vadd.f32 %v1772, %v1448
        %v1809 = vadd.f32 %v1773, %v1449
        %v1810 = vadd.f32 %v1774, %v1450
        %v1811 = vadd.f32 %v1775, %v1451
        %v1812 = vadd.f32 %v1776, %v1452
        %v1813 = vadd.f32 %v1777, %v1453
        %v1814 = vadd.f32 %v1778, %v1454
        %v1815 = vadd.f32 %v1779, %v1455
        %v1816 = vadd.f32 %v1780, %v1456
        %v1817 = vadd.f32 %v1781, %v1457
        %v1818 = vadd.f32 %v1782, %v1458
        %v1819 = vadd.f32 %v1783, %v1459
        %v1820 = vadd.f32 %v1784, %v1460
        %v1821 = vadd.f32 %v1785, %v1461
        %v1822 = vadd.f32 %v1786, %v1462
        %v1823 = vadd.f32 %v1787, %v1463
        %v1824 = vadd.f32 %v1788, %v1464
        %v1825 = vadd.f32 %v1789, %v1465
        %v1826 = vadd.f32 %v1790, %v1466
        %v1827 = vadd.f32 %v1791, %v1467
        %v1828 = vadd.f32 %v1792, %v1468
        %v1829 = vadd.f32 %v1793, %v1469
        %v1830 = vadd.f32 %v1794, %v1470
        %v1831 = vadd.f32 %v1795, %v1471
        %v1832 = vadd.f32 %v1796, %v1472
        %v1833 = vadd.f32 %v1797, %v1473
        %v1834 = vadd.f32 %v1798, %v1474
        %v1835 = vadd.f32 %v1799, %v1475
        %v1836 = vadd.f32 %v1800, %v1476
        %v1837 = vmul.f32 %v1694, 0.5
        %v1838 = vmul.f32 %v1696, 0.5
        %v1839 = vmul.f32 %v1698, 0.5
        %v1840 = vmul.f32 %v1700, 0.5
        %v1841 = vmul.f32 %v1702, 0.5
        %v1842 = vmul.f32 %v1704, 0.5
        %v1843 = vmul.f32 %v1706, 0.5
        %v1844 = vmul.f32 %v1708, 0.5
        %v1845 = vmul.f32 %v1710, 0.5
        %v1846 = vmul.f32 %v1712, 0.5
        %v1847 = vmul.f32 %v1714, 0.5
        %v1848 = vmul.f32 %v1716, 0.5
        %v1849 = vmul.f32 %v1718, 0.5
        %v1850 = vmul.f32 %v1720, 0.5
        %v1851 = vmul.f32 %v1722, 0.5
        %v1852 = vmul.f32 %v1724, 0.5
        %v1853 = vmul.f32 %v1726, 0.5
        %v1854 = vmul.f32 %v1728, 0.5
        %v1855 = vmul.f32 %v1730, 0.5
        %v1856 = vmul.f32 %v1732, 0.5
        %v1857 = vmul.f32 %v1734, 0.5
        %v1858 = vmul.f32 %v1736, 0.5
        %v1859 = vmul.f32 %v1738, 0.5
        %v1860 = vmul.f32 %v1740, 0.5
        %v1861 = vmul.f32 %v1742, 0.5
        %v1862 = vmul.f32 %v1744, 0.5
        %v1863 = vmul.f32 %v1746, 0.5
        %v1864 = vmul.f32 %v1748, 0.5
        %v1865 = vmul.f32 %v1750, 0.5
        %v1866 = vmul.f32 %v1752, 0.5
        %v1867 = vmul.f32 %v1754, 0.5
        %v1868 = vmul.f32 %v1756, 0.5
        %v1869 = vmul.f32 %v1758, 0.5
        %v1870 = vmul.f32 %v1760, 0.5
        %v1871 = vmul.f32 %v1762, 0.5
        %v1872 = vmul.f32 %v1764, 0.5
        %v1873 = vsub.f32 %v1801, %v1837
        %v1874 = vsub.f32 %v1802, %v1838
        %v1875 = vsub.f32 %v1803, %v1839
        %v1876 = vsub.f32 %v1804, %v1840
        %v1877 = vsub.f32 %v1805, %v1841
        %v1878 = vsub.f32 %v1806, %v1842
        %v1879 = vsub.f32 %v1807, %v1843
        %v1880 = vsub.f32 %v1808, %v1844
        %v1881 = vsub.f32 %v1809, %v1845
        %v1882 = vsub.f32 %v1810, %v1846
        %v1883 = vsub.f32 %v1811, %v1847
        %v1884 = vsub.f32 %v1812, %v1848
        %v1885 = vsub.f32 %v1813, %v1849
        %v1886 = vsub.f32 %v1814, %v1850
        %v1887 = vsub.f32 %v1815, %v1851
        %v1888 = vsub.f32 %v1816, %v1852
        %v1889 = vsub.f32 %v1817, %v1853
        %v1890 = vsub.f32 %v1818, %v1854
        %v1891 = vsub.f32 %v1819, %v1855
        %v1892 = vsub.f32 %v1820, %v1856
        %v1893 = vsub.f32 %v1821, %v1857
        %v1894 = vsub.f32 %v1822, %v1858
        %v1895 = vsub.f32 %v1823, %v1859
        %v1896 = vsub.f32 %v1824, %v1860
        %v1897 = vsub.f32 %v1825, %v1861
        %v1898 = vsub.f32 %v1826, %v1862
        %v1899 = vsub.f32 %v1827, %v1863
        %v1900 = vsub.f32 %v1828, %v1864
        %v1901 = vsub.f32 %v1829, %v1865
        %v1902 = vsub.f32 %v1830, %v1866
        %v1903 = vsub.f32 %v1831, %v1867
        %v1904 = vsub.f32 %v1832, %v1868
        %v1905 = vsub.f32 %v1833, %v1869
        %v1906 = vsub.f32 %v1834, %v1870
        %v1907 = vsub.f32 %v1835, %v1871
        %v1908 = vsub.f32 %v1836, %v1872
        %v1909 = vsel %vm1440, %v1585, %v1397
        %v1910 = vsel %vm1440, %v1586, %v1398
        %v1911 = vsel %vm1440, %v1587, %v1399
        %v1912 = vsel %vm1440, %v1588, %v1400
        %v1913 = vsel %vm1440, %v1589, %v1401
        %v1914 = vsel %vm1440, %v1590, %v1402
        %v1915 = vsel %vm1440, %v1591, %v1403
        %v1916 = vsel %vm1440, %v1592, %v1404
        %v1917 = vsel %vm1440, %v1593, %v1405
        %v1918 = vsel %vm1440, %v1594, %v1406
        %v1919 = vsel %vm1440, %v1595, %v1407
        %v1920 = vsel %vm1440, %v1596, %v1408
        %v1921 = vsel %vm1440, %v1597, %v1409
        %v1922 = vsel %vm1440, %v1598, %v1410
        %v1923 = vsel %vm1440, %v1599, %v1411
        %v1924 = vsel %vm1440, %v1600, %v1412
        %v1925 = vsel %vm1440, %v1601, %v1413
        %v1926 = vsel %vm1440, %v1602, %v1414
        %v1927 = vsel %vm1440, %v1603, %v1415
        %v1928 = vsel %vm1440, %v1604, %v1416
        %v1929 = vsel %vm1440, %v1605, %v1417
        %v1930 = vsel %vm1440, %v1606, %v1418
        %v1931 = vsel %vm1440, %v1607, %v1419
        %v1932 = vsel %vm1440, %v1608, %v1420
        %v1933 = vsel %vm1440, %v1609, %v1421
        %v1934 = vsel %vm1440, %v1610, %v1422
        %v1935 = vsel %vm1440, %v1611, %v1423
        %v1936 = vsel %vm1440, %v1612, %v1424
        %v1937 = vsel %vm1440, %v1613, %v1425
        %v1938 = vsel %vm1440, %v1614, %v1426
        %v1939 = vsel %vm1440, %v1615, %v1427
        %v1940 = vsel %vm1440, %v1616, %v1428
        %v1941 = vsel %vm1440, %v1617, %v1429
        %v1942 = vsel %vm1440, %v1618, %v1430
        %v1943 = vsel %vm1440, %v1619, %v1431
        %v1944 = vsel %vm1440, %v1620, %v1432
        %v1945 = vsel %vm1437, %v1873, %v1909
        %v1946 = vsel %vm1437, %v1874, %v1910
        %v1947 = vsel %vm1437, %v1875, %v1911
        %v1948 = vsel %vm1437, %v1876, %v1912
        %v1949 = vsel %vm1437, %v1877, %v1913
        %v1950 = vsel %vm1437, %v1878, %v1914
        %v1951 = vsel %vm1437, %v1879, %v1915
        %v1952 = vsel %vm1437, %v1880, %v1916
        %v1953 = vsel %vm1437, %v1881, %v1917
        %v1954 = vsel %vm1437, %v1882, %v1918
        %v1955 = vsel %vm1437, %v1883, %v1919
        %v1956 = vsel %vm1437, %v1884, %v1920
        %v1957 = vsel %vm1437, %v1885, %v1921
        %v1958 = vsel %vm1437, %v1886, %v1922
        %v1959 = vsel %vm1437, %v1887, %v1923
        %v1960 = vsel %vm1437, %v1888, %v1924
        %v1961 = vsel %vm1437, %v1889, %v1925
        %v1962 = vsel %vm1437, %v1890, %v1926
        %v1963 = vsel %vm1437, %v1891, %v1927
        %v1964 = vsel %vm1437, %v1892, %v1928
        %v1965 = vsel %vm1437, %v1893, %v1929
        %v1966 = vsel %vm1437, %v1894, %v1930
        %v1967 = vsel %vm1437, %v1895, %v1931
        %v1968 = vsel %vm1437, %v1896, %v1932
        %v1969 = vsel %vm1437, %v1897, %v1933
        %v1970 = vsel %vm1437, %v1898, %v1934
        %v1971 = vsel %vm1437, %v1899, %v1935
        %v1972 = vsel %vm1437, %v1900, %v1936
        %v1973 = vsel %vm1437, %v1901, %v1937
        %v1974 = vsel %vm1437, %v1902, %v1938
        %v1975 = vsel %vm1437, %v1903, %v1939
        %v1976 = vsel %vm1437, %v1904, %v1940
        %v1977 = vsel %vm1437, %v1905, %v1941
        %v1978 = vsel %vm1437, %v1906, %v1942
        %v1979 = vsel %vm1437, %v1907, %v1943
        %v1980 = vsel %vm1437, %v1908, %v1944
        %1981 = vst [vmem:[%s215] sm:$0xff] %v1945
        %1982 = vst [vmem:[%s215 + $0x8] sm:$0xff] %v1946
        %1983 = vst [vmem:[%s215 + $0x10] sm:$0xff] %v1947
        %1984 = vst [vmem:[%s215 + $0x18] sm:$0xff] %v1948
        %1985 = vst [vmem:[%s215 + $0x20] sm:$0xff] %v1949
        %1986 = vst [vmem:[%s215 + $0x28] sm:$0xff] %v1950
        %1987 = vst [vmem:[%s215 + $0x30] sm:$0xff] %v1951
        %1988 = vst [vmem:[%s215 + $0x38] sm:$0xff] %v1952
        %1989 = vst [vmem:[%s215 + $0x40] sm:$0xff] %v1953
        %1990 = vst [vmem:[%s215 + $0x48] sm:$0xff] %v1954
        %1991 = vst [vmem:[%s215 + $0x50] sm:$0xff] %v1955
        %1992 = vst [vmem:[%s215 + $0x58] sm:$0xff] %v1956
        %1993 = vst [vmem:[%s215 + $0x60] sm:$0xff] %v1957
        %1994 = vst [vmem:[%s215 + $0x68] sm:$0xff] %v1958
        %1995 = vst [vmem:[%s215 + $0x70] sm:$0xff] %v1959
        %1996 = vst [vmem:[%s215 + $0x78] sm:$0xff] %v1960
        %1997 = vst [vmem:[%s215 + $0x80] sm:$0xff] %v1961
        %1998 = vst [vmem:[%s215 + $0x88] sm:$0xff] %v1962
        %1999 = vst [vmem:[%s215 + $0x90] sm:$0xff] %v1963
        %2000 = vst [vmem:[%s215 + $0x98] sm:$0xff] %v1964
        %2001 = vst [vmem:[%s215 + $0xa0] sm:$0xff] %v1965
        %2002 = vst [vmem:[%s215 + $0xa8] sm:$0xff] %v1966
        %2003 = vst [vmem:[%s215 + $0xb0] sm:$0xff] %v1967
        %2004 = vst [vmem:[%s215 + $0xb8] sm:$0xff] %v1968
        %2005 = vst [vmem:[%s215 + $0xc0] sm:$0xff] %v1969
        %2006 = vst [vmem:[%s215 + $0xc8] sm:$0xff] %v1970
        %2007 = vst [vmem:[%s215 + $0xd0] sm:$0xff] %v1971
        %2008 = vst [vmem:[%s215 + $0xd8] sm:$0xff] %v1972
        %2009 = vst [vmem:[%s215 + $0xe0] sm:$0xff] %v1973
        %2010 = vst [vmem:[%s215 + $0xe8] sm:$0xff] %v1974
        %2011 = vst [vmem:[%s215 + $0xf0] sm:$0xff] %v1975
        %2012 = vst [vmem:[%s215 + $0xf8] sm:$0xff] %v1976
        %2013 = vst [vmem:[%s215 + $0x100] sm:$0xff] %v1977
        %2014 = vst [vmem:[%s215 + $0x108] sm:$0xff] %v1978
        %2015 = vst [vmem:[%s215 + $0x110] sm:$0xff] %v1979
        %2016 = vst [vmem:[%s215 + $0x118] sm:$0xff] %v1980
        %s2017 = sand.u32 %s118, 1
        %s2018 = scalar_lea.sflag [#allocation4], %s2017
        %s2019 = sand.u32 %s118, 1
        %s2020 = smul.addr %s2019, 288
        %s2021 = scalar_lea.vmem [#allocation5], %s2020
        // Predicated region
        $region41: #{tpu_custom_call.1} parent=35 // pred_check
          %p2022 = pneg %p128
        $region42: #{tpu_custom_call.1} parent=35 // pred_check_branch
          %2024 = sbr.rel (%p2022) target = $region44
        $region43: #{tpu_custom_call.1} parent=35 // pred_region
          %s2025 = smul.u32 36, %s21
          %s2027 = ssub.s32 4608, 4608
          %2028 = vsyncadd %s2018, %s2027
          %s2029 = smul.addr %s2025, 128
          %s2030 = scalar_lea.hbm %s4, %s2029
          %s2031 = sshll.u32 %s2021, 4
          %s2032 = int_to_ptr.vmem [resolvable:$true] %s2031
          %2037 = dma.vmem_to_hbm [thread:$0]  %s2032, 4608, %s2030, %s2018, 128, 128, 8
        $region44: #{tpu_custom_call.1} parent=35 // pred_fallthru
          _
      $region36: #{tpu_custom_call.1} parent=5 // pred_fallthru
        _
      %p2038 = scmp.le.s32.totalorder 2, %s16
      // Predicated region
      $region45: #{tpu_custom_call.1} parent=5 // pred_check
        %p2039 = pneg %p2038
      $region46: #{tpu_custom_call.1} parent=5 // pred_check_branch
        %2041 = sbr.rel (%p2039) target = $region48
      $region47: #{tpu_custom_call.1} parent=5 // pred_region
        %s2042 = ssub.s32 %s16, 2
        // Predicated region
        $region49: #{tpu_custom_call.1} parent=47 // pred_check
          %p2043 = pneg %p134
        $region50: #{tpu_custom_call.1} parent=47 // pred_check_branch
          %2045 = sbr.rel (%p2043) target = $region52
        $region51: #{tpu_custom_call.1} parent=47 // pred_region
          %s2046 = sand.u32 %s119, 1
          %s2047 = scalar_lea.sflag [#allocation4], %s2046
          %s2048 = sand.u32 %s119, 1
          %s2049 = smul.addr %s2048, 288
          %s2050 = scalar_lea.vmem [#allocation5], %s2049
          %2051 = dma.done %s2047, 4608
        $region52: #{tpu_custom_call.1} parent=47 // pred_fallthru
          _
      $region48: #{tpu_custom_call.1} parent=5 // pred_fallthru
        _
    $region6: #{tpu_custom_call.1} parent=1 // loop_footer
      %s20 = sadd.s32 1, %s16
    $region7: #{tpu_custom_call.1} parent=1 // loop_footer_branch
      %15 = sbr.rel target = $region3
    $region8: #{tpu_custom_call.1} parent=1 // loop_exit
      _
    %2052 = vsyncpa [#allocation3], 1
    %s2053 = scalar_lea.sflag [#allocation3], 1
    %2054 = vsyncpa %s2053, 1
    %2055 = vsyncpa [#allocation4], 1
    %s2056 = scalar_lea.sflag [#allocation4], 1
    %2057 = vsyncpa %s2056, 1

// kernel: tpu_custom_call.1
$region0: #{tpu_custom_call.1}
  #allocation0 [shape = 'u32[]', space=smem, size = 0x4, offset = 0x4, fixed_abs, tag = 'smem constant byte address 0x4 - core index']
  #allocation1 [shape = 'u32[144,128]{1,0:T(1,128)}', space=vmem, size = 0x12000, scoped, tag = 'internal scratch']
  %s0 = inlined_call_operand.vmem [shape: bf16[640,24], index: 0, kind: input, shape index: {}]
  %s1 = inlined_call_operand.vmem [shape: bf16[3,24,128], index: 1, kind: input, shape index: {}]
  %s2 = inlined_call_operand.vmem [shape: f32[1,128], index: 2, kind: input, shape index: {}]
  %s3 = inlined_call_operand.hbm [shape: f32[576,128], index: 3, kind: input, shape index: {}]
  %s4 = inlined_call_operand.hbm [shape: f32[576,128], index: 4, kind: output, shape index: {}]
  %s5 = sld [smem:[#allocation0]]
  $region53: #{tpu_custom_call.1} parent=0
    _
  %s7 = ssub.s32 1, %s5
  %s8 = scalar_select 0, %s7, %s5
  $region1: #{tpu_custom_call.1} parent=0
    #allocation2 [shape = 'u8[294912]{0}', space=vmem, size = 0x48000, scoped, tag = 'input window, operand 3']
    #allocation3 [shape = 's32[2]{0}', space=sflag, size = 0x8, scoped, tag = 'scoped memory for tpu_custom_call.1']
    #allocation4 [shape = 's32[2]{0}', space=sflag, size = 0x8, scoped, tag = 'scoped memory for tpu_custom_call.1']
    #allocation5 [shape = 'u8[294912]{0}', space=vmem, size = 0x48000, scoped, tag = 'output window, operand 0']
    %9 = vsyncpa [#allocation3], 0
    %s10 = scalar_lea.sflag [#allocation3], 1
    %11 = vsyncpa %s10, 0
    %12 = vsyncpa [#allocation4], 0
    %s13 = scalar_lea.sflag [#allocation4], 1
    %14 = vsyncpa %s13, 0
    loop: start=0, step=1, limit=4
    $region2: #{tpu_custom_call.1} parent=1 // loop_pre_header
      _
    $region3: #{tpu_custom_call.1} parent=1 // loop_header
      %s16 = sphi 0, %s20
      %p17 = scmp.ge.s32.totalorder %s16, 4
      %s24 = sphi 0, %s24
      %s26 = sphi 0, %s24
      %s27 = sphi 0, %s26
      %s41 = sphi 0, %s27
      %s45 = sphi 0, %s45
      %s47 = sphi 0, %s45
      %s48 = sphi 0, %s47
      %s62 = sphi 0, %s48
      %s66 = sphi 0, %s66
      %s68 = sphi 0, %s66
      %s69 = sphi 0, %s68
      %s83 = sphi 0, %s69
      %s89 = sphi 0, %s91
      %s92 = sphi 0, %s89
      %s93 = sphi 0, %s92
      %s109 = sphi 0, %s93
      %s115 = sphi 0, %s117
      %s118 = sphi 0, %s115
      %s119 = sphi 0, %s118
      %s135 = sphi 0, %s119
    $region4: #{tpu_custom_call.1} parent=1 // loop_header_branch
      %19 = sbr.rel (%p17) target = $region8
    $region5: #{tpu_custom_call.1} parent=1 // loop_body
      %s21 = ssub.s32 %s16, 1
      %s22 = ssub.s32 %s16, 2
      %s23 = sadd.s32 %s16, 1
      %s25 = sadd.s32 %s24, 1
      %p28 = scmp.eq.s32.totalorder %s16, 1
      %p29 = scmp.ne.s32.totalorder %s24, %s26
      %p30 = scmp.eq.s32.totalorder %s16, 0
      %p31 = por %p29, %p30
      %p32 = scmp.ne.s32.totalorder %s24, %s26
      %p33 = scmp.eq.s32.totalorder %s21, 1
      %p34 = por %p32, %p33
      %p35 = scmp.ne.s32.totalorder %s26, %s27
      %p36 = scmp.eq.s32.totalorder %s21, 0
      %p37 = por %p35, %p36
      %p38 = scmp.ne.s32.totalorder %s26, %s27
      %p39 = scmp.eq.s32.totalorder %s22, 1
      %p40 = por %p38, %p39
      %p42 = scmp.ne.s32.totalorder %s27, %s41
      %p43 = scmp.eq.s32.totalorder %s22, 0
      %p44 = por %p42, %p43
      %s46 = sadd.s32 %s45, 1
      %p49 = scmp.eq.s32.totalorder %s16, 1
      %p50 = scmp.ne.s32.totalorder %s45, %s47
      %p51 = scmp.eq.s32.totalorder %s16, 0
      %p52 = por %p50, %p51
      %p53 = scmp.ne.s32.totalorder %s45, %s47
      %p54 = scmp.eq.s32.totalorder %s21, 1
      %p55 = por %p53, %p54
      %p56 = scmp.ne.s32.totalorder %s47, %s48
      %p57 = scmp.eq.s32.totalorder %s21, 0
      %p58 = por %p56, %p57
      %p59 = scmp.ne.s32.totalorder %s47, %s48
      %p60 = scmp.eq.s32.totalorder %s22, 1
      %p61 = por %p59, %p60
      %p63 = scmp.ne.s32.totalorder %s48, %s62
      %p64 = scmp.eq.s32.totalorder %s22, 0
      %p65 = por %p63, %p64
      %s67 = sadd.s32 %s66, 1
      %p70 = scmp.eq.s32.totalorder %s16, 1
      %p71 = scmp.ne.s32.totalorder %s66, %s68
      %p72 = scmp.eq.s32.totalorder %s16, 0
      %p73 = por %p71, %p72
      %p74 = scmp.ne.s32.totalorder %s66, %s68
      %p75 = scmp.eq.s32.totalorder %s21, 1
      %p76 = por %p74, %p75
      %p77 = scmp.ne.s32.totalorder %s68, %s69
      %p78 = scmp.eq.s32.totalorder %s21, 0
      %p79 = por %p77, %p78
      %p80 = scmp.ne.s32.totalorder %s68, %s69
      %p81 = scmp.eq.s32.totalorder %s22, 1
      %p82 = por %p80, %p81
      %p84 = scmp.ne.s32.totalorder %s69, %s83
      %p85 = scmp.eq.s32.totalorder %s22, 0
      %p86 = por %p84, %p85
      %s87 = ssub.s32 %s16, %s23
      %p88 = scmp.eq.s32.totalorder %s87, 0
      %s90 = sadd.s32 %s89, 1
      %s91 = scalar_select %p88, %s89, %s90
      %p94 = pneg %p88
      %p95 = scmp.eq.s32.totalorder %s16, 1
      %p96 = por %p94, %p95
      %p97 = scmp.ne.s32.totalorder %s89, %s92
      %p98 = scmp.eq.s32.totalorder %s16, 0
      %p99 = por %p97, %p98
      %p100 = scmp.ne.s32.totalorder %s89, %s92
      %p101 = scmp.eq.s32.totalorder %s21, 1
      %p102 = por %p100, %p101
      %p103 = scmp.ne.s32.totalorder %s92, %s93
      %p104 = scmp.eq.s32.totalorder %s21, 0
      %p105 = por %p103, %p104
      %p106 = scmp.ne.s32.totalorder %s92, %s93
      %p107 = scmp.eq.s32.totalorder %s22, 1
      %p108 = por %p106, %p107
      %p110 = scmp.ne.s32.totalorder %s93, %s109
      %p111 = scmp.eq.s32.totalorder %s22, 0
      %p112 = por %p110, %p111
      %s113 = ssub.s32 %s16, %s23
      %p114 = scmp.eq.s32.totalorder %s113, 0
      %s116 = sadd.s32 %s115, 1
      %s117 = scalar_select %p114, %s115, %s116
      %p120 = pneg %p114
      %p121 = scmp.eq.s32.totalorder %s16, 1
      %p122 = por %p120, %p121
      %p123 = scmp.ne.s32.totalorder %s115, %s118
      %p124 = scmp.eq.s32.totalorder %s16, 0
      %p125 = por %p123, %p124
      %p126 = scmp.ne.s32.totalorder %s115, %s118
      %p127 = scmp.eq.s32.totalorder %s21, 1
      %p128 = por %p126, %p127
      %p129 = scmp.ne.s32.totalorder %s118, %s119
      %p130 = scmp.eq.s32.totalorder %s21, 0
      %p131 = por %p129, %p130
      %p132 = scmp.ne.s32.totalorder %s118, %s119
      %p133 = scmp.eq.s32.totalorder %s22, 1
      %p134 = por %p132, %p133
      %p136 = scmp.ne.s32.totalorder %s119, %s135
      %p137 = scmp.eq.s32.totalorder %s22, 0
      %p138 = por %p136, %p137
      %p139 = scmp.le.s32.totalorder 1, %s16
      %p140 = scmp.lt.s32.totalorder %s16, 3
      %p141 = pnand %p139, %p140
      %p142 = pneg %p141
      // Predicated region
      $region9: #{tpu_custom_call.1} parent=5 // pred_check
        _
      $region10: #{tpu_custom_call.1} parent=5 // pred_check_branch
        %144 = sbr.rel (%p141) target = $region12
      $region11: #{tpu_custom_call.1} parent=5 // pred_region
        %s145 = ssub.s32 %s16, 1
        // Predicated region
        $region13: #{tpu_custom_call.1} parent=11 // pred_check
          %p146 = pneg %p37
        $region14: #{tpu_custom_call.1} parent=11 // pred_check_branch
          %148 = sbr.rel (%p146) target = $region16
        $region15: #{tpu_custom_call.1} parent=11 // pred_region
          _
        $region16: #{tpu_custom_call.1} parent=11 // pred_fallthru
          _
        // Predicated region
        $region17: #{tpu_custom_call.1} parent=11 // pred_check
          %p149 = pneg %p58
        $region18: #{tpu_custom_call.1} parent=11 // pred_check_branch
          %151 = sbr.rel (%p149) target = $region20
        $region19: #{tpu_custom_call.1} parent=11 // pred_region
          _
        $region20: #{tpu_custom_call.1} parent=11 // pred_fallthru
          _
        // Predicated region
        $region21: #{tpu_custom_call.1} parent=11 // pred_check
          %p152 = pneg %p79
        $region22: #{tpu_custom_call.1} parent=11 // pred_check_branch
          %154 = sbr.rel (%p152) target = $region24
        $region23: #{tpu_custom_call.1} parent=11 // pred_region
          _
        $region24: #{tpu_custom_call.1} parent=11 // pred_fallthru
          _
      $region12: #{tpu_custom_call.1} parent=5 // pred_fallthru
        _
      %p155 = scmp.lt.s32.totalorder %s16, 2
      // Predicated region
      $region25: #{tpu_custom_call.1} parent=5 // pred_check
        %p156 = pneg %p155
      $region26: #{tpu_custom_call.1} parent=5 // pred_check_branch
        %158 = sbr.rel (%p156) target = $region28
      $region27: #{tpu_custom_call.1} parent=5 // pred_region
        // Predicated region
        $region29: #{tpu_custom_call.1} parent=27 // pred_check
          %p159 = pneg %p99
        $region30: #{tpu_custom_call.1} parent=27 // pred_check_branch
          %161 = sbr.rel (%p159) target = $region32
        $region31: #{tpu_custom_call.1} parent=27 // pred_region
          %s162 = sand.u32 %s89, 1
          %s163 = scalar_lea.sflag [#allocation3], %s162
          %s164 = sand.u32 %s89, 1
          %s165 = smul.addr %s164, 288
          %s166 = scalar_lea.vmem [#allocation2], %s165
          %s167 = smul.u32 36, %s16
          %s169 = ssub.s32 4608, 4608
          %170 = vsyncadd %s163, %s169
          %s171 = smul.addr %s167, 128
          %s172 = scalar_lea.hbm %s3, %s171
          %s173 = sshll.u32 %s166, 4
          %s174 = int_to_ptr.vmem [resolvable:$true] %s173
          %179 = dma.hbm_to_vmem [thread:$0]  %s172, 4608, %s174, %s163, 128, 128, 8
        $region32: #{tpu_custom_call.1} parent=27 // pred_fallthru
          _
      $region28: #{tpu_custom_call.1} parent=5 // pred_fallthru
        _
      %p180 = scmp.le.s32.totalorder 1, %s16
      %p181 = scmp.lt.s32.totalorder %s16, 3
      %p182 = pnand %p180, %p181
      %p183 = pneg %p182
      // Predicated region
      $region33: #{tpu_custom_call.1} parent=5 // pred_check
        _
      $region34: #{tpu_custom_call.1} parent=5 // pred_check_branch
        %185 = sbr.rel (%p182) target = $region36
      $region35: #{tpu_custom_call.1} parent=5 // pred_region
        %s186 = ssub.s32 %s16, 1
        %s187 = sand.u32 %s92, 1
        %s188 = scalar_lea.sflag [#allocation3], %s187
        %s189 = sand.u32 %s92, 1
        %s190 = smul.addr %s189, 288
        %s191 = scalar_lea.vmem [#allocation2], %s190
        // Predicated region
        $region37: #{tpu_custom_call.1} parent=35 // pred_check
          %p192 = pneg %p105
        $region38: #{tpu_custom_call.1} parent=35 // pred_check_branch
          %194 = sbr.rel (%p192) target = $region40
        $region39: #{tpu_custom_call.1} parent=35 // pred_region
          %195 = dma.done %s188, 4608
        $region40: #{tpu_custom_call.1} parent=35 // pred_fallthru
          _
        %p196 = pneg %p37
        %p197 = pneg %p34
        %p198 = pneg %p58
        %p199 = pneg %p55
        %p200 = pneg %p79
        %p201 = pneg %p76
        %s202 = sand.u32 %s92, 1
        %s203 = scalar_lea.sflag [#allocation3], %s202
        %s204 = sand.u32 %s92, 1
        %s205 = smul.addr %s204, 288
        %s206 = scalar_lea.vmem [#allocation2], %s205
        %p207 = pneg %p105
        %p208 = pneg %p102
        %p209 = pneg %p131
        %p210 = pneg %p128
        %s211 = sand.u32 %s118, 1
        %s212 = scalar_lea.sflag [#allocation4], %s211
        %s213 = sand.u32 %s118, 1
        %s214 = smul.addr %s213, 288
        %s215 = scalar_lea.vmem [#allocation5], %s214
        %s216 = smul.u32 36, %s21
        %s217 = smul.u32 36, %s21
        %s219 = smul.u32 %s21, 288
        %s220 = sshra.s32 %s219, 3
        %s221 = sand.u32 %s219, 7
        %s222 = smul.addr %s220, 4
        %s223 = scalar_lea.vmem %s0, %s222
        %v224 = vld [vmem:[%s223] sm:$0xf]
        %v225 = vld [vmem:[%s223 + $0x4] sm:$0xf]
        %v226 = vld [vmem:[%s223 + $0x8] sm:$0xf]
        %v227 = vld [vmem:[%s223 + $0xc] sm:$0xf]
        %v228 = vld [vmem:[%s223 + $0x10] sm:$0xf]
        %v229 = vld [vmem:[%s223 + $0x14] sm:$0xf]
        %v230 = vld [vmem:[%s223 + $0x18] sm:$0xf]
        %v231 = vld [vmem:[%s223 + $0x1c] sm:$0xf]
        %v232 = vld [vmem:[%s223 + $0x20] sm:$0xf]
        %v233 = vld [vmem:[%s223 + $0x24] sm:$0xf]
        %v234 = vld [vmem:[%s223 + $0x28] sm:$0xf]
        %v235 = vld [vmem:[%s223 + $0x2c] sm:$0xf]
        %v236 = vld [vmem:[%s223 + $0x30] sm:$0xf]
        %v237 = vld [vmem:[%s223 + $0x34] sm:$0xf]
        %v238 = vld [vmem:[%s223 + $0x38] sm:$0xf]
        %v239 = vld [vmem:[%s223 + $0x3c] sm:$0xf]
        %v240 = vld [vmem:[%s223 + $0x40] sm:$0xf]
        %v241 = vld [vmem:[%s223 + $0x44] sm:$0xf]
        %v242 = vld [vmem:[%s223 + $0x48] sm:$0xf]
        %v243 = vld [vmem:[%s223 + $0x4c] sm:$0xf]
        %v244 = vld [vmem:[%s223 + $0x50] sm:$0xf]
        %v245 = vld [vmem:[%s223 + $0x54] sm:$0xf]
        %v246 = vld [vmem:[%s223 + $0x58] sm:$0xf]
        %v247 = vld [vmem:[%s223 + $0x5c] sm:$0xf]
        %v248 = vld [vmem:[%s223 + $0x60] sm:$0xf]
        %v249 = vld [vmem:[%s223 + $0x64] sm:$0xf]
        %v250 = vld [vmem:[%s223 + $0x68] sm:$0xf]
        %v251 = vld [vmem:[%s223 + $0x6c] sm:$0xf]
        %v252 = vld [vmem:[%s223 + $0x70] sm:$0xf]
        %v253 = vld [vmem:[%s223 + $0x74] sm:$0xf]
        %v254 = vld [vmem:[%s223 + $0x78] sm:$0xf]
        %v255 = vld [vmem:[%s223 + $0x7c] sm:$0xf]
        %v256 = vld [vmem:[%s223 + $0x80] sm:$0xf]
        %v257 = vld [vmem:[%s223 + $0x84] sm:$0xf]
        %v258 = vld [vmem:[%s223 + $0x88] sm:$0xf]
        %v259 = vld [vmem:[%s223 + $0x8c] sm:$0xf]
        %v260 = vld [vmem:[%s1] sm:$0xf]
        %v261 = vld [vmem:[%s1 + $0x4] sm:$0xf]
        %v262 = vld [vmem:[%s1 + $0x8] sm:$0xf]
        %s263 = sadd.s32 %s219, 32
        %s264 = sshra.s32 %s263, 3
        %s265 = sand.u32 %s263, 7
        %s266 = smul.addr %s264, 4
        %s267 = scalar_lea.vmem %s0, %s266
        %v268 = vld [vmem:[%s267] sm:$0xf]
        %v269 = vld [vmem:[%s267 + $0x4] sm:$0xf]
        %v270 = vld [vmem:[%s267 + $0x8] sm:$0xf]
        %v271 = vld [vmem:[%s267 + $0xc] sm:$0xf]
        %v272 = vld [vmem:[%s267 + $0x10] sm:$0xf]
        %v273 = vld [vmem:[%s267 + $0x14] sm:$0xf]
        %v274 = vld [vmem:[%s267 + $0x18] sm:$0xf]
        %v275 = vld [vmem:[%s267 + $0x1c] sm:$0xf]
        %v276 = vld [vmem:[%s267 + $0x20] sm:$0xf]
        %v277 = vld [vmem:[%s267 + $0x24] sm:$0xf]
        %v278 = vld [vmem:[%s267 + $0x28] sm:$0xf]
        %v279 = vld [vmem:[%s267 + $0x2c] sm:$0xf]
        %v280 = vld [vmem:[%s267 + $0x30] sm:$0xf]
        %v281 = vld [vmem:[%s267 + $0x34] sm:$0xf]
        %v282 = vld [vmem:[%s267 + $0x38] sm:$0xf]
        %v283 = vld [vmem:[%s267 + $0x3c] sm:$0xf]
        %v284 = vld [vmem:[%s267 + $0x40] sm:$0xf]
        %v285 = vld [vmem:[%s267 + $0x44] sm:$0xf]
        %v286 = vld [vmem:[%s267 + $0x48] sm:$0xf]
        %v287 = vld [vmem:[%s267 + $0x4c] sm:$0xf]
        %v288 = vld [vmem:[%s267 + $0x50] sm:$0xf]
        %v289 = vld [vmem:[%s267 + $0x54] sm:$0xf]
        %v290 = vld [vmem:[%s267 + $0x58] sm:$0xf]
        %v291 = vld [vmem:[%s267 + $0x5c] sm:$0xf]
        %v292 = vld [vmem:[%s267 + $0x60] sm:$0xf]
        %v293 = vld [vmem:[%s267 + $0x64] sm:$0xf]
        %v294 = vld [vmem:[%s267 + $0x68] sm:$0xf]
        %v295 = vld [vmem:[%s267 + $0x6c] sm:$0xf]
        %v296 = vld [vmem:[%s267 + $0x70] sm:$0xf]
        %v297 = vld [vmem:[%s267 + $0x74] sm:$0xf]
        %v298 = vld [vmem:[%s267 + $0x78] sm:$0xf]
        %v299 = vld [vmem:[%s267 + $0x7c] sm:$0xf]
        %v300 = vld [vmem:[%s267 + $0x80] sm:$0xf]
        %v301 = vld [vmem:[%s267 + $0x84] sm:$0xf]
        %v302 = vld [vmem:[%s267 + $0x88] sm:$0xf]
        %v303 = vld [vmem:[%s267 + $0x8c] sm:$0xf]
        %s304 = scalar_lea.vmem %s1, 12
        %v305 = vld [vmem:[%s304] sm:$0xf]
        %v306 = vld [vmem:[%s304 + $0x4] sm:$0xf]
        %v307 = vld [vmem:[%s304 + $0x8] sm:$0xf]
        %v344 = vunpack.c.l.b16 %v268
        %v345 = vunpack.c.l.b16 %v269
        %v346 = vunpack.c.l.b16 %v270
        %v347 = vunpack.c.l.b16 %v271
        %v348 = vunpack.c.l.b16 %v272
        %v349 = vunpack.c.l.b16 %v273
        %v350 = vunpack.c.l.b16 %v274
        %v351 = vunpack.c.l.b16 %v275
        %v352 = vunpack.c.l.b16 %v276
        %v353 = vunpack.c.l.b16 %v277
        %v354 = vunpack.c.l.b16 %v278
        %v355 = vunpack.c.l.b16 %v279
        %v356 = vunpack.c.l.b16 %v280
        %v357 = vunpack.c.l.b16 %v281
        %v358 = vunpack.c.l.b16 %v282
        %v359 = vunpack.c.l.b16 %v283
        %v360 = vunpack.c.l.b16 %v284
        %v361 = vunpack.c.l.b16 %v285
        %v362 = vunpack.c.l.b16 %v286
        %v363 = vunpack.c.l.b16 %v287
        %v364 = vunpack.c.l.b16 %v288
        %v365 = vunpack.c.l.b16 %v289
        %v366 = vunpack.c.l.b16 %v290
        %v367 = vunpack.c.l.b16 %v291
        %v368 = vunpack.c.l.b16 %v292
        %v369 = vunpack.c.l.b16 %v293
        %v370 = vunpack.c.l.b16 %v294
        %v371 = vunpack.c.l.b16 %v295
        %v372 = vunpack.c.l.b16 %v296
        %v373 = vunpack.c.l.b16 %v297
        %v374 = vunpack.c.l.b16 %v298
        %v375 = vunpack.c.l.b16 %v299
        %v376 = vunpack.c.l.b16 %v300
        %v377 = vunpack.c.l.b16 %v301
        %v378 = vunpack.c.l.b16 %v302
        %v379 = vunpack.c.l.b16 %v303
        %v380 = vpack.c.b16 %v345, %v344
        %v381 = vpack.c.b16 %v347, %v346
        %v382 = vpack.c.b16 %v349, %v348
        %v383 = vpack.c.b16 %v351, %v350
        %v384 = vpack.c.b16 %v353, %v352
        %v385 = vpack.c.b16 %v355, %v354
        %v386 = vpack.c.b16 %v357, %v356
        %v387 = vpack.c.b16 %v359, %v358
        %v388 = vpack.c.b16 %v361, %v360
        %v389 = vpack.c.b16 %v363, %v362
        %v390 = vpack.c.b16 %v365, %v364
        %v391 = vpack.c.b16 %v367, %v366
        %v392 = vpack.c.b16 %v369, %v368
        %v393 = vpack.c.b16 %v371, %v370
        %v394 = vpack.c.b16 %v373, %v372
        %v395 = vpack.c.b16 %v375, %v374
        %v396 = vpack.c.b16 %v377, %v376
        %v397 = vpack.c.b16 %v379, %v378
        %v401 = vunpack.c.l.b16 %v305
        %v402 = vunpack.c.l.b16 %v306
        %v403 = vunpack.c.l.b16 %v307
        %v404 = vpack.c.b16 %v402, %v401
        %v405 = vpack.c.b16 %v403, %v403
        %vm407 = vcmask 195584
        %v409 = vsel %vm407, %v380, 0
        %v412 = vsel %vm407, %v381, 0
        %v415 = vsel %vm407, %v382, 0
        %v418 = vsel %vm407, %v383, 0
        %v421 = vsel %vm407, %v384, 0
        %v424 = vsel %vm407, %v385, 0
        %v427 = vsel %vm407, %v386, 0
        %v430 = vsel %vm407, %v387, 0
        %v433 = vsel %vm407, %v388, 0
        %v436 = vsel %vm407, %v389, 0
        %v439 = vsel %vm407, %v390, 0
        %v442 = vsel %vm407, %v391, 0
        %v445 = vsel %vm407, %v392, 0
        %v448 = vsel %vm407, %v393, 0
        %v451 = vsel %vm407, %v394, 0
        %v454 = vsel %vm407, %v395, 0
        %v457 = vsel %vm407, %v396, 0
        %v460 = vsel %vm407, %v397, 0
        %vm462 = vcmask 1043456
        %v464 = vsel %vm462, %v405, 0
        %466 = vmatprep.subr.bf16.mxu0 0
        %467 = vmatpush1.bf16.msra.mxu0 %v404
        %468 = vmatprep.subr.bf16.mxu0 0
        %469 = vmatpush1.bf16.msra.mxu0 %v464
        %470 = vmatprep.subr.bf16.mxu0 0
        %471 = vmatpush1.bf16.msra.mxu0 0
        %472 = vmatprep.subr.bf16.mxu0 0
        %473 = vmatpush1.bf16.msra.mxu0 0
        %474 = vmatprep.subr.bf16.mxu0 0
        %475 = vmatpush1.bf16.msra.mxu0 0
        %476 = vmatprep.subr.bf16.mxu0 0
        %477 = vmatpush1.bf16.msra.mxu0 0
        %478 = vmatprep.subr.bf16.mxu0 0
        %479 = vmatpush1.bf16.msra.mxu0 0
        %480 = vmatprep.subr.bf16.mxu0 0
        %481 = vmatpush1.bf16.msra.mxu0 0
        %482 = vmatprep.subr.bf16.mxu0 0
        %483 = vmatpush1.bf16.msra.mxu0 0
        %484 = vmatprep.subr.bf16.mxu0 0
        %485 = vmatpush1.bf16.msra.mxu0 0
        %486 = vmatprep.subr.bf16.mxu0 0
        %487 = vmatpush1.bf16.msra.mxu0 0
        %488 = vmatprep.subr.bf16.mxu0 0
        %489 = vmatpush1.bf16.msra.mxu0 0
        %490 = vmatprep.subr.bf16.mxu0 0
        %491 = vmatpush1.bf16.msra.mxu0 0
        %492 = vmatprep.subr.bf16.mxu0 0
        %493 = vmatpush1.bf16.msra.mxu0 0
        %494 = vmatprep.subr.bf16.mxu0 0
        %495 = vmatpush1.bf16.msra.mxu0 0
        %496 = vmatprep.subr.bf16.mxu0 0
        %497 = vmatpush1.bf16.msra.mxu0 0
        %498 = vmatprep.mubr.bf16.mxu0 0
        %499 = vmatmul.mubr.bf16.gmra.mrb[0].mxu0 %v409
        %v500 = vpop.f32.mrb[0].mxu0
        %v501 = vadd.f32 0.0, %v500
        %v502 = vpop.f32.mrb[0].mxu0
        %v503 = vpop.f32.mrb[0].mxu0
        %v504 = vadd.f32 0.0, %v503
        %v505 = vpop.f32.mrb[0].mxu0
        %506 = vmatprep.mubr.bf16.mxu0 0
        %507 = vmatmul.mubr.bf16.gmra.mrb[0].mxu0 %v412
        %v508 = vpop.f32.mrb[0].mxu0
        %v509 = vadd.f32 0.0, %v508
        %v510 = vpop.f32.mrb[0].mxu0
        %v511 = vpop.f32.mrb[0].mxu0
        %v512 = vadd.f32 0.0, %v511
        %v513 = vpop.f32.mrb[0].mxu0
        %514 = vmatprep.mubr.bf16.mxu0 0
        %515 = vmatmul.mubr.bf16.gmra.mrb[0].mxu0 %v415
        %v516 = vpop.f32.mrb[0].mxu0
        %v517 = vadd.f32 0.0, %v516
        %v518 = vpop.f32.mrb[0].mxu0
        %v519 = vpop.f32.mrb[0].mxu0
        %v520 = vadd.f32 0.0, %v519
        %v521 = vpop.f32.mrb[0].mxu0
        %522 = vmatprep.mubr.bf16.mxu0 0
        %523 = vmatmul.mubr.bf16.gmra.mrb[0].mxu0 %v418
        %v524 = vpop.f32.mrb[0].mxu0
        %v525 = vadd.f32 0.0, %v524
        %v526 = vpop.f32.mrb[0].mxu0
        %v527 = vpop.f32.mrb[0].mxu0
        %v528 = vadd.f32 0.0, %v527
        %v529 = vpop.f32.mrb[0].mxu0
        %530 = vmatprep.mubr.bf16.mxu0 0
        %531 = vmatmul.mubr.bf16.gmra.mrb[0].mxu0 %v421
        %v532 = vpop.f32.mrb[0].mxu0
        %v533 = vadd.f32 0.0, %v532
        %v534 = vpop.f32.mrb[0].mxu0
        %v535 = vpop.f32.mrb[0].mxu0
        %v536 = vadd.f32 0.0, %v535
        %v537 = vpop.f32.mrb[0].mxu0
        %538 = vmatprep.mubr.bf16.mxu0 0
        %539 = vmatmul.mubr.bf16.gmra.mrb[0].mxu0 %v424
        %v540 = vpop.f32.mrb[0].mxu0
        %v541 = vadd.f32 0.0, %v540
        %v542 = vpop.f32.mrb[0].mxu0
        %v543 = vpop.f32.mrb[0].mxu0
        %v544 = vadd.f32 0.0, %v543
        %v545 = vpop.f32.mrb[0].mxu0
        %546 = vmatprep.mubr.bf16.mxu0 0
        %547 = vmatmul.mubr.bf16.gmra.mrb[0].mxu0 %v427
        %v548 = vpop.f32.mrb[0].mxu0
        %v549 = vadd.f32 0.0, %v548
        %v550 = vpop.f32.mrb[0].mxu0
        %v551 = vpop.f32.mrb[0].mxu0
        %v552 = vadd.f32 0.0, %v551
        %v553 = vpop.f32.mrb[0].mxu0
        %554 = vmatprep.mubr.bf16.mxu0 0
        %555 = vmatmul.mubr.bf16.gmra.mrb[0].mxu0 %v430
        %v556 = vpop.f32.mrb[0].mxu0
        %v557 = vadd.f32 0.0, %v556
        %v558 = vpop.f32.mrb[0].mxu0
        %v559 = vpop.f32.mrb[0].mxu0
        %v560 = vadd.f32 0.0, %v559
        %v561 = vpop.f32.mrb[0].mxu0
        %562 = vmatprep.mubr.bf16.mxu0 0
        %563 = vmatmul.mubr.bf16.gmra.mrb[0].mxu0 %v433
        %v564 = vpop.f32.mrb[0].mxu0
        %v565 = vadd.f32 0.0, %v564
        %v566 = vpop.f32.mrb[0].mxu0
        %v567 = vpop.f32.mrb[0].mxu0
        %v568 = vadd.f32 0.0, %v567
        %v569 = vpop.f32.mrb[0].mxu0
        %570 = vmatprep.mubr.bf16.mxu0 0
        %571 = vmatmul.mubr.bf16.gmra.mrb[0].mxu0 %v436
        %v572 = vpop.f32.mrb[0].mxu0
        %v573 = vadd.f32 0.0, %v572
        %v574 = vpop.f32.mrb[0].mxu0
        %v575 = vpop.f32.mrb[0].mxu0
        %v576 = vadd.f32 0.0, %v575
        %v577 = vpop.f32.mrb[0].mxu0
        %578 = vmatprep.mubr.bf16.mxu0 0
        %579 = vmatmul.mubr.bf16.gmra.mrb[0].mxu0 %v439
        %v580 = vpop.f32.mrb[0].mxu0
        %v581 = vadd.f32 0.0, %v580
        %v582 = vpop.f32.mrb[0].mxu0
        %v583 = vpop.f32.mrb[0].mxu0
        %v584 = vadd.f32 0.0, %v583
        %v585 = vpop.f32.mrb[0].mxu0
        %586 = vmatprep.mubr.bf16.mxu0 0
        %587 = vmatmul.mubr.bf16.gmra.mrb[0].mxu0 %v442
        %v588 = vpop.f32.mrb[0].mxu0
        %v589 = vadd.f32 0.0, %v588
        %v590 = vpop.f32.mrb[0].mxu0
        %v591 = vpop.f32.mrb[0].mxu0
        %v592 = vadd.f32 0.0, %v591
        %v593 = vpop.f32.mrb[0].mxu0
        %594 = vmatprep.mubr.bf16.mxu0 0
        %595 = vmatmul.mubr.bf16.gmra.mrb[0].mxu0 %v445
        %v596 = vpop.f32.mrb[0].mxu0
        %v597 = vadd.f32 0.0, %v596
        %v598 = vpop.f32.mrb[0].mxu0
        %v599 = vpop.f32.mrb[0].mxu0
        %v600 = vadd.f32 0.0, %v599
        %v601 = vpop.f32.mrb[0].mxu0
        %602 = vmatprep.mubr.bf16.mxu0 0
        %603 = vmatmul.mubr.bf16.gmra.mrb[0].mxu0 %v448
        %v604 = vpop.f32.mrb[0].mxu0
        %v605 = vadd.f32 0.0, %v604
        %v606 = vpop.f32.mrb[0].mxu0
        %v607 = vpop.f32.mrb[0].mxu0
        %v608 = vadd.f32 0.0, %v607
        %v609 = vpop.f32.mrb[0].mxu0
        %610 = vmatprep.mubr.bf16.mxu0 0
        %611 = vmatmul.mubr.bf16.gmra.mrb[0].mxu0 %v451
        %v612 = vpop.f32.mrb[0].mxu0
        %v613 = vadd.f32 0.0, %v612
        %v614 = vpop.f32.mrb[0].mxu0
        %v615 = vpop.f32.mrb[0].mxu0
        %v616 = vadd.f32 0.0, %v615
        %v617 = vpop.f32.mrb[0].mxu0
        %618 = vmatprep.mubr.bf16.mxu0 0
        %619 = vmatmul.mubr.bf16.gmra.mrb[0].mxu0 %v454
        %v620 = vpop.f32.mrb[0].mxu0
        %v621 = vadd.f32 0.0, %v620
        %v622 = vpop.f32.mrb[0].mxu0
        %v623 = vpop.f32.mrb[0].mxu0
        %v624 = vadd.f32 0.0, %v623
        %v625 = vpop.f32.mrb[0].mxu0
        %626 = vmatprep.mubr.bf16.mxu0 0
        %627 = vmatmul.mubr.bf16.gmra.mrb[0].mxu0 %v457
        %v628 = vpop.f32.mrb[0].mxu0
        %v629 = vadd.f32 0.0, %v628
        %v630 = vpop.f32.mrb[0].mxu0
        %v631 = vpop.f32.mrb[0].mxu0
        %v632 = vadd.f32 0.0, %v631
        %v633 = vpop.f32.mrb[0].mxu0
        %634 = vmatprep.mubr.bf16.mxu0 0
        %635 = vmatmul.mubr.bf16.gmra.mrb[0].mxu0 %v460
        %v636 = vpop.f32.mrb[0].mxu0
        %v637 = vadd.f32 0.0, %v636
        %v638 = vpop.f32.mrb[0].mxu0
        %v639 = vpop.f32.mrb[0].mxu0
        %v640 = vadd.f32 0.0, %v639
        %v641 = vpop.f32.mrb[0].mxu0
        %642 = vdwg.mxu0
        %v679 = vunpack.c.l.b16 %v224
        %v680 = vunpack.c.l.b16 %v225
        %v681 = vunpack.c.l.b16 %v226
        %v682 = vunpack.c.l.b16 %v227
        %v683 = vunpack.c.l.b16 %v228
        %v684 = vunpack.c.l.b16 %v229
        %v685 = vunpack.c.l.b16 %v230
        %v686 = vunpack.c.l.b16 %v231
        %v687 = vunpack.c.l.b16 %v232
        %v688 = vunpack.c.l.b16 %v233
        %v689 = vunpack.c.l.b16 %v234
        %v690 = vunpack.c.l.b16 %v235
        %v691 = vunpack.c.l.b16 %v236
        %v692 = vunpack.c.l.b16 %v237
        %v693 = vunpack.c.l.b16 %v238
        %v694 = vunpack.c.l.b16 %v239
        %v695 = vunpack.c.l.b16 %v240
        %v696 = vunpack.c.l.b16 %v241
        %v697 = vunpack.c.l.b16 %v242
        %v698 = vunpack.c.l.b16 %v243
        %v699 = vunpack.c.l.b16 %v244
        %v700 = vunpack.c.l.b16 %v245
        %v701 = vunpack.c.l.b16 %v246
        %v702 = vunpack.c.l.b16 %v247
        %v703 = vunpack.c.l.b16 %v248
        %v704 = vunpack.c.l.b16 %v249
        %v705 = vunpack.c.l.b16 %v250
        %v706 = vunpack.c.l.b16 %v251
        %v707 = vunpack.c.l.b16 %v252
        %v708 = vunpack.c.l.b16 %v253
        %v709 = vunpack.c.l.b16 %v254
        %v710 = vunpack.c.l.b16 %v255
        %v711 = vunpack.c.l.b16 %v256
        %v712 = vunpack.c.l.b16 %v257
        %v713 = vunpack.c.l.b16 %v258
        %v714 = vunpack.c.l.b16 %v259
        %v715 = vpack.c.b16 %v680, %v679
        %v716 = vpack.c.b16 %v682, %v681
        %v717 = vpack.c.b16 %v684, %v683
        %v718 = vpack.c.b16 %v686, %v685
        %v719 = vpack.c.b16 %v688, %v687
        %v720 = vpack.c.b16 %v690, %v689
        %v721 = vpack.c.b16 %v692, %v691
        %v722 = vpack.c.b16 %v694, %v693
        %v723 = vpack.c.b16 %v696, %v695
        %v724 = vpack.c.b16 %v698, %v697
        %v725 = vpack.c.b16 %v700, %v699
        %v726 = vpack.c.b16 %v702, %v701
        %v727 = vpack.c.b16 %v704, %v703
        %v728 = vpack.c.b16 %v706, %v705
        %v729 = vpack.c.b16 %v708, %v707
        %v730 = vpack.c.b16 %v710, %v709
        %v731 = vpack.c.b16 %v712, %v711
        %v732 = vpack.c.b16 %v714, %v713
        %v736 = vunpack.c.l.b16 %v260
        %v737 = vunpack.c.l.b16 %v261
        %v738 = vunpack.c.l.b16 %v262
        %v739 = vpack.c.b16 %v737, %v736
        %v740 = vpack.c.b16 %v738, %v738
        %v743 = vsel %vm407, %v715, 0
        %v746 = vsel %vm407, %v716, 0
        %v749 = vsel %vm407, %v717, 0
        %v752 = vsel %vm407, %v718, 0
        %v755 = vsel %vm407, %v719, 0
        %v758 = vsel %vm407, %v720, 0
        %v761 = vsel %vm407, %v721, 0
        %v764 = vsel %vm407, %v722, 0
        %v767 = vsel %vm407, %v723, 0
        %v770 = vsel %vm407, %v724, 0
        %v773 = vsel %vm407, %v725, 0
        %v776 = vsel %vm407, %v726, 0
        %v779 = vsel %vm407, %v727, 0
        %v782 = vsel %vm407, %v728, 0
        %v785 = vsel %vm407, %v729, 0
        %v788 = vsel %vm407, %v730, 0
        %v791 = vsel %vm407, %v731, 0
        %v794 = vsel %vm407, %v732, 0
        %v797 = vsel %vm462, %v740, 0
        %799 = vmatprep.subr.bf16.mxu0 0
        %800 = vmatpush1.bf16.msra.mxu0 %v739
        %801 = vmatprep.subr.bf16.mxu0 0
        %802 = vmatpush1.bf16.msra.mxu0 %v797
        %803 = vmatprep.subr.bf16.mxu0 0
        %804 = vmatpush1.bf16.msra.mxu0 0
        %805 = vmatprep.subr.bf16.mxu0 0
        %806 = vmatpush1.bf16.msra.mxu0 0
        %807 = vmatprep.subr.bf16.mxu0 0
        %808 = vmatpush1.bf16.msra.mxu0 0
        %809 = vmatprep.subr.bf16.mxu0 0
        %810 = vmatpush1.bf16.msra.mxu0 0
        %811 = vmatprep.subr.bf16.mxu0 0
        %812 = vmatpush1.bf16.msra.mxu0 0
        %813 = vmatprep.subr.bf16.mxu0 0
        %814 = vmatpush1.bf16.msra.mxu0 0
        %815 = vmatprep.subr.bf16.mxu0 0
        %816 = vmatpush1.bf16.msra.mxu0 0
        %817 = vmatprep.subr.bf16.mxu0 0
        %818 = vmatpush1.bf16.msra.mxu0 0
        %819 = vmatprep.subr.bf16.mxu0 0
        %820 = vmatpush1.bf16.msra.mxu0 0
        %821 = vmatprep.subr.bf16.mxu0 0
        %822 = vmatpush1.bf16.msra.mxu0 0
        %823 = vmatprep.subr.bf16.mxu0 0
        %824 = vmatpush1.bf16.msra.mxu0 0
        %825 = vmatprep.subr.bf16.mxu0 0
        %826 = vmatpush1.bf16.msra.mxu0 0
        %827 = vmatprep.subr.bf16.mxu0 0
        %828 = vmatpush1.bf16.msra.mxu0 0
        %829 = vmatprep.subr.bf16.mxu0 0
        %830 = vmatpush1.bf16.msra.mxu0 0
        %831 = vmatprep.mubr.bf16.mxu0 0
        %832 = vmatmul.mubr.bf16.gmra.mrb[0].mxu0 %v743
        %v833 = vpop.f32.mrb[0].mxu0
        %v834 = vadd.f32 %v501, %v833
        %v835 = vpop.f32.mrb[0].mxu0
        %v836 = vpop.f32.mrb[0].mxu0
        %v837 = vadd.f32 %v504, %v836
        %v838 = vpop.f32.mrb[0].mxu0
        %839 = vmatprep.mubr.bf16.mxu0 0
        %840 = vmatmul.mubr.bf16.gmra.mrb[0].mxu0 %v746
        %v841 = vpop.f32.mrb[0].mxu0
        %v842 = vadd.f32 %v509, %v841
        %v843 = vpop.f32.mrb[0].mxu0
        %v844 = vpop.f32.mrb[0].mxu0
        %v845 = vadd.f32 %v512, %v844
        %v846 = vpop.f32.mrb[0].mxu0
        %847 = vmatprep.mubr.bf16.mxu0 0
        %848 = vmatmul.mubr.bf16.gmra.mrb[0].mxu0 %v749
        %v849 = vpop.f32.mrb[0].mxu0
        %v850 = vadd.f32 %v517, %v849
        %v851 = vpop.f32.mrb[0].mxu0
        %v852 = vpop.f32.mrb[0].mxu0
        %v853 = vadd.f32 %v520, %v852
        %v854 = vpop.f32.mrb[0].mxu0
        %855 = vmatprep.mubr.bf16.mxu0 0
        %856 = vmatmul.mubr.bf16.gmra.mrb[0].mxu0 %v752
        %v857 = vpop.f32.mrb[0].mxu0
        %v858 = vadd.f32 %v525, %v857
        %v859 = vpop.f32.mrb[0].mxu0
        %v860 = vpop.f32.mrb[0].mxu0
        %v861 = vadd.f32 %v528, %v860
        %v862 = vpop.f32.mrb[0].mxu0
        %863 = vmatprep.mubr.bf16.mxu0 0
        %864 = vmatmul.mubr.bf16.gmra.mrb[0].mxu0 %v755
        %v865 = vpop.f32.mrb[0].mxu0
        %v866 = vadd.f32 %v533, %v865
        %v867 = vpop.f32.mrb[0].mxu0
        %v868 = vpop.f32.mrb[0].mxu0
        %v869 = vadd.f32 %v536, %v868
        %v870 = vpop.f32.mrb[0].mxu0
        %871 = vmatprep.mubr.bf16.mxu0 0
        %872 = vmatmul.mubr.bf16.gmra.mrb[0].mxu0 %v758
        %v873 = vpop.f32.mrb[0].mxu0
        %v874 = vadd.f32 %v541, %v873
        %v875 = vpop.f32.mrb[0].mxu0
        %v876 = vpop.f32.mrb[0].mxu0
        %v877 = vadd.f32 %v544, %v876
        %v878 = vpop.f32.mrb[0].mxu0
        %879 = vmatprep.mubr.bf16.mxu0 0
        %880 = vmatmul.mubr.bf16.gmra.mrb[0].mxu0 %v761
        %v881 = vpop.f32.mrb[0].mxu0
        %v882 = vadd.f32 %v549, %v881
        %v883 = vpop.f32.mrb[0].mxu0
        %v884 = vpop.f32.mrb[0].mxu0
        %v885 = vadd.f32 %v552, %v884
        %v886 = vpop.f32.mrb[0].mxu0
        %887 = vmatprep.mubr.bf16.mxu0 0
        %888 = vmatmul.mubr.bf16.gmra.mrb[0].mxu0 %v764
        %v889 = vpop.f32.mrb[0].mxu0
        %v890 = vadd.f32 %v557, %v889
        %v891 = vpop.f32.mrb[0].mxu0
        %v892 = vpop.f32.mrb[0].mxu0
        %v893 = vadd.f32 %v560, %v892
        %v894 = vpop.f32.mrb[0].mxu0
        %895 = vmatprep.mubr.bf16.mxu0 0
        %896 = vmatmul.mubr.bf16.gmra.mrb[0].mxu0 %v767
        %v897 = vpop.f32.mrb[0].mxu0
        %v898 = vadd.f32 %v565, %v897
        %v899 = vpop.f32.mrb[0].mxu0
        %v900 = vpop.f32.mrb[0].mxu0
        %v901 = vadd.f32 %v568, %v900
        %v902 = vpop.f32.mrb[0].mxu0
        %903 = vmatprep.mubr.bf16.mxu0 0
        %904 = vmatmul.mubr.bf16.gmra.mrb[0].mxu0 %v770
        %v905 = vpop.f32.mrb[0].mxu0
        %v906 = vadd.f32 %v573, %v905
        %v907 = vpop.f32.mrb[0].mxu0
        %v908 = vpop.f32.mrb[0].mxu0
        %v909 = vadd.f32 %v576, %v908
        %v910 = vpop.f32.mrb[0].mxu0
        %911 = vmatprep.mubr.bf16.mxu0 0
        %912 = vmatmul.mubr.bf16.gmra.mrb[0].mxu0 %v773
        %v913 = vpop.f32.mrb[0].mxu0
        %v914 = vadd.f32 %v581, %v913
        %v915 = vpop.f32.mrb[0].mxu0
        %v916 = vpop.f32.mrb[0].mxu0
        %v917 = vadd.f32 %v584, %v916
        %v918 = vpop.f32.mrb[0].mxu0
        %919 = vmatprep.mubr.bf16.mxu0 0
        %920 = vmatmul.mubr.bf16.gmra.mrb[0].mxu0 %v776
        %v921 = vpop.f32.mrb[0].mxu0
        %v922 = vadd.f32 %v589, %v921
        %v923 = vpop.f32.mrb[0].mxu0
        %v924 = vpop.f32.mrb[0].mxu0
        %v925 = vadd.f32 %v592, %v924
        %v926 = vpop.f32.mrb[0].mxu0
        %927 = vmatprep.mubr.bf16.mxu0 0
        %928 = vmatmul.mubr.bf16.gmra.mrb[0].mxu0 %v779
        %v929 = vpop.f32.mrb[0].mxu0
        %v930 = vadd.f32 %v597, %v929
        %v931 = vpop.f32.mrb[0].mxu0
        %v932 = vpop.f32.mrb[0].mxu0
        %v933 = vadd.f32 %v600, %v932
        %v934 = vpop.f32.mrb[0].mxu0
        %935 = vmatprep.mubr.bf16.mxu0 0
        %936 = vmatmul.mubr.bf16.gmra.mrb[0].mxu0 %v782
        %v937 = vpop.f32.mrb[0].mxu0
        %v938 = vadd.f32 %v605, %v937
        %v939 = vpop.f32.mrb[0].mxu0
        %v940 = vpop.f32.mrb[0].mxu0
        %v941 = vadd.f32 %v608, %v940
        %v942 = vpop.f32.mrb[0].mxu0
        %943 = vmatprep.mubr.bf16.mxu0 0
        %944 = vmatmul.mubr.bf16.gmra.mrb[0].mxu0 %v785
        %v945 = vpop.f32.mrb[0].mxu0
        %v946 = vadd.f32 %v613, %v945
        %v947 = vpop.f32.mrb[0].mxu0
        %v948 = vpop.f32.mrb[0].mxu0
        %v949 = vadd.f32 %v616, %v948
        %v950 = vpop.f32.mrb[0].mxu0
        %951 = vmatprep.mubr.bf16.mxu0 0
        %952 = vmatmul.mubr.bf16.gmra.mrb[0].mxu0 %v788
        %v953 = vpop.f32.mrb[0].mxu0
        %v954 = vadd.f32 %v621, %v953
        %v955 = vpop.f32.mrb[0].mxu0
        %v956 = vpop.f32.mrb[0].mxu0
        %v957 = vadd.f32 %v624, %v956
        %v958 = vpop.f32.mrb[0].mxu0
        %959 = vmatprep.mubr.bf16.mxu0 0
        %960 = vmatmul.mubr.bf16.gmra.mrb[0].mxu0 %v791
        %v961 = vpop.f32.mrb[0].mxu0
        %v962 = vadd.f32 %v629, %v961
        %v963 = vpop.f32.mrb[0].mxu0
        %v964 = vpop.f32.mrb[0].mxu0
        %v965 = vadd.f32 %v632, %v964
        %v966 = vpop.f32.mrb[0].mxu0
        %967 = vmatprep.mubr.bf16.mxu0 0
        %968 = vmatmul.mubr.bf16.gmra.mrb[0].mxu0 %v794
        %v969 = vpop.f32.mrb[0].mxu0
        %v970 = vadd.f32 %v637, %v969
        %v971 = vpop.f32.mrb[0].mxu0
        %v972 = vpop.f32.mrb[0].mxu0
        %v973 = vadd.f32 %v640, %v972
        %v974 = vpop.f32.mrb[0].mxu0
        %975 = vdwg.mxu0
        %s976 = sadd.s32 %s219, 64
        %s977 = sshra.s32 %s976, 3
        %s978 = sand.u32 %s976, 7
        %s979 = smul.addr %s977, 4
        %s980 = scalar_lea.vmem %s0, %s979
        %v981 = vld [vmem:[%s980] sm:$0xf]
        %v982 = vld [vmem:[%s980 + $0x4] sm:$0xf]
        %v983 = vld [vmem:[%s980 + $0x8] sm:$0xf]
        %v984 = vld [vmem:[%s980 + $0xc] sm:$0xf]
        %v985 = vld [vmem:[%s980 + $0x10] sm:$0xf]
        %v986 = vld [vmem:[%s980 + $0x14] sm:$0xf]
        %v987 = vld [vmem:[%s980 + $0x18] sm:$0xf]
        %v988 = vld [vmem:[%s980 + $0x1c] sm:$0xf]
        %v989 = vld [vmem:[%s980 + $0x20] sm:$0xf]
        %v990 = vld [vmem:[%s980 + $0x24] sm:$0xf]
        %v991 = vld [vmem:[%s980 + $0x28] sm:$0xf]
        %v992 = vld [vmem:[%s980 + $0x2c] sm:$0xf]
        %v993 = vld [vmem:[%s980 + $0x30] sm:$0xf]
        %v994 = vld [vmem:[%s980 + $0x34] sm:$0xf]
        %v995 = vld [vmem:[%s980 + $0x38] sm:$0xf]
        %v996 = vld [vmem:[%s980 + $0x3c] sm:$0xf]
        %v997 = vld [vmem:[%s980 + $0x40] sm:$0xf]
        %v998 = vld [vmem:[%s980 + $0x44] sm:$0xf]
        %v999 = vld [vmem:[%s980 + $0x48] sm:$0xf]
        %v1000 = vld [vmem:[%s980 + $0x4c] sm:$0xf]
        %v1001 = vld [vmem:[%s980 + $0x50] sm:$0xf]
        %v1002 = vld [vmem:[%s980 + $0x54] sm:$0xf]
        %v1003 = vld [vmem:[%s980 + $0x58] sm:$0xf]
        %v1004 = vld [vmem:[%s980 + $0x5c] sm:$0xf]
        %v1005 = vld [vmem:[%s980 + $0x60] sm:$0xf]
        %v1006 = vld [vmem:[%s980 + $0x64] sm:$0xf]
        %v1007 = vld [vmem:[%s980 + $0x68] sm:$0xf]
        %v1008 = vld [vmem:[%s980 + $0x6c] sm:$0xf]
        %v1009 = vld [vmem:[%s980 + $0x70] sm:$0xf]
        %v1010 = vld [vmem:[%s980 + $0x74] sm:$0xf]
        %v1011 = vld [vmem:[%s980 + $0x78] sm:$0xf]
        %v1012 = vld [vmem:[%s980 + $0x7c] sm:$0xf]
        %v1013 = vld [vmem:[%s980 + $0x80] sm:$0xf]
        %v1014 = vld [vmem:[%s980 + $0x84] sm:$0xf]
        %v1015 = vld [vmem:[%s980 + $0x88] sm:$0xf]
        %v1016 = vld [vmem:[%s980 + $0x8c] sm:$0xf]
        %s1017 = scalar_lea.vmem %s1, 24
        %v1018 = vld [vmem:[%s1017] sm:$0xf]
        %v1019 = vld [vmem:[%s1017 + $0x4] sm:$0xf]
        %v1020 = vld [vmem:[%s1017 + $0x8] sm:$0xf]
        %v1057 = vunpack.c.l.b16 %v981
        %v1058 = vunpack.c.l.b16 %v982
        %v1059 = vunpack.c.l.b16 %v983
        %v1060 = vunpack.c.l.b16 %v984
        %v1061 = vunpack.c.l.b16 %v985
        %v1062 = vunpack.c.l.b16 %v986
        %v1063 = vunpack.c.l.b16 %v987
        %v1064 = vunpack.c.l.b16 %v988
        %v1065 = vunpack.c.l.b16 %v989
        %v1066 = vunpack.c.l.b16 %v990
        %v1067 = vunpack.c.l.b16 %v991
        %v1068 = vunpack.c.l.b16 %v992
        %v1069 = vunpack.c.l.b16 %v993
        %v1070 = vunpack.c.l.b16 %v994
        %v1071 = vunpack.c.l.b16 %v995
        %v1072 = vunpack.c.l.b16 %v996
        %v1073 = vunpack.c.l.b16 %v997
        %v1074 = vunpack.c.l.b16 %v998
        %v1075 = vunpack.c.l.b16 %v999
        %v1076 = vunpack.c.l.b16 %v1000
        %v1077 = vunpack.c.l.b16 %v1001
        %v1078 = vunpack.c.l.b16 %v1002
        %v1079 = vunpack.c.l.b16 %v1003
        %v1080 = vunpack.c.l.b16 %v1004
        %v1081 = vunpack.c.l.b16 %v1005
        %v1082 = vunpack.c.l.b16 %v1006
        %v1083 = vunpack.c.l.b16 %v1007
        %v1084 = vunpack.c.l.b16 %v1008
        %v1085 = vunpack.c.l.b16 %v1009
        %v1086 = vunpack.c.l.b16 %v1010
        %v1087 = vunpack.c.l.b16 %v1011
        %v1088 = vunpack.c.l.b16 %v1012
        %v1089 = vunpack.c.l.b16 %v1013
        %v1090 = vunpack.c.l.b16 %v1014
        %v1091 = vunpack.c.l.b16 %v1015
        %v1092 = vunpack.c.l.b16 %v1016
        %v1093 = vpack.c.b16 %v1058, %v1057
        %v1094 = vpack.c.b16 %v1060, %v1059
        %v1095 = vpack.c.b16 %v1062, %v1061
        %v1096 = vpack.c.b16 %v1064, %v1063
        %v1097 = vpack.c.b16 %v1066, %v1065
        %v1098 = vpack.c.b16 %v1068, %v1067
        %v1099 = vpack.c.b16 %v1070, %v1069
        %v1100 = vpack.c.b16 %v1072, %v1071
        %v1101 = vpack.c.b16 %v1074, %v1073
        %v1102 = vpack.c.b16 %v1076, %v1075
        %v1103 = vpack.c.b16 %v1078, %v1077
        %v1104 = vpack.c.b16 %v1080, %v1079
        %v1105 = vpack.c.b16 %v1082, %v1081
        %v1106 = vpack.c.b16 %v1084, %v1083
        %v1107 = vpack.c.b16 %v1086, %v1085
        %v1108 = vpack.c.b16 %v1088, %v1087
        %v1109 = vpack.c.b16 %v1090, %v1089
        %v1110 = vpack.c.b16 %v1092, %v1091
        %v1114 = vunpack.c.l.b16 %v1018
        %v1115 = vunpack.c.l.b16 %v1019
        %v1116 = vunpack.c.l.b16 %v1020
        %v1117 = vpack.c.b16 %v1115, %v1114
        %v1118 = vpack.c.b16 %v1116, %v1116
        %v1121 = vsel %vm407, %v1093, 0
        %v1124 = vsel %vm407, %v1094, 0
        %v1127 = vsel %vm407, %v1095, 0
        %v1130 = vsel %vm407, %v1096, 0
        %v1133 = vsel %vm407, %v1097, 0
        %v1136 = vsel %vm407, %v1098, 0
        %v1139 = vsel %vm407, %v1099, 0
        %v1142 = vsel %vm407, %v1100, 0
        %v1145 = vsel %vm407, %v1101, 0
        %v1148 = vsel %vm407, %v1102, 0
        %v1151 = vsel %vm407, %v1103, 0
        %v1154 = vsel %vm407, %v1104, 0
        %v1157 = vsel %vm407, %v1105, 0
        %v1160 = vsel %vm407, %v1106, 0
        %v1163 = vsel %vm407, %v1107, 0
        %v1166 = vsel %vm407, %v1108, 0
        %v1169 = vsel %vm407, %v1109, 0
        %v1172 = vsel %vm407, %v1110, 0
        %v1175 = vsel %vm462, %v1118, 0
        %1177 = vmatprep.subr.bf16.mxu0 0
        %1178 = vmatpush1.bf16.msra.mxu0 %v1117
        %1179 = vmatprep.subr.bf16.mxu0 0
        %1180 = vmatpush1.bf16.msra.mxu0 %v1175
        %1181 = vmatprep.subr.bf16.mxu0 0
        %1182 = vmatpush1.bf16.msra.mxu0 0
        %1183 = vmatprep.subr.bf16.mxu0 0
        %1184 = vmatpush1.bf16.msra.mxu0 0
        %1185 = vmatprep.subr.bf16.mxu0 0
        %1186 = vmatpush1.bf16.msra.mxu0 0
        %1187 = vmatprep.subr.bf16.mxu0 0
        %1188 = vmatpush1.bf16.msra.mxu0 0
        %1189 = vmatprep.subr.bf16.mxu0 0
        %1190 = vmatpush1.bf16.msra.mxu0 0
        %1191 = vmatprep.subr.bf16.mxu0 0
        %1192 = vmatpush1.bf16.msra.mxu0 0
        %1193 = vmatprep.subr.bf16.mxu0 0
        %1194 = vmatpush1.bf16.msra.mxu0 0
        %1195 = vmatprep.subr.bf16.mxu0 0
        %1196 = vmatpush1.bf16.msra.mxu0 0
        %1197 = vmatprep.subr.bf16.mxu0 0
        %1198 = vmatpush1.bf16.msra.mxu0 0
        %1199 = vmatprep.subr.bf16.mxu0 0
        %1200 = vmatpush1.bf16.msra.mxu0 0
        %1201 = vmatprep.subr.bf16.mxu0 0
        %1202 = vmatpush1.bf16.msra.mxu0 0
        %1203 = vmatprep.subr.bf16.mxu0 0
        %1204 = vmatpush1.bf16.msra.mxu0 0
        %1205 = vmatprep.subr.bf16.mxu0 0
        %1206 = vmatpush1.bf16.msra.mxu0 0
        %1207 = vmatprep.subr.bf16.mxu0 0
        %1208 = vmatpush1.bf16.msra.mxu0 0
        %1209 = vmatprep.mubr.bf16.mxu0 0
        %1210 = vmatmul.mubr.bf16.gmra.mrb[0].mxu0 %v1121
        %v1211 = vpop.f32.mrb[0].mxu0
        %v1212 = vadd.f32 0.0, %v1211
        %v1213 = vpop.f32.mrb[0].mxu0
        %v1214 = vpop.f32.mrb[0].mxu0
        %v1215 = vadd.f32 0.0, %v1214
        %v1216 = vpop.f32.mrb[0].mxu0
        %1217 = vmatprep.mubr.bf16.mxu0 0
        %1218 = vmatmul.mubr.bf16.gmra.mrb[0].mxu0 %v1124
        %v1219 = vpop.f32.mrb[0].mxu0
        %v1220 = vadd.f32 0.0, %v1219
        %v1221 = vpop.f32.mrb[0].mxu0
        %v1222 = vpop.f32.mrb[0].mxu0
        %v1223 = vadd.f32 0.0, %v1222
        %v1224 = vpop.f32.mrb[0].mxu0
        %1225 = vmatprep.mubr.bf16.mxu0 0
        %1226 = vmatmul.mubr.bf16.gmra.mrb[0].mxu0 %v1127
        %v1227 = vpop.f32.mrb[0].mxu0
        %v1228 = vadd.f32 0.0, %v1227
        %v1229 = vpop.f32.mrb[0].mxu0
        %v1230 = vpop.f32.mrb[0].mxu0
        %v1231 = vadd.f32 0.0, %v1230
        %v1232 = vpop.f32.mrb[0].mxu0
        %1233 = vmatprep.mubr.bf16.mxu0 0
        %1234 = vmatmul.mubr.bf16.gmra.mrb[0].mxu0 %v1130
        %v1235 = vpop.f32.mrb[0].mxu0
        %v1236 = vadd.f32 0.0, %v1235
        %v1237 = vpop.f32.mrb[0].mxu0
        %v1238 = vpop.f32.mrb[0].mxu0
        %v1239 = vadd.f32 0.0, %v1238
        %v1240 = vpop.f32.mrb[0].mxu0
        %1241 = vmatprep.mubr.bf16.mxu0 0
        %1242 = vmatmul.mubr.bf16.gmra.mrb[0].mxu0 %v1133
        %v1243 = vpop.f32.mrb[0].mxu0
        %v1244 = vadd.f32 0.0, %v1243
        %v1245 = vpop.f32.mrb[0].mxu0
        %v1246 = vpop.f32.mrb[0].mxu0
        %v1247 = vadd.f32 0.0, %v1246
        %v1248 = vpop.f32.mrb[0].mxu0
        %1249 = vmatprep.mubr.bf16.mxu0 0
        %1250 = vmatmul.mubr.bf16.gmra.mrb[0].mxu0 %v1136
        %v1251 = vpop.f32.mrb[0].mxu0
        %v1252 = vadd.f32 0.0, %v1251
        %v1253 = vpop.f32.mrb[0].mxu0
        %v1254 = vpop.f32.mrb[0].mxu0
        %v1255 = vadd.f32 0.0, %v1254
        %v1256 = vpop.f32.mrb[0].mxu0
        %1257 = vmatprep.mubr.bf16.mxu0 0
        %1258 = vmatmul.mubr.bf16.gmra.mrb[0].mxu0 %v1139
        %v1259 = vpop.f32.mrb[0].mxu0
        %v1260 = vadd.f32 0.0, %v1259
        %v1261 = vpop.f32.mrb[0].mxu0
        %v1262 = vpop.f32.mrb[0].mxu0
        %v1263 = vadd.f32 0.0, %v1262
        %v1264 = vpop.f32.mrb[0].mxu0
        %1265 = vmatprep.mubr.bf16.mxu0 0
        %1266 = vmatmul.mubr.bf16.gmra.mrb[0].mxu0 %v1142
        %v1267 = vpop.f32.mrb[0].mxu0
        %v1268 = vadd.f32 0.0, %v1267
        %v1269 = vpop.f32.mrb[0].mxu0
        %v1270 = vpop.f32.mrb[0].mxu0
        %v1271 = vadd.f32 0.0, %v1270
        %v1272 = vpop.f32.mrb[0].mxu0
        %1273 = vmatprep.mubr.bf16.mxu0 0
        %1274 = vmatmul.mubr.bf16.gmra.mrb[0].mxu0 %v1145
        %v1275 = vpop.f32.mrb[0].mxu0
        %v1276 = vadd.f32 0.0, %v1275
        %v1277 = vpop.f32.mrb[0].mxu0
        %v1278 = vpop.f32.mrb[0].mxu0
        %v1279 = vadd.f32 0.0, %v1278
        %v1280 = vpop.f32.mrb[0].mxu0
        %1281 = vmatprep.mubr.bf16.mxu0 0
        %1282 = vmatmul.mubr.bf16.gmra.mrb[0].mxu0 %v1148
        %v1283 = vpop.f32.mrb[0].mxu0
        %v1284 = vadd.f32 0.0, %v1283
        %v1285 = vpop.f32.mrb[0].mxu0
        %v1286 = vpop.f32.mrb[0].mxu0
        %v1287 = vadd.f32 0.0, %v1286
        %v1288 = vpop.f32.mrb[0].mxu0
        %1289 = vmatprep.mubr.bf16.mxu0 0
        %1290 = vmatmul.mubr.bf16.gmra.mrb[0].mxu0 %v1151
        %v1291 = vpop.f32.mrb[0].mxu0
        %v1292 = vadd.f32 0.0, %v1291
        %v1293 = vpop.f32.mrb[0].mxu0
        %v1294 = vpop.f32.mrb[0].mxu0
        %v1295 = vadd.f32 0.0, %v1294
        %v1296 = vpop.f32.mrb[0].mxu0
        %1297 = vmatprep.mubr.bf16.mxu0 0
        %1298 = vmatmul.mubr.bf16.gmra.mrb[0].mxu0 %v1154
        %v1299 = vpop.f32.mrb[0].mxu0
        %v1300 = vadd.f32 0.0, %v1299
        %v1301 = vpop.f32.mrb[0].mxu0
        %v1302 = vpop.f32.mrb[0].mxu0
        %v1303 = vadd.f32 0.0, %v1302
        %v1304 = vpop.f32.mrb[0].mxu0
        %1305 = vmatprep.mubr.bf16.mxu0 0
        %1306 = vmatmul.mubr.bf16.gmra.mrb[0].mxu0 %v1157
        %v1307 = vpop.f32.mrb[0].mxu0
        %v1308 = vadd.f32 0.0, %v1307
        %v1309 = vpop.f32.mrb[0].mxu0
        %v1310 = vpop.f32.mrb[0].mxu0
        %v1311 = vadd.f32 0.0, %v1310
        %v1312 = vpop.f32.mrb[0].mxu0
        %1313 = vmatprep.mubr.bf16.mxu0 0
        %1314 = vmatmul.mubr.bf16.gmra.mrb[0].mxu0 %v1160
        %v1315 = vpop.f32.mrb[0].mxu0
        %v1316 = vadd.f32 0.0, %v1315
        %v1317 = vpop.f32.mrb[0].mxu0
        %v1318 = vpop.f32.mrb[0].mxu0
        %v1319 = vadd.f32 0.0, %v1318
        %v1320 = vpop.f32.mrb[0].mxu0
        %1321 = vmatprep.mubr.bf16.mxu0 0
        %1322 = vmatmul.mubr.bf16.gmra.mrb[0].mxu0 %v1163
        %v1323 = vpop.f32.mrb[0].mxu0
        %v1324 = vadd.f32 0.0, %v1323
        %v1325 = vpop.f32.mrb[0].mxu0
        %v1326 = vpop.f32.mrb[0].mxu0
        %v1327 = vadd.f32 0.0, %v1326
        %v1328 = vpop.f32.mrb[0].mxu0
        %1329 = vmatprep.mubr.bf16.mxu0 0
        %1330 = vmatmul.mubr.bf16.gmra.mrb[0].mxu0 %v1166
        %v1331 = vpop.f32.mrb[0].mxu0
        %v1332 = vadd.f32 0.0, %v1331
        %v1333 = vpop.f32.mrb[0].mxu0
        %v1334 = vpop.f32.mrb[0].mxu0
        %v1335 = vadd.f32 0.0, %v1334
        %v1336 = vpop.f32.mrb[0].mxu0
        %1337 = vmatprep.mubr.bf16.mxu0 0
        %1338 = vmatmul.mubr.bf16.gmra.mrb[0].mxu0 %v1169
        %v1339 = vpop.f32.mrb[0].mxu0
        %v1340 = vadd.f32 0.0, %v1339
        %v1341 = vpop.f32.mrb[0].mxu0
        %v1342 = vpop.f32.mrb[0].mxu0
        %v1343 = vadd.f32 0.0, %v1342
        %v1344 = vpop.f32.mrb[0].mxu0
        %1345 = vmatprep.mubr.bf16.mxu0 0
        %1346 = vmatmul.mubr.bf16.gmra.mrb[0].mxu0 %v1172
        %v1347 = vpop.f32.mrb[0].mxu0
        %v1348 = vadd.f32 0.0, %v1347
        %v1349 = vpop.f32.mrb[0].mxu0
        %v1350 = vpop.f32.mrb[0].mxu0
        %v1351 = vadd.f32 0.0, %v1350
        %v1352 = vpop.f32.mrb[0].mxu0
        %1353 = vdwg.mxu0
        %v1354 = vadd.f32 %v834, %v1212
        %v1355 = vadd.f32 %v837, %v1215
        %v1356 = vadd.f32 %v842, %v1220
        %v1357 = vadd.f32 %v845, %v1223
        %v1358 = vadd.f32 %v850, %v1228
        %v1359 = vadd.f32 %v853, %v1231
        %v1360 = vadd.f32 %v858, %v1236
        %v1361 = vadd.f32 %v861, %v1239
        %v1362 = vadd.f32 %v866, %v1244
        %v1363 = vadd.f32 %v869, %v1247
        %v1364 = vadd.f32 %v874, %v1252
        %v1365 = vadd.f32 %v877, %v1255
        %v1366 = vadd.f32 %v882, %v1260
        %v1367 = vadd.f32 %v885, %v1263
        %v1368 = vadd.f32 %v890, %v1268
        %v1369 = vadd.f32 %v893, %v1271
        %v1370 = vadd.f32 %v898, %v1276
        %v1371 = vadd.f32 %v901, %v1279
        %v1372 = vadd.f32 %v906, %v1284
        %v1373 = vadd.f32 %v909, %v1287
        %v1374 = vadd.f32 %v914, %v1292
        %v1375 = vadd.f32 %v917, %v1295
        %v1376 = vadd.f32 %v922, %v1300
        %v1377 = vadd.f32 %v925, %v1303
        %v1378 = vadd.f32 %v930, %v1308
        %v1379 = vadd.f32 %v933, %v1311
        %v1380 = vadd.f32 %v938, %v1316
        %v1381 = vadd.f32 %v941, %v1319
        %v1382 = vadd.f32 %v946, %v1324
        %v1383 = vadd.f32 %v949, %v1327
        %v1384 = vadd.f32 %v954, %v1332
        %v1385 = vadd.f32 %v957, %v1335
        %v1386 = vadd.f32 %v962, %v1340
        %v1387 = vadd.f32 %v965, %v1343
        %v1388 = vadd.f32 %v970, %v1348
        %v1389 = vadd.f32 %v973, %v1351
        %v1390 = vld [vmem:[%s2] sm:$0x1]
        %v1392 = vlaneseq
        %v1393 = vshrl.u32 %v1392, 7
        %v1394 = vsub.s32 0, %v1393
        %v1395 = vrot.slane %v1390, %v1394
        %v1397 = vadd.f32 %v1354, %v1395
        %v1398 = vadd.f32 %v1355, %v1395
        %v1399 = vadd.f32 %v1356, %v1395
        %v1400 = vadd.f32 %v1357, %v1395
        %v1401 = vadd.f32 %v1358, %v1395
        %v1402 = vadd.f32 %v1359, %v1395
        %v1403 = vadd.f32 %v1360, %v1395
        %v1404 = vadd.f32 %v1361, %v1395
        %v1405 = vadd.f32 %v1362, %v1395
        %v1406 = vadd.f32 %v1363, %v1395
        %v1407 = vadd.f32 %v1364, %v1395
        %v1408 = vadd.f32 %v1365, %v1395
        %v1409 = vadd.f32 %v1366, %v1395
        %v1410 = vadd.f32 %v1367, %v1395
        %v1411 = vadd.f32 %v1368, %v1395
        %v1412 = vadd.f32 %v1369, %v1395
        %v1413 = vadd.f32 %v1370, %v1395
        %v1414 = vadd.f32 %v1371, %v1395
        %v1415 = vadd.f32 %v1372, %v1395
        %v1416 = vadd.f32 %v1373, %v1395
        %v1417 = vadd.f32 %v1374, %v1395
        %v1418 = vadd.f32 %v1375, %v1395
        %v1419 = vadd.f32 %v1376, %v1395
        %v1420 = vadd.f32 %v1377, %v1395
        %v1421 = vadd.f32 %v1378, %v1395
        %v1422 = vadd.f32 %v1379, %v1395
        %v1423 = vadd.f32 %v1380, %v1395
        %v1424 = vadd.f32 %v1381, %v1395
        %v1425 = vadd.f32 %v1382, %v1395
        %v1426 = vadd.f32 %v1383, %v1395
        %v1427 = vadd.f32 %v1384, %v1395
        %v1428 = vadd.f32 %v1385, %v1395
        %v1429 = vadd.f32 %v1386, %v1395
        %v1430 = vadd.f32 %v1387, %v1395
        %v1431 = vadd.f32 %v1388, %v1395
        %v1432 = vadd.f32 %v1389, %v1395
        %v1433 = vlaneseq
        %v1434 = vand.u32 %v1433, 127
        %vm1435 = vcmp.ge.s32.totalorder %v1434, 36
        %vm1436 = vcmp.lt.s32.totalorder %v1434, 48
        %vm1437 = vmand %vm1435, %vm1436
        %vm1438 = vcmp.ge.s32.totalorder %v1434, 48
        %vm1439 = vcmp.lt.s32.totalorder %v1434, 60
        %vm1440 = vmand %vm1438, %vm1439
        %v1441 = vld [vmem:[%s191] sm:$0xff]
        %v1442 = vld [vmem:[%s191 + $0x8] sm:$0xff]
        %v1443 = vld [vmem:[%s191 + $0x10] sm:$0xff]
        %v1444 = vld [vmem:[%s191 + $0x18] sm:$0xff]
        %v1445 = vld [vmem:[%s191 + $0x20] sm:$0xff]
        %v1446 = vld [vmem:[%s191 + $0x28] sm:$0xff]
        %v1447 = vld [vmem:[%s191 + $0x30] sm:$0xff]
        %v1448 = vld [vmem:[%s191 + $0x38] sm:$0xff]
        %v1449 = vld [vmem:[%s191 + $0x40] sm:$0xff]
        %v1450 = vld [vmem:[%s191 + $0x48] sm:$0xff]
        %v1451 = vld [vmem:[%s191 + $0x50] sm:$0xff]
        %v1452 = vld [vmem:[%s191 + $0x58] sm:$0xff]
        %v1453 = vld [vmem:[%s191 + $0x60] sm:$0xff]
        %v1454 = vld [vmem:[%s191 + $0x68] sm:$0xff]
        %v1455 = vld [vmem:[%s191 + $0x70] sm:$0xff]
        %v1456 = vld [vmem:[%s191 + $0x78] sm:$0xff]
        %v1457 = vld [vmem:[%s191 + $0x80] sm:$0xff]
        %v1458 = vld [vmem:[%s191 + $0x88] sm:$0xff]
        %v1459 = vld [vmem:[%s191 + $0x90] sm:$0xff]
        %v1460 = vld [vmem:[%s191 + $0x98] sm:$0xff]
        %v1461 = vld [vmem:[%s191 + $0xa0] sm:$0xff]
        %v1462 = vld [vmem:[%s191 + $0xa8] sm:$0xff]
        %v1463 = vld [vmem:[%s191 + $0xb0] sm:$0xff]
        %v1464 = vld [vmem:[%s191 + $0xb8] sm:$0xff]
        %v1465 = vld [vmem:[%s191 + $0xc0] sm:$0xff]
        %v1466 = vld [vmem:[%s191 + $0xc8] sm:$0xff]
        %v1467 = vld [vmem:[%s191 + $0xd0] sm:$0xff]
        %v1468 = vld [vmem:[%s191 + $0xd8] sm:$0xff]
        %v1469 = vld [vmem:[%s191 + $0xe0] sm:$0xff]
        %v1470 = vld [vmem:[%s191 + $0xe8] sm:$0xff]
        %v1471 = vld [vmem:[%s191 + $0xf0] sm:$0xff]
        %v1472 = vld [vmem:[%s191 + $0xf8] sm:$0xff]
        %v1473 = vld [vmem:[%s191 + $0x100] sm:$0xff]
        %v1474 = vld [vmem:[%s191 + $0x108] sm:$0xff]
        %v1475 = vld [vmem:[%s191 + $0x110] sm:$0xff]
        %v1476 = vld [vmem:[%s191 + $0x118] sm:$0xff]
        %v1477 = vsel %vm1440, %v1397, 0.0
        %v1478 = vsel %vm1440, %v1398, 0.0
        %v1479 = vsel %vm1440, %v1399, 0.0
        %v1480 = vsel %vm1440, %v1400, 0.0
        %v1481 = vsel %vm1440, %v1401, 0.0
        %v1482 = vsel %vm1440, %v1402, 0.0
        %v1483 = vsel %vm1440, %v1403, 0.0
        %v1484 = vsel %vm1440, %v1404, 0.0
        %v1485 = vsel %vm1440, %v1405, 0.0
        %v1486 = vsel %vm1440, %v1406, 0.0
        %v1487 = vsel %vm1440, %v1407, 0.0
        %v1488 = vsel %vm1440, %v1408, 0.0
        %v1489 = vsel %vm1440, %v1409, 0.0
        %v1490 = vsel %vm1440, %v1410, 0.0
        %v1491 = vsel %vm1440, %v1411, 0.0
        %v1492 = vsel %vm1440, %v1412, 0.0
        %v1493 = vsel %vm1440, %v1413, 0.0
        %v1494 = vsel %vm1440, %v1414, 0.0
        %v1495 = vsel %vm1440, %v1415, 0.0
        %v1496 = vsel %vm1440, %v1416, 0.0
        %v1497 = vsel %vm1440, %v1417, 0.0
        %v1498 = vsel %vm1440, %v1418, 0.0
        %v1499 = vsel %vm1440, %v1419, 0.0
        %v1500 = vsel %vm1440, %v1420, 0.0
        %v1501 = vsel %vm1440, %v1421, 0.0
        %v1502 = vsel %vm1440, %v1422, 0.0
        %v1503 = vsel %vm1440, %v1423, 0.0
        %v1504 = vsel %vm1440, %v1424, 0.0
        %v1505 = vsel %vm1440, %v1425, 0.0
        %v1506 = vsel %vm1440, %v1426, 0.0
        %v1507 = vsel %vm1440, %v1427, 0.0
        %v1508 = vsel %vm1440, %v1428, 0.0
        %v1509 = vsel %vm1440, %v1429, 0.0
        %v1510 = vsel %vm1440, %v1430, 0.0
        %v1511 = vsel %vm1440, %v1431, 0.0
        %v1512 = vsel %vm1440, %v1432, 0.0
        %v1513 = vmul.f32 %v1477, 1.442695
        %v1514 = vpow.pop %v1513
        %v1515 = vmul.f32 %v1478, 1.442695
        %v1516 = vpow.pop %v1515
        %v1517 = vmul.f32 %v1479, 1.442695
        %v1518 = vpow.pop %v1517
        %v1519 = vmul.f32 %v1480, 1.442695
        %v1520 = vpow.pop %v1519
        %v1521 = vmul.f32 %v1481, 1.442695
        %v1522 = vpow.pop %v1521
        %v1523 = vmul.f32 %v1482, 1.442695
        %v1524 = vpow.pop %v1523
        %v1525 = vmul.f32 %v1483, 1.442695
        %v1526 = vpow.pop %v1525
        %v1527 = vmul.f32 %v1484, 1.442695
        %v1528 = vpow.pop %v1527
        %v1529 = vmul.f32 %v1485, 1.442695
        %v1530 = vpow.pop %v1529
        %v1531 = vmul.f32 %v1486, 1.442695
        %v1532 = vpow.pop %v1531
        %v1533 = vmul.f32 %v1487, 1.442695
        %v1534 = vpow.pop %v1533
        %v1535 = vmul.f32 %v1488, 1.442695
        %v1536 = vpow.pop %v1535
        %v1537 = vmul.f32 %v1489, 1.442695
        %v1538 = vpow.pop %v1537
        %v1539 = vmul.f32 %v1490, 1.442695
        %v1540 = vpow.pop %v1539
        %v1541 = vmul.f32 %v1491, 1.442695
        %v1542 = vpow.pop %v1541
        %v1543 = vmul.f32 %v1492, 1.442695
        %v1544 = vpow.pop %v1543
        %v1545 = vmul.f32 %v1493, 1.442695
        %v1546 = vpow.pop %v1545
        %v1547 = vmul.f32 %v1494, 1.442695
        %v1548 = vpow.pop %v1547
        %v1549 = vmul.f32 %v1495, 1.442695
        %v1550 = vpow.pop %v1549
        %v1551 = vmul.f32 %v1496, 1.442695
        %v1552 = vpow.pop %v1551
        %v1553 = vmul.f32 %v1497, 1.442695
        %v1554 = vpow.pop %v1553
        %v1555 = vmul.f32 %v1498, 1.442695
        %v1556 = vpow.pop %v1555
        %v1557 = vmul.f32 %v1499, 1.442695
        %v1558 = vpow.pop %v1557
        %v1559 = vmul.f32 %v1500, 1.442695
        %v1560 = vpow.pop %v1559
        %v1561 = vmul.f32 %v1501, 1.442695
        %v1562 = vpow.pop %v1561
        %v1563 = vmul.f32 %v1502, 1.442695
        %v1564 = vpow.pop %v1563
        %v1565 = vmul.f32 %v1503, 1.442695
        %v1566 = vpow.pop %v1565
        %v1567 = vmul.f32 %v1504, 1.442695
        %v1568 = vpow.pop %v1567
        %v1569 = vmul.f32 %v1505, 1.442695
        %v1570 = vpow.pop %v1569
        %v1571 = vmul.f32 %v1506, 1.442695
        %v1572 = vpow.pop %v1571
        %v1573 = vmul.f32 %v1507, 1.442695
        %v1574 = vpow.pop %v1573
        %v1575 = vmul.f32 %v1508, 1.442695
        %v1576 = vpow.pop %v1575
        %v1577 = vmul.f32 %v1509, 1.442695
        %v1578 = vpow.pop %v1577
        %v1579 = vmul.f32 %v1510, 1.442695
        %v1580 = vpow.pop %v1579
        %v1581 = vmul.f32 %v1511, 1.442695
        %v1582 = vpow.pop %v1581
        %v1583 = vmul.f32 %v1512, 1.442695
        %v1584 = vpow.pop %v1583
        %v1585 = vmul.f32 %v1441, %v1514
        %v1586 = vmul.f32 %v1442, %v1516
        %v1587 = vmul.f32 %v1443, %v1518
        %v1588 = vmul.f32 %v1444, %v1520
        %v1589 = vmul.f32 %v1445, %v1522
        %v1590 = vmul.f32 %v1446, %v1524
        %v1591 = vmul.f32 %v1447, %v1526
        %v1592 = vmul.f32 %v1448, %v1528
        %v1593 = vmul.f32 %v1449, %v1530
        %v1594 = vmul.f32 %v1450, %v1532
        %v1595 = vmul.f32 %v1451, %v1534
        %v1596 = vmul.f32 %v1452, %v1536
        %v1597 = vmul.f32 %v1453, %v1538
        %v1598 = vmul.f32 %v1454, %v1540
        %v1599 = vmul.f32 %v1455, %v1542
        %v1600 = vmul.f32 %v1456, %v1544
        %v1601 = vmul.f32 %v1457, %v1546
        %v1602 = vmul.f32 %v1458, %v1548
        %v1603 = vmul.f32 %v1459, %v1550
        %v1604 = vmul.f32 %v1460, %v1552
        %v1605 = vmul.f32 %v1461, %v1554
        %v1606 = vmul.f32 %v1462, %v1556
        %v1607 = vmul.f32 %v1463, %v1558
        %v1608 = vmul.f32 %v1464, %v1560
        %v1609 = vmul.f32 %v1465, %v1562
        %v1610 = vmul.f32 %v1466, %v1564
        %v1611 = vmul.f32 %v1467, %v1566
        %v1612 = vmul.f32 %v1468, %v1568
        %v1613 = vmul.f32 %v1469, %v1570
        %v1614 = vmul.f32 %v1470, %v1572
        %v1615 = vmul.f32 %v1471, %v1574
        %v1616 = vmul.f32 %v1472, %v1576
        %v1617 = vmul.f32 %v1473, %v1578
        %v1618 = vmul.f32 %v1474, %v1580
        %v1619 = vmul.f32 %v1475, %v1582
        %v1620 = vmul.f32 %v1476, %v1584
        %1621 = vrot.lane.b32.xlu0 %v1441, 116
        %v1622 = vpop.permute.xlu0 %1621
        %1623 = vrot.lane.b32.xlu0 %v1442, 116
        %v1624 = vpop.permute.xlu0 %1623
        %1625 = vrot.lane.b32.xlu0 %v1443, 116
        %v1626 = vpop.permute.xlu0 %1625
        %1627 = vrot.lane.b32.xlu0 %v1444, 116
        %v1628 = vpop.permute.xlu0 %1627
        %1629 = vrot.lane.b32.xlu0 %v1445, 116
        %v1630 = vpop.permute.xlu0 %1629
        %1631 = vrot.lane.b32.xlu0 %v1446, 116
        %v1632 = vpop.permute.xlu0 %1631
        %1633 = vrot.lane.b32.xlu0 %v1447, 116
        %v1634 = vpop.permute.xlu0 %1633
        %1635 = vrot.lane.b32.xlu0 %v1448, 116
        %v1636 = vpop.permute.xlu0 %1635
        %1637 = vrot.lane.b32.xlu0 %v1449, 116
        %v1638 = vpop.permute.xlu0 %1637
        %1639 = vrot.lane.b32.xlu0 %v1450, 116
        %v1640 = vpop.permute.xlu0 %1639
        %1641 = vrot.lane.b32.xlu0 %v1451, 116
        %v1642 = vpop.permute.xlu0 %1641
        %1643 = vrot.lane.b32.xlu0 %v1452, 116
        %v1644 = vpop.permute.xlu0 %1643
        %1645 = vrot.lane.b32.xlu0 %v1453, 116
        %v1646 = vpop.permute.xlu0 %1645
        %1647 = vrot.lane.b32.xlu0 %v1454, 116
        %v1648 = vpop.permute.xlu0 %1647
        %1649 = vrot.lane.b32.xlu0 %v1455, 116
        %v1650 = vpop.permute.xlu0 %1649
        %1651 = vrot.lane.b32.xlu0 %v1456, 116
        %v1652 = vpop.permute.xlu0 %1651
        %1653 = vrot.lane.b32.xlu0 %v1457, 116
        %v1654 = vpop.permute.xlu0 %1653
        %1655 = vrot.lane.b32.xlu0 %v1458, 116
        %v1656 = vpop.permute.xlu0 %1655
        %1657 = vrot.lane.b32.xlu0 %v1459, 116
        %v1658 = vpop.permute.xlu0 %1657
        %1659 = vrot.lane.b32.xlu0 %v1460, 116
        %v1660 = vpop.permute.xlu0 %1659
        %1661 = vrot.lane.b32.xlu0 %v1461, 116
        %v1662 = vpop.permute.xlu0 %1661
        %1663 = vrot.lane.b32.xlu0 %v1462, 116
        %v1664 = vpop.permute.xlu0 %1663
        %1665 = vrot.lane.b32.xlu0 %v1463, 116
        %v1666 = vpop.permute.xlu0 %1665
        %1667 = vrot.lane.b32.xlu0 %v1464, 116
        %v1668 = vpop.permute.xlu0 %1667
        %1669 = vrot.lane.b32.xlu0 %v1465, 116
        %v1670 = vpop.permute.xlu0 %1669
        %1671 = vrot.lane.b32.xlu0 %v1466, 116
        %v1672 = vpop.permute.xlu0 %1671
        %1673 = vrot.lane.b32.xlu0 %v1467, 116
        %v1674 = vpop.permute.xlu0 %1673
        %1675 = vrot.lane.b32.xlu0 %v1468, 116
        %v1676 = vpop.permute.xlu0 %1675
        %1677 = vrot.lane.b32.xlu0 %v1469, 116
        %v1678 = vpop.permute.xlu0 %1677
        %1679 = vrot.lane.b32.xlu0 %v1470, 116
        %v1680 = vpop.permute.xlu0 %1679
        %1681 = vrot.lane.b32.xlu0 %v1471, 116
        %v1682 = vpop.permute.xlu0 %1681
        %1683 = vrot.lane.b32.xlu0 %v1472, 116
        %v1684 = vpop.permute.xlu0 %1683
        %1685 = vrot.lane.b32.xlu0 %v1473, 116
        %v1686 = vpop.permute.xlu0 %1685
        %1687 = vrot.lane.b32.xlu0 %v1474, 116
        %v1688 = vpop.permute.xlu0 %1687
        %1689 = vrot.lane.b32.xlu0 %v1475, 116
        %v1690 = vpop.permute.xlu0 %1689
        %1691 = vrot.lane.b32.xlu0 %v1476, 116
        %v1692 = vpop.permute.xlu0 %1691
        %1693 = vrot.lane.b32.xlu0 %v1585, 116
        %v1694 = vpop.permute.xlu0 %1693
        %1695 = vrot.lane.b32.xlu0 %v1586, 116
        %v1696 = vpop.permute.xlu0 %1695
        %1697 = vrot.lane.b32.xlu0 %v1587, 116
        %v1698 = vpop.permute.xlu0 %1697
        %1699 = vrot.lane.b32.xlu0 %v1588, 116
        %v1700 = vpop.permute.xlu0 %1699
        %1701 = vrot.lane.b32.xlu0 %v1589, 116
        %v1702 = vpop.permute.xlu0 %1701
        %1703 = vrot.lane.b32.xlu0 %v1590, 116
        %v1704 = vpop.permute.xlu0 %1703
        %1705 = vrot.lane.b32.xlu0 %v1591, 116
        %v1706 = vpop.permute.xlu0 %1705
        %1707 = vrot.lane.b32.xlu0 %v1592, 116
        %v1708 = vpop.permute.xlu0 %1707
        %1709 = vrot.lane.b32.xlu0 %v1593, 116
        %v1710 = vpop.permute.xlu0 %1709
        %1711 = vrot.lane.b32.xlu0 %v1594, 116
        %v1712 = vpop.permute.xlu0 %1711
        %1713 = vrot.lane.b32.xlu0 %v1595, 116
        %v1714 = vpop.permute.xlu0 %1713
        %1715 = vrot.lane.b32.xlu0 %v1596, 116
        %v1716 = vpop.permute.xlu0 %1715
        %1717 = vrot.lane.b32.xlu0 %v1597, 116
        %v1718 = vpop.permute.xlu0 %1717
        %1719 = vrot.lane.b32.xlu0 %v1598, 116
        %v1720 = vpop.permute.xlu0 %1719
        %1721 = vrot.lane.b32.xlu0 %v1599, 116
        %v1722 = vpop.permute.xlu0 %1721
        %1723 = vrot.lane.b32.xlu0 %v1600, 116
        %v1724 = vpop.permute.xlu0 %1723
        %1725 = vrot.lane.b32.xlu0 %v1601, 116
        %v1726 = vpop.permute.xlu0 %1725
        %1727 = vrot.lane.b32.xlu0 %v1602, 116
        %v1728 = vpop.permute.xlu0 %1727
        %1729 = vrot.lane.b32.xlu0 %v1603, 116
        %v1730 = vpop.permute.xlu0 %1729
        %1731 = vrot.lane.b32.xlu0 %v1604, 116
        %v1732 = vpop.permute.xlu0 %1731
        %1733 = vrot.lane.b32.xlu0 %v1605, 116
        %v1734 = vpop.permute.xlu0 %1733
        %1735 = vrot.lane.b32.xlu0 %v1606, 116
        %v1736 = vpop.permute.xlu0 %1735
        %1737 = vrot.lane.b32.xlu0 %v1607, 116
        %v1738 = vpop.permute.xlu0 %1737
        %1739 = vrot.lane.b32.xlu0 %v1608, 116
        %v1740 = vpop.permute.xlu0 %1739
        %1741 = vrot.lane.b32.xlu0 %v1609, 116
        %v1742 = vpop.permute.xlu0 %1741
        %1743 = vrot.lane.b32.xlu0 %v1610, 116
        %v1744 = vpop.permute.xlu0 %1743
        %1745 = vrot.lane.b32.xlu0 %v1611, 116
        %v1746 = vpop.permute.xlu0 %1745
        %1747 = vrot.lane.b32.xlu0 %v1612, 116
        %v1748 = vpop.permute.xlu0 %1747
        %1749 = vrot.lane.b32.xlu0 %v1613, 116
        %v1750 = vpop.permute.xlu0 %1749
        %1751 = vrot.lane.b32.xlu0 %v1614, 116
        %v1752 = vpop.permute.xlu0 %1751
        %1753 = vrot.lane.b32.xlu0 %v1615, 116
        %v1754 = vpop.permute.xlu0 %1753
        %1755 = vrot.lane.b32.xlu0 %v1616, 116
        %v1756 = vpop.permute.xlu0 %1755
        %1757 = vrot.lane.b32.xlu0 %v1617, 116
        %v1758 = vpop.permute.xlu0 %1757
        %1759 = vrot.lane.b32.xlu0 %v1618, 116
        %v1760 = vpop.permute.xlu0 %1759
        %1761 = vrot.lane.b32.xlu0 %v1619, 116
        %v1762 = vpop.permute.xlu0 %1761
        %1763 = vrot.lane.b32.xlu0 %v1620, 116
        %v1764 = vpop.permute.xlu0 %1763
        %v1765 = vmul.f32 %v1397, %v1622
        %v1766 = vmul.f32 %v1398, %v1624
        %v1767 = vmul.f32 %v1399, %v1626
        %v1768 = vmul.f32 %v1400, %v1628
        %v1769 = vmul.f32 %v1401, %v1630
        %v1770 = vmul.f32 %v1402, %v1632
        %v1771 = vmul.f32 %v1403, %v1634
        %v1772 = vmul.f32 %v1404, %v1636
        %v1773 = vmul.f32 %v1405, %v1638
        %v1774 = vmul.f32 %v1406, %v1640
        %v1775 = vmul.f32 %v1407, %v1642
        %v1776 = vmul.f32 %v1408, %v1644
        %v1777 = vmul.f32 %v1409, %v1646
        %v1778 = vmul.f32 %v1410, %v1648
        %v1779 = vmul.f32 %v1411, %v1650
        %v1780 = vmul.f32 %v1412, %v1652
        %v1781 = vmul.f32 %v1413, %v1654
        %v1782 = vmul.f32 %v1414, %v1656
        %v1783 = vmul.f32 %v1415, %v1658
        %v1784 = vmul.f32 %v1416, %v1660
        %v1785 = vmul.f32 %v1417, %v1662
        %v1786 = vmul.f32 %v1418, %v1664
        %v1787 = vmul.f32 %v1419, %v1666
        %v1788 = vmul.f32 %v1420, %v1668
        %v1789 = vmul.f32 %v1421, %v1670
        %v1790 = vmul.f32 %v1422, %v1672
        %v1791 = vmul.f32 %v1423, %v1674
        %v1792 = vmul.f32 %v1424, %v1676
        %v1793 = vmul.f32 %v1425, %v1678
        %v1794 = vmul.f32 %v1426, %v1680
        %v1795 = vmul.f32 %v1427, %v1682
        %v1796 = vmul.f32 %v1428, %v1684
        %v1797 = vmul.f32 %v1429, %v1686
        %v1798 = vmul.f32 %v1430, %v1688
        %v1799 = vmul.f32 %v1431, %v1690
        %v1800 = vmul.f32 %v1432, %v1692
        %v1801 = vadd.f32 %v1765, %v1441
        %v1802 = vadd.f32 %v1766, %v1442
        %v1803 = vadd.f32 %v1767, %v1443
        %v1804 = vadd.f32 %v1768, %v1444
        %v1805 = vadd.f32 %v1769, %v1445
        %v1806 = vadd.f32 %v1770, %v1446
        %v1807 = vadd.f32 %v1771, %v1447
        %v1808 = vadd.f32 %v1772, %v1448
        %v1809 = vadd.f32 %v1773, %v1449
        %v1810 = vadd.f32 %v1774, %v1450
        %v1811 = vadd.f32 %v1775, %v1451
        %v1812 = vadd.f32 %v1776, %v1452
        %v1813 = vadd.f32 %v1777, %v1453
        %v1814 = vadd.f32 %v1778, %v1454
        %v1815 = vadd.f32 %v1779, %v1455
        %v1816 = vadd.f32 %v1780, %v1456
        %v1817 = vadd.f32 %v1781, %v1457
        %v1818 = vadd.f32 %v1782, %v1458
        %v1819 = vadd.f32 %v1783, %v1459
        %v1820 = vadd.f32 %v1784, %v1460
        %v1821 = vadd.f32 %v1785, %v1461
        %v1822 = vadd.f32 %v1786, %v1462
        %v1823 = vadd.f32 %v1787, %v1463
        %v1824 = vadd.f32 %v1788, %v1464
        %v1825 = vadd.f32 %v1789, %v1465
        %v1826 = vadd.f32 %v1790, %v1466
        %v1827 = vadd.f32 %v1791, %v1467
        %v1828 = vadd.f32 %v1792, %v1468
        %v1829 = vadd.f32 %v1793, %v1469
        %v1830 = vadd.f32 %v1794, %v1470
        %v1831 = vadd.f32 %v1795, %v1471
        %v1832 = vadd.f32 %v1796, %v1472
        %v1833 = vadd.f32 %v1797, %v1473
        %v1834 = vadd.f32 %v1798, %v1474
        %v1835 = vadd.f32 %v1799, %v1475
        %v1836 = vadd.f32 %v1800, %v1476
        %v1837 = vmul.f32 %v1694, 0.5
        %v1838 = vmul.f32 %v1696, 0.5
        %v1839 = vmul.f32 %v1698, 0.5
        %v1840 = vmul.f32 %v1700, 0.5
        %v1841 = vmul.f32 %v1702, 0.5
        %v1842 = vmul.f32 %v1704, 0.5
        %v1843 = vmul.f32 %v1706, 0.5
        %v1844 = vmul.f32 %v1708, 0.5
        %v1845 = vmul.f32 %v1710, 0.5
        %v1846 = vmul.f32 %v1712, 0.5
        %v1847 = vmul.f32 %v1714, 0.5
        %v1848 = vmul.f32 %v1716, 0.5
        %v1849 = vmul.f32 %v1718, 0.5
        %v1850 = vmul.f32 %v1720, 0.5
        %v1851 = vmul.f32 %v1722, 0.5
        %v1852 = vmul.f32 %v1724, 0.5
        %v1853 = vmul.f32 %v1726, 0.5
        %v1854 = vmul.f32 %v1728, 0.5
        %v1855 = vmul.f32 %v1730, 0.5
        %v1856 = vmul.f32 %v1732, 0.5
        %v1857 = vmul.f32 %v1734, 0.5
        %v1858 = vmul.f32 %v1736, 0.5
        %v1859 = vmul.f32 %v1738, 0.5
        %v1860 = vmul.f32 %v1740, 0.5
        %v1861 = vmul.f32 %v1742, 0.5
        %v1862 = vmul.f32 %v1744, 0.5
        %v1863 = vmul.f32 %v1746, 0.5
        %v1864 = vmul.f32 %v1748, 0.5
        %v1865 = vmul.f32 %v1750, 0.5
        %v1866 = vmul.f32 %v1752, 0.5
        %v1867 = vmul.f32 %v1754, 0.5
        %v1868 = vmul.f32 %v1756, 0.5
        %v1869 = vmul.f32 %v1758, 0.5
        %v1870 = vmul.f32 %v1760, 0.5
        %v1871 = vmul.f32 %v1762, 0.5
        %v1872 = vmul.f32 %v1764, 0.5
        %v1873 = vsub.f32 %v1801, %v1837
        %v1874 = vsub.f32 %v1802, %v1838
        %v1875 = vsub.f32 %v1803, %v1839
        %v1876 = vsub.f32 %v1804, %v1840
        %v1877 = vsub.f32 %v1805, %v1841
        %v1878 = vsub.f32 %v1806, %v1842
        %v1879 = vsub.f32 %v1807, %v1843
        %v1880 = vsub.f32 %v1808, %v1844
        %v1881 = vsub.f32 %v1809, %v1845
        %v1882 = vsub.f32 %v1810, %v1846
        %v1883 = vsub.f32 %v1811, %v1847
        %v1884 = vsub.f32 %v1812, %v1848
        %v1885 = vsub.f32 %v1813, %v1849
        %v1886 = vsub.f32 %v1814, %v1850
        %v1887 = vsub.f32 %v1815, %v1851
        %v1888 = vsub.f32 %v1816, %v1852
        %v1889 = vsub.f32 %v1817, %v1853
        %v1890 = vsub.f32 %v1818, %v1854
        %v1891 = vsub.f32 %v1819, %v1855
        %v1892 = vsub.f32 %v1820, %v1856
        %v1893 = vsub.f32 %v1821, %v1857
        %v1894 = vsub.f32 %v1822, %v1858
        %v1895 = vsub.f32 %v1823, %v1859
        %v1896 = vsub.f32 %v1824, %v1860
        %v1897 = vsub.f32 %v1825, %v1861
        %v1898 = vsub.f32 %v1826, %v1862
        %v1899 = vsub.f32 %v1827, %v1863
        %v1900 = vsub.f32 %v1828, %v1864
        %v1901 = vsub.f32 %v1829, %v1865
        %v1902 = vsub.f32 %v1830, %v1866
        %v1903 = vsub.f32 %v1831, %v1867
        %v1904 = vsub.f32 %v1832, %v1868
        %v1905 = vsub.f32 %v1833, %v1869
        %v1906 = vsub.f32 %v1834, %v1870
        %v1907 = vsub.f32 %v1835, %v1871
        %v1908 = vsub.f32 %v1836, %v1872
        %v1909 = vsel %vm1440, %v1585, %v1397
        %v1910 = vsel %vm1440, %v1586, %v1398
        %v1911 = vsel %vm1440, %v1587, %v1399
        %v1912 = vsel %vm1440, %v1588, %v1400
        %v1913 = vsel %vm1440, %v1589, %v1401
        %v1914 = vsel %vm1440, %v1590, %v1402
        %v1915 = vsel %vm1440, %v1591, %v1403
        %v1916 = vsel %vm1440, %v1592, %v1404
        %v1917 = vsel %vm1440, %v1593, %v1405
        %v1918 = vsel %vm1440, %v1594, %v1406
        %v1919 = vsel %vm1440, %v1595, %v1407
        %v1920 = vsel %vm1440, %v1596, %v1408
        %v1921 = vsel %vm1440, %v1597, %v1409
        %v1922 = vsel %vm1440, %v1598, %v1410
        %v1923 = vsel %vm1440, %v1599, %v1411
        %v1924 = vsel %vm1440, %v1600, %v1412
        %v1925 = vsel %vm1440, %v1601, %v1413
        %v1926 = vsel %vm1440, %v1602, %v1414
        %v1927 = vsel %vm1440, %v1603, %v1415
        %v1928 = vsel %vm1440, %v1604, %v1416
        %v1929 = vsel %vm1440, %v1605, %v1417
        %v1930 = vsel %vm1440, %v1606, %v1418
        %v1931 = vsel %vm1440, %v1607, %v1419
        %v1932 = vsel %vm1440, %v1608, %v1420
        %v1933 = vsel %vm1440, %v1609, %v1421
        %v1934 = vsel %vm1440, %v1610, %v1422
        %v1935 = vsel %vm1440, %v1611, %v1423
        %v1936 = vsel %vm1440, %v1612, %v1424
        %v1937 = vsel %vm1440, %v1613, %v1425
        %v1938 = vsel %vm1440, %v1614, %v1426
        %v1939 = vsel %vm1440, %v1615, %v1427
        %v1940 = vsel %vm1440, %v1616, %v1428
        %v1941 = vsel %vm1440, %v1617, %v1429
        %v1942 = vsel %vm1440, %v1618, %v1430
        %v1943 = vsel %vm1440, %v1619, %v1431
        %v1944 = vsel %vm1440, %v1620, %v1432
        %v1945 = vsel %vm1437, %v1873, %v1909
        %v1946 = vsel %vm1437, %v1874, %v1910
        %v1947 = vsel %vm1437, %v1875, %v1911
        %v1948 = vsel %vm1437, %v1876, %v1912
        %v1949 = vsel %vm1437, %v1877, %v1913
        %v1950 = vsel %vm1437, %v1878, %v1914
        %v1951 = vsel %vm1437, %v1879, %v1915
        %v1952 = vsel %vm1437, %v1880, %v1916
        %v1953 = vsel %vm1437, %v1881, %v1917
        %v1954 = vsel %vm1437, %v1882, %v1918
        %v1955 = vsel %vm1437, %v1883, %v1919
        %v1956 = vsel %vm1437, %v1884, %v1920
        %v1957 = vsel %vm1437, %v1885, %v1921
        %v1958 = vsel %vm1437, %v1886, %v1922
        %v1959 = vsel %vm1437, %v1887, %v1923
        %v1960 = vsel %vm1437, %v1888, %v1924
        %v1961 = vsel %vm1437, %v1889, %v1925
        %v1962 = vsel %vm1437, %v1890, %v1926
        %v1963 = vsel %vm1437, %v1891, %v1927
        %v1964 = vsel %vm1437, %v1892, %v1928
        %v1965 = vsel %vm1437, %v1893, %v1929
        %v1966 = vsel %vm1437, %v1894, %v1930
        %v1967 = vsel %vm1437, %v1895, %v1931
        %v1968 = vsel %vm1437, %v1896, %v1932
        %v1969 = vsel %vm1437, %v1897, %v1933
        %v1970 = vsel %vm1437, %v1898, %v1934
        %v1971 = vsel %vm1437, %v1899, %v1935
        %v1972 = vsel %vm1437, %v1900, %v1936
        %v1973 = vsel %vm1437, %v1901, %v1937
        %v1974 = vsel %vm1437, %v1902, %v1938
        %v1975 = vsel %vm1437, %v1903, %v1939
        %v1976 = vsel %vm1437, %v1904, %v1940
        %v1977 = vsel %vm1437, %v1905, %v1941
        %v1978 = vsel %vm1437, %v1906, %v1942
        %v1979 = vsel %vm1437, %v1907, %v1943
        %v1980 = vsel %vm1437, %v1908, %v1944
        %1981 = vst [vmem:[%s215] sm:$0xff] %v1945
        %1982 = vst [vmem:[%s215 + $0x8] sm:$0xff] %v1946
        %1983 = vst [vmem:[%s215 + $0x10] sm:$0xff] %v1947
        %1984 = vst [vmem:[%s215 + $0x18] sm:$0xff] %v1948
        %1985 = vst [vmem:[%s215 + $0x20] sm:$0xff] %v1949
        %1986 = vst [vmem:[%s215 + $0x28] sm:$0xff] %v1950
        %1987 = vst [vmem:[%s215 + $0x30] sm:$0xff] %v1951
        %1988 = vst [vmem:[%s215 + $0x38] sm:$0xff] %v1952
        %1989 = vst [vmem:[%s215 + $0x40] sm:$0xff] %v1953
        %1990 = vst [vmem:[%s215 + $0x48] sm:$0xff] %v1954
        %1991 = vst [vmem:[%s215 + $0x50] sm:$0xff] %v1955
        %1992 = vst [vmem:[%s215 + $0x58] sm:$0xff] %v1956
        %1993 = vst [vmem:[%s215 + $0x60] sm:$0xff] %v1957
        %1994 = vst [vmem:[%s215 + $0x68] sm:$0xff] %v1958
        %1995 = vst [vmem:[%s215 + $0x70] sm:$0xff] %v1959
        %1996 = vst [vmem:[%s215 + $0x78] sm:$0xff] %v1960
        %1997 = vst [vmem:[%s215 + $0x80] sm:$0xff] %v1961
        %1998 = vst [vmem:[%s215 + $0x88] sm:$0xff] %v1962
        %1999 = vst [vmem:[%s215 + $0x90] sm:$0xff] %v1963
        %2000 = vst [vmem:[%s215 + $0x98] sm:$0xff] %v1964
        %2001 = vst [vmem:[%s215 + $0xa0] sm:$0xff] %v1965
        %2002 = vst [vmem:[%s215 + $0xa8] sm:$0xff] %v1966
        %2003 = vst [vmem:[%s215 + $0xb0] sm:$0xff] %v1967
        %2004 = vst [vmem:[%s215 + $0xb8] sm:$0xff] %v1968
        %2005 = vst [vmem:[%s215 + $0xc0] sm:$0xff] %v1969
        %2006 = vst [vmem:[%s215 + $0xc8] sm:$0xff] %v1970
        %2007 = vst [vmem:[%s215 + $0xd0] sm:$0xff] %v1971
        %2008 = vst [vmem:[%s215 + $0xd8] sm:$0xff] %v1972
        %2009 = vst [vmem:[%s215 + $0xe0] sm:$0xff] %v1973
        %2010 = vst [vmem:[%s215 + $0xe8] sm:$0xff] %v1974
        %2011 = vst [vmem:[%s215 + $0xf0] sm:$0xff] %v1975
        %2012 = vst [vmem:[%s215 + $0xf8] sm:$0xff] %v1976
        %2013 = vst [vmem:[%s215 + $0x100] sm:$0xff] %v1977
        %2014 = vst [vmem:[%s215 + $0x108] sm:$0xff] %v1978
        %2015 = vst [vmem:[%s215 + $0x110] sm:$0xff] %v1979
        %2016 = vst [vmem:[%s215 + $0x118] sm:$0xff] %v1980
        %s2017 = sand.u32 %s118, 1
        %s2018 = scalar_lea.sflag [#allocation4], %s2017
        %s2019 = sand.u32 %s118, 1
        %s2020 = smul.addr %s2019, 288
        %s2021 = scalar_lea.vmem [#allocation5], %s2020
        // Predicated region
        $region41: #{tpu_custom_call.1} parent=35 // pred_check
          %p2022 = pneg %p128
        $region42: #{tpu_custom_call.1} parent=35 // pred_check_branch
          %2024 = sbr.rel (%p2022) target = $region44
        $region43: #{tpu_custom_call.1} parent=35 // pred_region
          %s2025 = smul.u32 36, %s21
          %s2027 = ssub.s32 4608, 4608
          %2028 = vsyncadd %s2018, %s2027
          %s2029 = smul.addr %s2025, 128
          %s2030 = scalar_lea.hbm %s4, %s2029
          %s2031 = sshll.u32 %s2021, 4
          %s2032 = int_to_ptr.vmem [resolvable:$true] %s2031
          %2037 = dma.vmem_to_hbm [thread:$0]  %s2032, 4608, %s2030, %s2018, 128, 128, 8
        $region44: #{tpu_custom_call.1} parent=35 // pred_fallthru
          _
      $region36: #{tpu_custom_call.1} parent=5 // pred_fallthru
        _
      %p2038 = scmp.le.s32.totalorder 2, %s16
      // Predicated region
      $region45: #{tpu_custom_call.1} parent=5 // pred_check
        %p2039 = pneg %p2038
      $region46: #{tpu_custom_call.1} parent=5 // pred_check_branch
        %2041 = sbr.rel (%p2039) target = $region48
      $region47: #{tpu_custom_call.1} parent=5 // pred_region
        %s2042 = ssub.s32 %s16, 2
        // Predicated region
        $region49: #{tpu_custom_call.1} parent=47 // pred_check
          %p2043 = pneg %p134
        $region50: #{tpu_custom_call.1} parent=47 // pred_check_branch
          %2045 = sbr.rel (%p2043) target = $region52
        $region51: #{tpu_custom_call.1} parent=47 // pred_region
          %s2046 = sand.u32 %s119, 1
          %s2047 = scalar_lea.sflag [#allocation4], %s2046
          %s2048 = sand.u32 %s119, 1
          %s2049 = smul.addr %s2048, 288
          %s2050 = scalar_lea.vmem [#allocation5], %s2049
          %2051 = dma.done %s2047, 4608
        $region52: #{tpu_custom_call.1} parent=47 // pred_fallthru
          _
      $region48: #{tpu_custom_call.1} parent=5 // pred_fallthru
        _
    $region6: #{tpu_custom_call.1} parent=1 // loop_footer
      %s20 = sadd.s32 1, %s16
    $region7: #{tpu_custom_call.1} parent=1 // loop_footer_branch
      %15 = sbr.rel target = $region3
    $region8: #{tpu_custom_call.1} parent=1 // loop_exit
      _
    %2052 = vsyncpa [#allocation3], 1
    %s2053 = scalar_lea.sflag [#allocation3], 1
    %2054 = vsyncpa %s2053, 1
    %2055 = vsyncpa [#allocation4], 1
    %s2056 = scalar_lea.sflag [#allocation4], 1
    %2057 = vsyncpa %s2056, 1

</llo_original>
